<compile_context>
chip_gen: v5e
topology: v5e:2x2
jax: 0.10.0
libtpu: 0.0.40
codegen_flags: <defaults>
</compile_context>

<pallas_src>
import functools

import jax
import jax.numpy as jnp
from jax.experimental import pallas as pl
from jax.experimental.pallas import tpu as pltpu


# ---------------------------------------------------------------------------
# Pallas kernel: matmul + fused BN shift (+residual) (+ReLU) epilogue.
# BN scale is pre-folded into the (bf16) weight columns.
# ---------------------------------------------------------------------------
def _epilogue(acc_f32, shift_ref, res_ref, o_ref, relu):
    out = acc_f32 + shift_ref[...]
    if res_ref is not None:
        out = out + res_ref[...].astype(jnp.float32)
    if relu:
        out = jnp.maximum(out, 0.0)
    o_ref[...] = out.astype(o_ref.dtype)


def _conv_matmul_kernel(a_ref, b_ref, shift_ref, *rest, relu, has_res, single_k):
    if has_res:
        res_ref, rest = rest[0], rest[1:]
    else:
        res_ref = None

    if single_k:
        # Fast path: whole K in one block -> no accumulator scratch, no zero-init,
        # result goes straight to the bf16 output block.
        (o_ref,) = rest
        acc = jnp.dot(a_ref[...], b_ref[...], preferred_element_type=jnp.float32)
        _epilogue(acc, shift_ref, res_ref, o_ref, relu)
    else:
        o_ref, acc_ref = rest
        k = pl.program_id(2)

        @pl.when(k == 0)
        def _init():
            acc_ref[...] = jnp.zeros_like(acc_ref)

        acc_ref[...] += jnp.dot(a_ref[...], b_ref[...],
                                preferred_element_type=jnp.float32)

        @pl.when(k == pl.num_programs(2) - 1)
        def _finalize():
            _epilogue(acc_ref[...], shift_ref, res_ref, o_ref, relu)


# ---------------------------------------------------------------------------
# Tiling helpers
# ---------------------------------------------------------------------------
_MIN_PALLAS_M = 16                      # below this, pallas_call overhead > compute
_WEIGHT_TILE_BYTES = 4 * 1024 * 1024    # cap on the (tk, tn) bf16 weight block


def _round_up(x, m):
    return -(-x // m) * m


@functools.lru_cache(maxsize=1)
def _tile_cap():
    """256-wide tiles for v6e/v7x (2x256x256 MXU); 128 for 128x128-MXU chips."""
    try:
        kind = jax.devices()[0].device_kind.lower()
    except Exception:
        kind = ""
    for tag in ("v2", "v3", "v4", "v5"):
        if tag in kind:
            return 128
    return 256


def _choose_tn(N, cap):
    if N % 256 == 0 and cap >= 256:
        return 256
    if N % 128 == 0:
        return 128
    return N


def _choose_tk(K, tn):
    """Full K when the (K, tn) bf16 weight block fits the budget, else the largest
    multiple-of-128 divisor of K that does."""
    if K * tn * 2 <= _WEIGHT_TILE_BYTES:
        return K
    best = None
    t = 128
    while t * tn * 2 <= _WEIGHT_TILE_BYTES:
        if K % t == 0:
            best = t
        t += 128
    return best if best is not None else K


# ---------------------------------------------------------------------------
# Fused matmul wrapper
# ---------------------------------------------------------------------------
def fused_matmul(a, b, shift, relu, residual=None):
    """act((a @ b) + shift [+ residual]) -> bf16 (M, N).

    a: (M, K) activations (cast to bf16), b: (K, N) bf16 weights with BN scale
    pre-folded, shift: (N,) f32 folded BN shift."""
    M, K = a.shape
    K2, N = b.shape
    assert K == K2
    a = a.astype(jnp.bfloat16)
    shift2d = shift.reshape(1, N).astype(jnp.float32)
    if residual is not None:
        residual = residual.astype(jnp.bfloat16)

    if M < _MIN_PALLAS_M:
        # Tiny-M matmuls (layer3/4 at batch 2): MXU row occupancy <6% and
        # pallas_call dispatch dominates -> let XLA handle it (per perf review).
        out = jnp.dot(a, b, preferred_element_type=jnp.float32) + shift2d
        if residual is not None:
            out = out + residual.astype(jnp.float32)
        if relu:
            out = jnp.maximum(out, 0.0)
        return out.astype(jnp.bfloat16)

    cap = _tile_cap()
    # ---- tile / grid choice, remainder-safe via row padding -----------------
    M8 = _round_up(M, 8)
    tm = min(cap, M8)
    M_pad = _round_up(M8, tm)
    tn = _choose_tn(N, cap)
    tk = _choose_tk(K, tn)
    grid_m, grid_n, grid_k = M_pad // tm, N // tn, K // tk
    single_k = grid_k == 1

    if M_pad != M:
        a = jnp.pad(a, ((0, M_pad - M), (0, 0)))
        if residual is not None:
            residual = jnp.pad(residual, ((0, M_pad - M), (0, 0)))

    if single_k:
        grid = (grid_m, grid_n)
        in_specs = [
            pl.BlockSpec((tm, K), lambda i, j: (i, 0)),
            pl.BlockSpec((K, tn), lambda i, j: (0, j)),
            pl.BlockSpec((1, tn), lambda i, j: (0, j)),
        ]
        res_spec = pl.BlockSpec((tm, tn), lambda i, j: (i, j))
        out_spec = pl.BlockSpec((tm, tn), lambda i, j: (i, j))
        scratch = []
        dims = ("parallel", "parallel")
    else:
        grid = (grid_m, grid_n, grid_k)
        in_specs = [
            pl.BlockSpec((tm, tk), lambda i, j, k: (i, k)),
            # Per-step compute is small -> triple-buffer the weight stream so the
            # DMA latency stays hidden.
            pl.BlockSpec((tk, tn), lambda i, j, k: (k, j),
                         pipeline_mode=pl.Buffered(3)),
            pl.BlockSpec((1, tn), lambda i, j, k: (0, j)),
        ]
        res_spec = pl.BlockSpec((tm, tn), lambda i, j, k: (i, j))
        out_spec = pl.BlockSpec((tm, tn), lambda i, j, k: (i, j))
        scratch = [pltpu.VMEM((tm, tn), jnp.float32)]
        dims = ("parallel", "parallel", "arbitrary")

    args = [a, b, shift2d]
    if residual is not None:
        in_specs.append(res_spec)
        args.append(residual)

    out = pl.pallas_call(
        functools.partial(_conv_matmul_kernel, relu=relu,
                          has_res=residual is not None, single_k=single_k),
        out_shape=jax.ShapeDtypeStruct((M_pad, N), jnp.bfloat16),
        grid_spec=pltpu.PrefetchScalarGridSpec(
            num_scalar_prefetch=0,
            grid=grid,
            in_specs=in_specs,
            out_specs=out_spec,
            scratch_shapes=scratch,
        ),
        compiler_params=pltpu.CompilerParams(
            dimension_semantics=dims,
            vmem_limit_bytes=32 * 1024 * 1024,  # safe on v5e/v6e/v7x; working set << this
        ),
    )(*args)
    return out[:M] if M_pad != M else out


# ---------------------------------------------------------------------------
# Plain-JAX glue (layout / patch extraction / pooling)
# ---------------------------------------------------------------------------
def im2col(x, k, stride, pad):
    """x: (B,H,W,C) bf16 NHWC -> patches (B*Ho*Wo, k*k*C), feature order (kh,kw,C)."""
    # TODO(synk): fuse the tap extraction into the matmul kernel to avoid the
    #             materialized patch tensor (dominant HBM traffic at large shapes).
    B, H, W, C = x.shape
    Ho = (H + 2 * pad - k) // stride + 1
    Wo = (W + 2 * pad - k) // stride + 1
    xp = jnp.pad(x, ((0, 0), (pad, pad), (pad, pad), (0, 0))) if pad else x
    cols = []
    for i in range(k):
        for j in range(k):
            cols.append(xp[:, i:i + stride * Ho:stride, j:j + stride * Wo:stride, :])
    patches = jnp.concatenate(cols, axis=-1) if len(cols) > 1 else cols[0]
    return patches.reshape(B * Ho * Wo, k * k * C), Ho, Wo


def conv_bn(x, cp, k, stride, pad, relu, residual=None):
    """Conv2d(no bias) + folded BN (+residual) (+ReLU) via the Pallas matmul kernel."""
    B = x.shape[0]
    a, Ho, Wo = im2col(x, k, stride, pad)
    res2d = residual.reshape(B * Ho * Wo, -1) if residual is not None else None
    y = fused_matmul(a, cp["wm"], cp["shift"], relu, residual=res2d)
    return y.reshape(B, Ho, Wo, -1)


def maxpool_3x3_s2_p1(x):
    """MaxPool2d(kernel=3, stride=2, padding=1), windows folded in the wrapper."""
    B, H, W, C = x.shape
    k, s, pad = 3, 2, 1
    Ho = (H + 2 * pad - k) // s + 1
    Wo = (W + 2 * pad - k) // s + 1
    xp = jnp.pad(x, ((0, 0), (pad, pad), (pad, pad), (0, 0)),
                 constant_values=-jnp.inf)
    out = None
    for i in range(k):
        for j in range(k):
            win = xp[:, i:i + s * Ho:s, j:j + s * Wo:s, :]
            out = win if out is None else jnp.maximum(out, win)
    return out


# ---------------------------------------------------------------------------
# Parameter construction (deterministic, synthetic; pre-folded / pre-transposed)
# ---------------------------------------------------------------------------
class KeyGen:
    def __init__(self, seed):
        self.key = jax.random.PRNGKey(seed)

    def __call__(self):
        self.key, sub = jax.random.split(self.key)
        return sub


def _conv_weight(kg, cout, cin, k):
    return 0.05 * jax.random.normal(kg(), (cout, cin, k, k), jnp.float32)


def _bn_scale_shift(kg, c, eps=1e-5):
    gamma = 1.0 + 0.1 * jax.random.normal(kg(), (c,), jnp.float32)
    beta = 0.1 * jax.random.normal(kg(), (c,), jnp.float32)
    rmean = 0.1 * jax.random.normal(kg(), (c,), jnp.float32)
    rvar = jax.random.uniform(kg(), (c,), jnp.float32, minval=0.5, maxval=1.5)
    scale = gamma / jnp.sqrt(rvar + eps)
    shift = beta - rmean * scale
    return scale, shift


def _make_conv_entry(kg, cin, cout, k):
    """Torch OIHW conv weight -> pre-transposed (k*k*cin, cout), BN scale folded
    into the columns, cast ONCE to bf16; BN shift kept f32."""
    w = _conv_weight(kg, cout, cin, k)
    scale, shift = _bn_scale_shift(kg, cout)
    wm = jnp.transpose(w, (2, 3, 1, 0)).reshape(k * k * cin, cout)
    wm = (wm * scale[None, :]).astype(jnp.bfloat16)
    return {"wm": wm, "shift": shift.astype(jnp.float32)}


def _make_block_params(kg, cin, cout, downsample):
    p = {
        "conv1": _make_conv_entry(kg, cin, cout, 3),
        "conv2": _make_conv_entry(kg, cout, cout, 3),
    }
    if downsample:
        p["ds"] = _make_conv_entry(kg, cin, cout, 1)
    return p


def make_resnet18_params(seed=0):
    kg = KeyGen(seed)
    params = {"conv1": _make_conv_entry(kg, 3, 64, 7)}
    stage_cfg = [(64, 64, 1), (64, 128, 2), (128, 256, 2), (256, 512, 2)]
    for li, (cin, cout, stride) in enumerate(stage_cfg):
        for bi in range(2):
            ds = (bi == 0) and (stride != 1 or cin != cout)
            params[f"layer{li + 1}.{bi}"] = _make_block_params(
                kg, cin if bi == 0 else cout, cout, ds)
    params["fc_w"] = (0.05 * jax.random.normal(kg(), (7, 512), jnp.float32)).T  # (512,7)
    params["fc_b"] = 0.1 * jax.random.normal(kg(), (7,), jnp.float32)
    return params


# ---------------------------------------------------------------------------
# Forward pass (== ASHResNet18.forward without any hooks registered)
# ---------------------------------------------------------------------------
def basic_block(x, p, stride):
    out = conv_bn(x, p["conv1"], 3, stride, 1, relu=True)
    if "ds" in p:
        identity = conv_bn(x, p["ds"], 1, stride, 0, relu=False)
    else:
        identity = x
    # conv2 + BN + residual add + ReLU fused into one kernel epilogue.
    out = conv_bn(out, p["conv2"], 3, 1, 1, relu=True, residual=identity)
    return out


def ash_resnet18_forward(x_nchw, params):
    # layout: NCHW in (PyTorch), bf16 NHWC internally.
    x = jnp.transpose(x_nchw, (0, 2, 3, 1)).astype(jnp.bfloat16)
    x = conv_bn(x, params["conv1"], 7, 2, 3, relu=True)
    x = maxpool_3x3_s2_p1(x)
    stage_strides = [1, 2, 2, 2]
    for li in range(4):
        for bi in range(2):
            s = stage_strides[li] if bi == 0 else 1
            x = basic_block(x, params[f"layer{li + 1}.{bi}"], s)
    # AdaptiveAvgPool2d((1,1)) + flatten + fc 512->7 (too small / lane-sparse for Pallas).
    feat = jnp.mean(x.astype(jnp.float32), axis=(1, 2))  # (B, 512)
    logits = feat @ params["fc_w"] + params["fc_b"]
    return logits  # (B, 7) f32


# ---------------------------------------------------------------------------
if __name__ == "__main__":
    params = make_resnet18_params(seed=0)
    x = jax.random.normal(jax.random.PRNGKey(0), (2, 3, 32, 32), jnp.float32)
    fwd = jax.jit(ash_resnet18_forward)
    logits = jax.block_until_ready(fwd(x, params))
    assert logits.shape == (2, 7) and logits.dtype == jnp.float32
    assert bool(jnp.all(jnp.isfinite(logits)))
    print("KERNEL_OK")
</pallas_src>

<mosaic_0001>
module attributes {stable_mosaic.version = 11 : i64} {
  func.func @_conv_matmul_kernel(%arg0: i32, %arg1: i32, %arg2: memref<256x147xbf16, #tpu.memory_space<vmem>>, %arg3: memref<147x64xbf16, #tpu.memory_space<vmem>>, %arg4: memref<1x64xf32, #tpu.memory_space<vmem>>, %arg5: memref<256x64xbf16, #tpu.memory_space<vmem>>) attributes {dimension_semantics = [#tpu.dimension_semantics<parallel>, #tpu.dimension_semantics<parallel>], iteration_bounds = array<i64: 2, 1>, scalar_prefetch = 0 : i64, scratch_operands = 0 : i64, tpu.core_type = #tpu.core_type<tc>, window_params = [{transform_indices = @transform_0, window_bounds = array<i64: 256, 147>}, {transform_indices = @transform_1, window_bounds = array<i64: 147, 64>}, {transform_indices = @transform_2, window_bounds = array<i64: 1, 64>}, {transform_indices = @transform_3, window_bounds = array<i64: 256, 64>}]} {
    %c0 = arith.constant 0 : index
    %c0_0 = arith.constant 0 : index
    %0 = vector.load %arg2[%c0, %c0_0] : memref<256x147xbf16, #tpu.memory_space<vmem>>, vector<256x147xbf16>
    %c0_1 = arith.constant 0 : index
    %c0_2 = arith.constant 0 : index
    %1 = vector.load %arg3[%c0_1, %c0_2] : memref<147x64xbf16, #tpu.memory_space<vmem>>, vector<147x64xbf16>
    %cst = arith.constant dense<0.000000e+00> : vector<256x64xf32>
    %2 = tpu.matmul %0, %1, %cst {dimension_numbers = #tpu.dot_dimension_numbers<[1], [0], [0], [1], [0, 0, 1, 1], [], []>} : vector<256x147xbf16>, vector<147x64xbf16>, vector<256x64xf32> -> vector<256x64xf32>
    %c0_3 = arith.constant 0 : index
    %c0_4 = arith.constant 0 : index
    %3 = vector.load %arg4[%c0_3, %c0_4] : memref<1x64xf32, #tpu.memory_space<vmem>>, vector<1x64xf32>
    %4 = vector.broadcast %3 : vector<1x64xf32> to vector<256x64xf32>
    %5 = arith.addf %2, %4 : vector<256x64xf32>
    %cst_5 = arith.constant 0.000000e+00 : f32
    %6 = vector.broadcast %cst_5 : f32 to vector<256x64xf32>
    %7 = arith.maximumf %5, %6 : vector<256x64xf32>
    %8 = arith.truncf %7 : vector<256x64xf32> to vector<256x64xbf16>
    %c0_6 = arith.constant 0 : index
    %c0_7 = arith.constant 0 : index
    %9 = vector.load %arg5[%c0_6, %c0_7] : memref<256x64xbf16, #tpu.memory_space<vmem>>, vector<256x64xbf16>
    tpu.vector_store %arg5[%c0_6, %c0_7], %8 {strides = array<i32>} : memref<256x64xbf16, #tpu.memory_space<vmem>>, vector<256x64xbf16>,
    return
  }
  func.func @transform_0(%arg0: i32, %arg1: i32) -> (i32, i32) {
    %c0_i32 = arith.constant 0 : i32
    %c0_i32_0 = arith.constant 0 : i32
    return %arg0, %c0_i32 : i32, i32
  }
  func.func @transform_1(%arg0: i32, %arg1: i32) -> (i32, i32) {
    %c0_i32 = arith.constant 0 : i32
    %c0_i32_0 = arith.constant 0 : i32
    return %c0_i32, %arg1 : i32, i32
  }
  func.func @transform_2(%arg0: i32, %arg1: i32) -> (i32, i32) {
    %c0_i32 = arith.constant 0 : i32
    %c0_i32_0 = arith.constant 0 : i32
    return %c0_i32, %arg1 : i32, i32
  }
  func.func @transform_3(%arg0: i32, %arg1: i32) -> (i32, i32) {
    %c0_i32 = arith.constant 0 : i32
    return %arg0, %arg1 : i32, i32
  }
}

module attributes {stable_mosaic.version = 11 : i64} {
  func.func @_conv_matmul_kernel(%arg0: i32, %arg1: i32, %arg2: memref<128x576xbf16, #tpu.memory_space<vmem>>, %arg3: memref<576x64xbf16, #tpu.memory_space<vmem>>, %arg4: memref<1x64xf32, #tpu.memory_space<vmem>>, %arg5: memref<128x64xbf16, #tpu.memory_space<vmem>>) attributes {dimension_semantics = [#tpu.dimension_semantics<parallel>, #tpu.dimension_semantics<parallel>], iteration_bounds = array<i64: 1, 1>, scalar_prefetch = 0 : i64, scratch_operands = 0 : i64, tpu.core_type = #tpu.core_type<tc>, window_params = [{transform_indices = @transform_0, window_bounds = array<i64: 128, 576>}, {transform_indices = @transform_1, window_bounds = array<i64: 576, 64>}, {transform_indices = @transform_2, window_bounds = array<i64: 1, 64>}, {transform_indices = @transform_3, window_bounds = array<i64: 128, 64>}]} {
    %c0 = arith.constant 0 : index
    %c0_0 = arith.constant 0 : index
    %0 = vector.load %arg2[%c0, %c0_0] : memref<128x576xbf16, #tpu.memory_space<vmem>>, vector<128x576xbf16>
    %c0_1 = arith.constant 0 : index
    %c0_2 = arith.constant 0 : index
    %1 = vector.load %arg3[%c0_1, %c0_2] : memref<576x64xbf16, #tpu.memory_space<vmem>>, vector<576x64xbf16>
    %cst = arith.constant dense<0.000000e+00> : vector<128x64xf32>
    %2 = tpu.matmul %0, %1, %cst {dimension_numbers = #tpu.dot_dimension_numbers<[1], [0], [0], [1], [0, 0, 1, 1], [], []>} : vector<128x576xbf16>, vector<576x64xbf16>, vector<128x64xf32> -> vector<128x64xf32>
    %c0_3 = arith.constant 0 : index
    %c0_4 = arith.constant 0 : index
    %3 = vector.load %arg4[%c0_3, %c0_4] : memref<1x64xf32, #tpu.memory_space<vmem>>, vector<1x64xf32>
    %4 = vector.broadcast %3 : vector<1x64xf32> to vector<128x64xf32>
    %5 = arith.addf %2, %4 : vector<128x64xf32>
    %cst_5 = arith.constant 0.000000e+00 : f32
    %6 = vector.broadcast %cst_5 : f32 to vector<128x64xf32>
    %7 = arith.maximumf %5, %6 : vector<128x64xf32>
    %8 = arith.truncf %7 : vector<128x64xf32> to vector<128x64xbf16>
    %c0_6 = arith.constant 0 : index
    %c0_7 = arith.constant 0 : index
    %9 = vector.load %arg5[%c0_6, %c0_7] : memref<128x64xbf16, #tpu.memory_space<vmem>>, vector<128x64xbf16>
    tpu.vector_store %arg5[%c0_6, %c0_7], %8 {strides = array<i32>} : memref<128x64xbf16, #tpu.memory_space<vmem>>, vector<128x64xbf16>,
    return
  }
  func.func @transform_0(%arg0: i32, %arg1: i32) -> (i32, i32) {
    %c0_i32 = arith.constant 0 : i32
    %c0_i32_0 = arith.constant 0 : i32
    return %arg0, %c0_i32 : i32, i32
  }
  func.func @transform_1(%arg0: i32, %arg1: i32) -> (i32, i32) {
    %c0_i32 = arith.constant 0 : i32
    %c0_i32_0 = arith.constant 0 : i32
    return %c0_i32, %arg1 : i32, i32
  }
  func.func @transform_2(%arg0: i32, %arg1: i32) -> (i32, i32) {
    %c0_i32 = arith.constant 0 : i32
    %c0_i32_0 = arith.constant 0 : i32
    return %c0_i32, %arg1 : i32, i32
  }
  func.func @transform_3(%arg0: i32, %arg1: i32) -> (i32, i32) {
    %c0_i32 = arith.constant 0 : i32
    return %arg0, %arg1 : i32, i32
  }
}

module attributes {stable_mosaic.version = 11 : i64} {
  func.func @_conv_matmul_kernel(%arg0: i32, %arg1: i32, %arg2: memref<128x576xbf16, #tpu.memory_space<vmem>>, %arg3: memref<576x64xbf16, #tpu.memory_space<vmem>>, %arg4: memref<1x64xf32, #tpu.memory_space<vmem>>, %arg5: memref<128x64xbf16, #tpu.memory_space<vmem>>, %arg6: memref<128x64xbf16, #tpu.memory_space<vmem>>) attributes {dimension_semantics = [#tpu.dimension_semantics<parallel>, #tpu.dimension_semantics<parallel>], iteration_bounds = array<i64: 1, 1>, scalar_prefetch = 0 : i64, scratch_operands = 0 : i64, tpu.core_type = #tpu.core_type<tc>, window_params = [{transform_indices = @transform_0, window_bounds = array<i64: 128, 576>}, {transform_indices = @transform_1, window_bounds = array<i64: 576, 64>}, {transform_indices = @transform_2, window_bounds = array<i64: 1, 64>}, {transform_indices = @transform_3, window_bounds = array<i64: 128, 64>}, {transform_indices = @transform_4, window_bounds = array<i64: 128, 64>}]} {
    %c0 = arith.constant 0 : index
    %c0_0 = arith.constant 0 : index
    %0 = vector.load %arg2[%c0, %c0_0] : memref<128x576xbf16, #tpu.memory_space<vmem>>, vector<128x576xbf16>
    %c0_1 = arith.constant 0 : index
    %c0_2 = arith.constant 0 : index
    %1 = vector.load %arg3[%c0_1, %c0_2] : memref<576x64xbf16, #tpu.memory_space<vmem>>, vector<576x64xbf16>
    %cst = arith.constant dense<0.000000e+00> : vector<128x64xf32>
    %2 = tpu.matmul %0, %1, %cst {dimension_numbers = #tpu.dot_dimension_numbers<[1], [0], [0], [1], [0, 0, 1, 1], [], []>} : vector<128x576xbf16>, vector<576x64xbf16>, vector<128x64xf32> -> vector<128x64xf32>
    %c0_3 = arith.constant 0 : index
    %c0_4 = arith.constant 0 : index
    %3 = vector.load %arg4[%c0_3, %c0_4] : memref<1x64xf32, #tpu.memory_space<vmem>>, vector<1x64xf32>
    %4 = vector.broadcast %3 : vector<1x64xf32> to vector<128x64xf32>
    %5 = arith.addf %2, %4 : vector<128x64xf32>
    %c0_5 = arith.constant 0 : index
    %c0_6 = arith.constant 0 : index
    %6 = vector.load %arg5[%c0_5, %c0_6] : memref<128x64xbf16, #tpu.memory_space<vmem>>, vector<128x64xbf16>
    %7 = arith.extf %6 : vector<128x64xbf16> to vector<128x64xf32>
    %8 = arith.addf %5, %7 : vector<128x64xf32>
    %cst_7 = arith.constant 0.000000e+00 : f32
    %9 = vector.broadcast %cst_7 : f32 to vector<128x64xf32>
    %10 = arith.maximumf %8, %9 : vector<128x64xf32>
    %11 = arith.truncf %10 : vector<128x64xf32> to vector<128x64xbf16>
    %c0_8 = arith.constant 0 : index
    %c0_9 = arith.constant 0 : index
    %12 = vector.load %arg6[%c0_8, %c0_9] : memref<128x64xbf16, #tpu.memory_space<vmem>>, vector<128x64xbf16>
    tpu.vector_store %arg6[%c0_8, %c0_9], %11 {strides = array<i32>} : memref<128x64xbf16, #tpu.memory_space<vmem>>, vector<128x64xbf16>,
    return
  }
  func.func @transform_0(%arg0: i32, %arg1: i32) -> (i32, i32) {
    %c0_i32 = arith.constant 0 : i32
    %c0_i32_0 = arith.constant 0 : i32
    return %arg0, %c0_i32 : i32, i32
  }
  func.func @transform_1(%arg0: i32, %arg1: i32) -> (i32, i32) {
    %c0_i32 = arith.constant 0 : i32
    %c0_i32_0 = arith.constant 0 : i32
    return %c0_i32, %arg1 : i32, i32
  }
  func.func @transform_2(%arg0: i32, %arg1: i32) -> (i32, i32) {
    %c0_i32 = arith.constant 0 : i32
    %c0_i32_0 = arith.constant 0 : i32
    return %c0_i32, %arg1 : i32, i32
  }
  func.func @transform_3(%arg0: i32, %arg1: i32) -> (i32, i32) {
    %c0_i32 = arith.constant 0 : i32
    return %arg0, %arg1 : i32, i32
  }
  func.func @transform_4(%arg0: i32, %arg1: i32) -> (i32, i32) {
    %c0_i32 = arith.constant 0 : i32
    return %arg0, %arg1 : i32, i32
  }
}

module attributes {stable_mosaic.version = 11 : i64} {
  func.func @_conv_matmul_kernel(%arg0: i32, %arg1: i32, %arg2: memref<32x576xbf16, #tpu.memory_space<vmem>>, %arg3: memref<576x128xbf16, #tpu.memory_space<vmem>>, %arg4: memref<1x128xf32, #tpu.memory_space<vmem>>, %arg5: memref<32x128xbf16, #tpu.memory_space<vmem>>) attributes {dimension_semantics = [#tpu.dimension_semantics<parallel>, #tpu.dimension_semantics<parallel>], iteration_bounds = array<i64: 1, 1>, scalar_prefetch = 0 : i64, scratch_operands = 0 : i64, tpu.core_type = #tpu.core_type<tc>, window_params = [{transform_indices = @transform_0, window_bounds = array<i64: 32, 576>}, {transform_indices = @transform_1, window_bounds = array<i64: 576, 128>}, {transform_indices = @transform_2, window_bounds = array<i64: 1, 128>}, {transform_indices = @transform_3, window_bounds = array<i64: 32, 128>}]} {
    %c0 = arith.constant 0 : index
    %c0_0 = arith.constant 0 : index
    %0 = vector.load %arg2[%c0, %c0_0] : memref<32x576xbf16, #tpu.memory_space<vmem>>, vector<32x576xbf16>
    %c0_1 = arith.constant 0 : index
    %c0_2 = arith.constant 0 : index
    %1 = vector.load %arg3[%c0_1, %c0_2] : memref<576x128xbf16, #tpu.memory_space<vmem>>, vector<576x128xbf16>
    %cst = arith.constant dense<0.000000e+00> : vector<32x128xf32>
    %2 = tpu.matmul %0, %1, %cst {dimension_numbers = #tpu.dot_dimension_numbers<[1], [0], [0], [1], [0, 0, 1, 1], [], []>} : vector<32x576xbf16>, vector<576x128xbf16>, vector<32x128xf32> -> vector<32x128xf32>
    %c0_3 = arith.constant 0 : index
    %c0_4 = arith.constant 0 : index
    %3 = vector.load %arg4[%c0_3, %c0_4] : memref<1x128xf32, #tpu.memory_space<vmem>>, vector<1x128xf32>
    %4 = vector.broadcast %3 : vector<1x128xf32> to vector<32x128xf32>
    %5 = arith.addf %2, %4 : vector<32x128xf32>
    %cst_5 = arith.constant 0.000000e+00 : f32
    %6 = vector.broadcast %cst_5 : f32 to vector<32x128xf32>
    %7 = arith.maximumf %5, %6 : vector<32x128xf32>
    %8 = arith.truncf %7 : vector<32x128xf32> to vector<32x128xbf16>
    %c0_6 = arith.constant 0 : index
    %c0_7 = arith.constant 0 : index
    %9 = vector.load %arg5[%c0_6, %c0_7] : memref<32x128xbf16, #tpu.memory_space<vmem>>, vector<32x128xbf16>
    tpu.vector_store %arg5[%c0_6, %c0_7], %8 {strides = array<i32>} : memref<32x128xbf16, #tpu.memory_space<vmem>>, vector<32x128xbf16>,
    return
  }
  func.func @transform_0(%arg0: i32, %arg1: i32) -> (i32, i32) {
    %c0_i32 = arith.constant 0 : i32
    %c0_i32_0 = arith.constant 0 : i32
    return %arg0, %c0_i32 : i32, i32
  }
  func.func @transform_1(%arg0: i32, %arg1: i32) -> (i32, i32) {
    %c0_i32 = arith.constant 0 : i32
    %c0_i32_0 = arith.constant 0 : i32
    return %c0_i32, %arg1 : i32, i32
  }
  func.func @transform_2(%arg0: i32, %arg1: i32) -> (i32, i32) {
    %c0_i32 = arith.constant 0 : i32
    %c0_i32_0 = arith.constant 0 : i32
    return %c0_i32, %arg1 : i32, i32
  }
  func.func @transform_3(%arg0: i32, %arg1: i32) -> (i32, i32) {
    %c0_i32 = arith.constant 0 : i32
    return %arg0, %arg1 : i32, i32
  }
}

module attributes {stable_mosaic.version = 11 : i64} {
  func.func @_conv_matmul_kernel(%arg0: i32, %arg1: i32, %arg2: memref<32x1152xbf16, #tpu.memory_space<vmem>>, %arg3: memref<1152x128xbf16, #tpu.memory_space<vmem>>, %arg4: memref<1x128xf32, #tpu.memory_space<vmem>>, %arg5: memref<32x128xbf16, #tpu.memory_space<vmem>>, %arg6: memref<32x128xbf16, #tpu.memory_space<vmem>>) attributes {dimension_semantics = [#tpu.dimension_semantics<parallel>, #tpu.dimension_semantics<parallel>], iteration_bounds = array<i64: 1, 1>, scalar_prefetch = 0 : i64, scratch_operands = 0 : i64, tpu.core_type = #tpu.core_type<tc>, window_params = [{transform_indices = @transform_0, window_bounds = array<i64: 32, 1152>}, {transform_indices = @transform_1, window_bounds = array<i64: 1152, 128>}, {transform_indices = @transform_2, window_bounds = array<i64: 1, 128>}, {transform_indices = @transform_3, window_bounds = array<i64: 32, 128>}, {transform_indices = @transform_4, window_bounds = array<i64: 32, 128>}]} {
    %c0 = arith.constant 0 : index
    %c0_0 = arith.constant 0 : index
    %0 = vector.load %arg2[%c0, %c0_0] : memref<32x1152xbf16, #tpu.memory_space<vmem>>, vector<32x1152xbf16>
    %c0_1 = arith.constant 0 : index
    %c0_2 = arith.constant 0 : index
    %1 = vector.load %arg3[%c0_1, %c0_2] : memref<1152x128xbf16, #tpu.memory_space<vmem>>, vector<1152x128xbf16>
    %cst = arith.constant dense<0.000000e+00> : vector<32x128xf32>
    %2 = tpu.matmul %0, %1, %cst {dimension_numbers = #tpu.dot_dimension_numbers<[1], [0], [0], [1], [0, 0, 1, 1], [], []>} : vector<32x1152xbf16>, vector<1152x128xbf16>, vector<32x128xf32> -> vector<32x128xf32>
    %c0_3 = arith.constant 0 : index
    %c0_4 = arith.constant 0 : index
    %3 = vector.load %arg4[%c0_3, %c0_4] : memref<1x128xf32, #tpu.memory_space<vmem>>, vector<1x128xf32>
    %4 = vector.broadcast %3 : vector<1x128xf32> to vector<32x128xf32>
    %5 = arith.addf %2, %4 : vector<32x128xf32>
    %c0_5 = arith.constant 0 : index
    %c0_6 = arith.constant 0 : index
    %6 = vector.load %arg5[%c0_5, %c0_6] : memref<32x128xbf16, #tpu.memory_space<vmem>>, vector<32x128xbf16>
    %7 = arith.extf %6 : vector<32x128xbf16> to vector<32x128xf32>
    %8 = arith.addf %5, %7 : vector<32x128xf32>
    %cst_7 = arith.constant 0.000000e+00 : f32
    %9 = vector.broadcast %cst_7 : f32 to vector<32x128xf32>
    %10 = arith.maximumf %8, %9 : vector<32x128xf32>
    %11 = arith.truncf %10 : vector<32x128xf32> to vector<32x128xbf16>
    %c0_8 = arith.constant 0 : index
    %c0_9 = arith.constant 0 : index
    %12 = vector.load %arg6[%c0_8, %c0_9] : memref<32x128xbf16, #tpu.memory_space<vmem>>, vector<32x128xbf16>
    tpu.vector_store %arg6[%c0_8, %c0_9], %11 {strides = array<i32>} : memref<32x128xbf16, #tpu.memory_space<vmem>>, vector<32x128xbf16>,
    return
  }
  func.func @transform_0(%arg0: i32, %arg1: i32) -> (i32, i32) {
    %c0_i32 = arith.constant 0 : i32
    %c0_i32_0 = arith.constant 0 : i32
    return %arg0, %c0_i32 : i32, i32
  }
  func.func @transform_1(%arg0: i32, %arg1: i32) -> (i32, i32) {
    %c0_i32 = arith.constant 0 : i32
    %c0_i32_0 = arith.constant 0 : i32
    return %c0_i32, %arg1 : i32, i32
  }
  func.func @transform_2(%arg0: i32, %arg1: i32) -> (i32, i32) {
    %c0_i32 = arith.constant 0 : i32
    %c0_i32_0 = arith.constant 0 : i32
    return %c0_i32, %arg1 : i32, i32
  }
  func.func @transform_3(%arg0: i32, %arg1: i32) -> (i32, i32) {
    %c0_i32 = arith.constant 0 : i32
    return %arg0, %arg1 : i32, i32
  }
  func.func @transform_4(%arg0: i32, %arg1: i32) -> (i32, i32) {
    %c0_i32 = arith.constant 0 : i32
    return %arg0, %arg1 : i32, i32
  }
}

module attributes {stable_mosaic.version = 11 : i64} {
  func.func @_conv_matmul_kernel(%arg0: i32, %arg1: i32, %arg2: memref<32x64xbf16, #tpu.memory_space<vmem>>, %arg3: memref<64x128xbf16, #tpu.memory_space<vmem>>, %arg4: memref<1x128xf32, #tpu.memory_space<vmem>>, %arg5: memref<32x128xbf16, #tpu.memory_space<vmem>>) attributes {dimension_semantics = [#tpu.dimension_semantics<parallel>, #tpu.dimension_semantics<parallel>], iteration_bounds = array<i64: 1, 1>, scalar_prefetch = 0 : i64, scratch_operands = 0 : i64, tpu.core_type = #tpu.core_type<tc>, window_params = [{transform_indices = @transform_0, window_bounds = array<i64: 32, 64>}, {transform_indices = @transform_1, window_bounds = array<i64: 64, 128>}, {transform_indices = @transform_2, window_bounds = array<i64: 1, 128>}, {transform_indices = @transform_3, window_bounds = array<i64: 32, 128>}]} {
    %c0 = arith.constant 0 : index
    %c0_0 = arith.constant 0 : index
    %0 = vector.load %arg2[%c0, %c0_0] : memref<32x64xbf16, #tpu.memory_space<vmem>>, vector<32x64xbf16>
    %c0_1 = arith.constant 0 : index
    %c0_2 = arith.constant 0 : index
    %1 = vector.load %arg3[%c0_1, %c0_2] : memref<64x128xbf16, #tpu.memory_space<vmem>>, vector<64x128xbf16>
    %cst = arith.constant dense<0.000000e+00> : vector<32x128xf32>
    %2 = tpu.matmul %0, %1, %cst {dimension_numbers = #tpu.dot_dimension_numbers<[1], [0], [0], [1], [0, 0, 1, 1], [], []>} : vector<32x64xbf16>, vector<64x128xbf16>, vector<32x128xf32> -> vector<32x128xf32>
    %c0_3 = arith.constant 0 : index
    %c0_4 = arith.constant 0 : index
    %3 = vector.load %arg4[%c0_3, %c0_4] : memref<1x128xf32, #tpu.memory_space<vmem>>, vector<1x128xf32>
    %4 = vector.broadcast %3 : vector<1x128xf32> to vector<32x128xf32>
    %5 = arith.addf %2, %4 : vector<32x128xf32>
    %6 = arith.truncf %5 : vector<32x128xf32> to vector<32x128xbf16>
    %c0_5 = arith.constant 0 : index
    %c0_6 = arith.constant 0 : index
    %7 = vector.load %arg5[%c0_5, %c0_6] : memref<32x128xbf16, #tpu.memory_space<vmem>>, vector<32x128xbf16>
    tpu.vector_store %arg5[%c0_5, %c0_6], %6 {strides = array<i32>} : memref<32x128xbf16, #tpu.memory_space<vmem>>, vector<32x128xbf16>,
    return
  }
  func.func @transform_0(%arg0: i32, %arg1: i32) -> (i32, i32) {
    %c0_i32 = arith.constant 0 : i32
    %c0_i32_0 = arith.constant 0 : i32
    return %arg0, %c0_i32 : i32, i32
  }
  func.func @transform_1(%arg0: i32, %arg1: i32) -> (i32, i32) {
    %c0_i32 = arith.constant 0 : i32
    %c0_i32_0 = arith.constant 0 : i32
    return %c0_i32, %arg1 : i32, i32
  }
  func.func @transform_2(%arg0: i32, %arg1: i32) -> (i32, i32) {
    %c0_i32 = arith.constant 0 : i32
    %c0_i32_0 = arith.constant 0 : i32
    return %c0_i32, %arg1 : i32, i32
  }
  func.func @transform_3(%arg0: i32, %arg1: i32) -> (i32, i32) {
    %c0_i32 = arith.constant 0 : i32
    return %arg0, %arg1 : i32, i32
  }
}

module attributes {stable_mosaic.version = 11 : i64} {
  func.func @_conv_matmul_kernel(%arg0: i32, %arg1: i32, %arg2: memref<32x1152xbf16, #tpu.memory_space<vmem>>, %arg3: memref<1152x128xbf16, #tpu.memory_space<vmem>>, %arg4: memref<1x128xf32, #tpu.memory_space<vmem>>, %arg5: memref<32x128xbf16, #tpu.memory_space<vmem>>) attributes {dimension_semantics = [#tpu.dimension_semantics<parallel>, #tpu.dimension_semantics<parallel>], iteration_bounds = array<i64: 1, 1>, scalar_prefetch = 0 : i64, scratch_operands = 0 : i64, tpu.core_type = #tpu.core_type<tc>, window_params = [{transform_indices = @transform_0, window_bounds = array<i64: 32, 1152>}, {transform_indices = @transform_1, window_bounds = array<i64: 1152, 128>}, {transform_indices = @transform_2, window_bounds = array<i64: 1, 128>}, {transform_indices = @transform_3, window_bounds = array<i64: 32, 128>}]} {
    %c0 = arith.constant 0 : index
    %c0_0 = arith.constant 0 : index
    %0 = vector.load %arg2[%c0, %c0_0] : memref<32x1152xbf16, #tpu.memory_space<vmem>>, vector<32x1152xbf16>
    %c0_1 = arith.constant 0 : index
    %c0_2 = arith.constant 0 : index
    %1 = vector.load %arg3[%c0_1, %c0_2] : memref<1152x128xbf16, #tpu.memory_space<vmem>>, vector<1152x128xbf16>
    %cst = arith.constant dense<0.000000e+00> : vector<32x128xf32>
    %2 = tpu.matmul %0, %1, %cst {dimension_numbers = #tpu.dot_dimension_numbers<[1], [0], [0], [1], [0, 0, 1, 1], [], []>} : vector<32x1152xbf16>, vector<1152x128xbf16>, vector<32x128xf32> -> vector<32x128xf32>
    %c0_3 = arith.constant 0 : index
    %c0_4 = arith.constant 0 : index
    %3 = vector.load %arg4[%c0_3, %c0_4] : memref<1x128xf32, #tpu.memory_space<vmem>>, vector<1x128xf32>
    %4 = vector.broadcast %3 : vector<1x128xf32> to vector<32x128xf32>
    %5 = arith.addf %2, %4 : vector<32x128xf32>
    %cst_5 = arith.constant 0.000000e+00 : f32
    %6 = vector.broadcast %cst_5 : f32 to vector<32x128xf32>
    %7 = arith.maximumf %5, %6 : vector<32x128xf32>
    %8 = arith.truncf %7 : vector<32x128xf32> to vector<32x128xbf16>
    %c0_6 = arith.constant 0 : index
    %c0_7 = arith.constant 0 : index
    %9 = vector.load %arg5[%c0_6, %c0_7] : memref<32x128xbf16, #tpu.memory_space<vmem>>, vector<32x128xbf16>
    tpu.vector_store %arg5[%c0_6, %c0_7], %8 {strides = array<i32>} : memref<32x128xbf16, #tpu.memory_space<vmem>>, vector<32x128xbf16>,
    return
  }
  func.func @transform_0(%arg0: i32, %arg1: i32) -> (i32, i32) {
    %c0_i32 = arith.constant 0 : i32
    %c0_i32_0 = arith.constant 0 : i32
    return %arg0, %c0_i32 : i32, i32
  }
  func.func @transform_1(%arg0: i32, %arg1: i32) -> (i32, i32) {
    %c0_i32 = arith.constant 0 : i32
    %c0_i32_0 = arith.constant 0 : i32
    return %c0_i32, %arg1 : i32, i32
  }
  func.func @transform_2(%arg0: i32, %arg1: i32) -> (i32, i32) {
    %c0_i32 = arith.constant 0 : i32
    %c0_i32_0 = arith.constant 0 : i32
    return %c0_i32, %arg1 : i32, i32
  }
  func.func @transform_3(%arg0: i32, %arg1: i32) -> (i32, i32) {
    %c0_i32 = arith.constant 0 : i32
    return %arg0, %arg1 : i32, i32
  }
}

</mosaic_0001>

<llo_original>
// kernel: ash_resnet18_forward.10
$region0: #{ash_resnet18_forward.10}
  #allocation0 [shape = 'u32[]', space=smem, size = 0x4, offset = 0x4, fixed_abs, tag = 'smem constant byte address 0x4 - core index']
  #allocation1 [shape = 'u32[72,128]{1,0:T(1,128)}', space=vmem, size = 0x9000, scoped, tag = 'internal scratch']
  %s0 = inlined_call_operand.vmem [shape: bf16[512,147], index: 0, kind: input, shape index: {}]
  %s1 = inlined_call_operand.vmem [shape: bf16[147,64], index: 1, kind: input, shape index: {}]
  %s2 = inlined_call_operand.vmem [shape: f32[1,64], index: 2, kind: input, shape index: {}]
  %s3 = inlined_call_operand.vmem [shape: bf16[512,64], index: 3, kind: output, shape index: {}]
  %s4 = sld [smem:[#allocation0]]
  $region45: #{ash_resnet18_forward.10} parent=0
    _
  %s6 = ssub.s32 1, %s4
  %s7 = scalar_select 0, %s6, %s4
  loop: start=0, step=1, limit=4
  $region2: #{ash_resnet18_forward.10} parent=0 // loop_pre_header
    _
  $region3: #{ash_resnet18_forward.10} parent=0 // loop_header
    %s9 = sphi 0, %s13
    %p10 = scmp.ge.s32.totalorder %s9, 4
    %s16 = sphi 0, %s28
    %s17 = sphi 0, %s24
    %s18 = sphi 0, %s16
    %s19 = sphi 0, %s17
    %s20 = sphi 0, %s18
    %s21 = sphi 0, %s19
    %s31 = sphi 0, %s33
    %s34 = sphi 0, %s31
    %s35 = sphi 0, %s34
    %s51 = sphi 0, %s35
    %s57 = sphi 0, %s59
    %s60 = sphi 0, %s57
    %s61 = sphi 0, %s60
    %s77 = sphi 0, %s61
    %s83 = sphi 0, %s85
    %s86 = sphi 0, %s83
    %s87 = sphi 0, %s86
    %s103 = sphi 0, %s87
    %s111 = sphi 0, %s113
    %s114 = sphi 0, %s111
    %s115 = sphi 0, %s114
    %s131 = sphi 0, %s115
  $region4: #{ash_resnet18_forward.10} parent=0 // loop_header_branch
    %12 = sbr.rel (%p10) target = $region8
  $region5: #{ash_resnet18_forward.10} parent=0 // loop_body
    %s14 = ssub.s32 %s9, 1
    %s15 = ssub.s32 %s9, 2
    %s22 = sadd.s32 1, %s17
    %p23 = scmp.ge.s32.totalorder %s22, 1
    %s24 = scalar_select %p23, 0, %s22
    %s25 = sadd.s32 1, %s16
    %s26 = scalar_select %p23, %s25, %s16
    %p27 = scmp.ge.s32.totalorder %s26, 2
    %s28 = scalar_select %p27, 0, %s26
    %s29 = ssub.s32 %s16, %s28
    %p30 = scmp.eq.s32.totalorder %s29, 0
    %s32 = sadd.s32 %s31, 1
    %s33 = scalar_select %p30, %s31, %s32
    %p36 = pneg %p30
    %p37 = scmp.eq.s32.totalorder %s9, 1
    %p38 = por %p36, %p37
    %p39 = scmp.ne.s32.totalorder %s31, %s34
    %p40 = scmp.eq.s32.totalorder %s9, 0
    %p41 = por %p39, %p40
    %p42 = scmp.ne.s32.totalorder %s31, %s34
    %p43 = scmp.eq.s32.totalorder %s14, 1
    %p44 = por %p42, %p43
    %p45 = scmp.ne.s32.totalorder %s34, %s35
    %p46 = scmp.eq.s32.totalorder %s14, 0
    %p47 = por %p45, %p46
    %p48 = scmp.ne.s32.totalorder %s34, %s35
    %p49 = scmp.eq.s32.totalorder %s15, 1
    %p50 = por %p48, %p49
    %p52 = scmp.ne.s32.totalorder %s35, %s51
    %p53 = scmp.eq.s32.totalorder %s15, 0
    %p54 = por %p52, %p53
    %s55 = ssub.s32 %s17, %s24
    %p56 = scmp.eq.s32.totalorder %s55, 0
    %s58 = sadd.s32 %s57, 1
    %s59 = scalar_select %p56, %s57, %s58
    %p62 = pneg %p56
    %p63 = scmp.eq.s32.totalorder %s9, 1
    %p64 = por %p62, %p63
    %p65 = scmp.ne.s32.totalorder %s57, %s60
    %p66 = scmp.eq.s32.totalorder %s9, 0
    %p67 = por %p65, %p66
    %p68 = scmp.ne.s32.totalorder %s57, %s60
    %p69 = scmp.eq.s32.totalorder %s14, 1
    %p70 = por %p68, %p69
    %p71 = scmp.ne.s32.totalorder %s60, %s61
    %p72 = scmp.eq.s32.totalorder %s14, 0
    %p73 = por %p71, %p72
    %p74 = scmp.ne.s32.totalorder %s60, %s61
    %p75 = scmp.eq.s32.totalorder %s15, 1
    %p76 = por %p74, %p75
    %p78 = scmp.ne.s32.totalorder %s61, %s77
    %p79 = scmp.eq.s32.totalorder %s15, 0
    %p80 = por %p78, %p79
    %s81 = ssub.s32 %s17, %s24
    %p82 = scmp.eq.s32.totalorder %s81, 0
    %s84 = sadd.s32 %s83, 1
    %s85 = scalar_select %p82, %s83, %s84
    %p88 = pneg %p82
    %p89 = scmp.eq.s32.totalorder %s9, 1
    %p90 = por %p88, %p89
    %p91 = scmp.ne.s32.totalorder %s83, %s86
    %p92 = scmp.eq.s32.totalorder %s9, 0
    %p93 = por %p91, %p92
    %p94 = scmp.ne.s32.totalorder %s83, %s86
    %p95 = scmp.eq.s32.totalorder %s14, 1
    %p96 = por %p94, %p95
    %p97 = scmp.ne.s32.totalorder %s86, %s87
    %p98 = scmp.eq.s32.totalorder %s14, 0
    %p99 = por %p97, %p98
    %p100 = scmp.ne.s32.totalorder %s86, %s87
    %p101 = scmp.eq.s32.totalorder %s15, 1
    %p102 = por %p100, %p101
    %p104 = scmp.ne.s32.totalorder %s87, %s103
    %p105 = scmp.eq.s32.totalorder %s15, 0
    %p106 = por %p104, %p105
    %s107 = ssub.s32 %s16, %s28
    %s108 = ssub.s32 %s17, %s24
    %s109 = sor.u32 %s107, %s108
    %p110 = scmp.eq.s32.totalorder %s109, 0
    %s112 = sadd.s32 %s111, 1
    %s113 = scalar_select %p110, %s111, %s112
    %p116 = pneg %p110
    %p117 = scmp.eq.s32.totalorder %s9, 1
    %p118 = por %p116, %p117
    %p119 = scmp.ne.s32.totalorder %s111, %s114
    %p120 = scmp.eq.s32.totalorder %s9, 0
    %p121 = por %p119, %p120
    %p122 = scmp.ne.s32.totalorder %s111, %s114
    %p123 = scmp.eq.s32.totalorder %s14, 1
    %p124 = por %p122, %p123
    %p125 = scmp.ne.s32.totalorder %s114, %s115
    %p126 = scmp.eq.s32.totalorder %s14, 0
    %p127 = por %p125, %p126
    %p128 = scmp.ne.s32.totalorder %s114, %s115
    %p129 = scmp.eq.s32.totalorder %s15, 1
    %p130 = por %p128, %p129
    %p132 = scmp.ne.s32.totalorder %s115, %s131
    %p133 = scmp.eq.s32.totalorder %s15, 0
    %p134 = por %p132, %p133
    %p135 = scmp.le.s32.totalorder 1, %s9
    %p136 = scmp.lt.s32.totalorder %s9, 3
    %p137 = pnand %p135, %p136
    %p138 = pneg %p137
    // Predicated region
    $region9: #{ash_resnet18_forward.10} parent=5 // pred_check
      _
    $region10: #{ash_resnet18_forward.10} parent=5 // pred_check_branch
      %140 = sbr.rel (%p137) target = $region12
    $region11: #{ash_resnet18_forward.10} parent=5 // pred_region
      %s141 = ssub.s32 %s9, 1
      // Predicated region
      $region13: #{ash_resnet18_forward.10} parent=11 // pred_check
        %p142 = pneg %p73
      $region14: #{ash_resnet18_forward.10} parent=11 // pred_check_branch
        %144 = sbr.rel (%p142) target = $region16
      $region15: #{ash_resnet18_forward.10} parent=11 // pred_region
        %p145 = scmp.lt.s32.totalorder %s19, 0
        %s146 = scalar_select %p145, %s19, 0
        %s147 = smul.addr %s146, 4
        %s148 = scalar_lea.vmem %s1, %s147
      $region16: #{ash_resnet18_forward.10} parent=11 // pred_fallthru
        _
      // Predicated region
      $region17: #{ash_resnet18_forward.10} parent=11 // pred_check
        %p149 = pneg %p99
      $region18: #{ash_resnet18_forward.10} parent=11 // pred_check_branch
        %151 = sbr.rel (%p149) target = $region20
      $region19: #{ash_resnet18_forward.10} parent=11 // pred_region
        %p152 = scmp.lt.s32.totalorder %s19, 0
        %s153 = scalar_select %p152, %s19, 0
        %s154 = scalar_lea.vmem %s2, %s153
      $region20: #{ash_resnet18_forward.10} parent=11 // pred_fallthru
        _
    $region12: #{ash_resnet18_forward.10} parent=5 // pred_fallthru
      _
    %p155 = scmp.lt.s32.totalorder %s9, 2
    // Predicated region
    $region21: #{ash_resnet18_forward.10} parent=5 // pred_check
      %p156 = pneg %p155
    $region22: #{ash_resnet18_forward.10} parent=5 // pred_check_branch
      %158 = sbr.rel (%p156) target = $region24
    $region23: #{ash_resnet18_forward.10} parent=5 // pred_region
      // Predicated region
      $region25: #{ash_resnet18_forward.10} parent=23 // pred_check
        %p159 = pneg %p41
      $region26: #{ash_resnet18_forward.10} parent=23 // pred_check_branch
        %161 = sbr.rel (%p159) target = $region28
      $region27: #{ash_resnet18_forward.10} parent=23 // pred_region
        %s162 = smul.u32 32, %s16
        %p163 = scmp.lt.s32.totalorder %s162, 63
        %s164 = scalar_select %p163, %s162, 63
        %s165 = smul.addr %s164, 2
        %s166 = smul.addr %s165, 4
        %s167 = scalar_lea.vmem %s0, %s166
        %s168 = smul.u32 32, %s16
      $region28: #{ash_resnet18_forward.10} parent=23 // pred_fallthru
        _
    $region24: #{ash_resnet18_forward.10} parent=5 // pred_fallthru
      _
    %p169 = scmp.le.s32.totalorder 1, %s9
    %p170 = scmp.lt.s32.totalorder %s9, 3
    %p171 = pnand %p169, %p170
    %p172 = pneg %p171
    // Predicated region
    $region29: #{ash_resnet18_forward.10} parent=5 // pred_check
      _
    $region30: #{ash_resnet18_forward.10} parent=5 // pred_check_branch
      %174 = sbr.rel (%p171) target = $region32
    $region31: #{ash_resnet18_forward.10} parent=5 // pred_region
      %s175 = ssub.s32 %s9, 1
      %s176 = smul.u32 32, %s18
      %p177 = scmp.lt.s32.totalorder %s176, 63
      %s178 = scalar_select %p177, %s176, 63
      %s179 = smul.addr %s178, 2
      %s180 = smul.addr %s179, 4
      %s181 = scalar_lea.vmem %s0, %s180
      %p182 = pneg %p47
      %p183 = pneg %p44
      %p184 = scmp.lt.s32.totalorder %s19, 0
      %s185 = scalar_select %p184, %s19, 0
      %s186 = smul.addr %s185, 4
      %s187 = scalar_lea.vmem %s1, %s186
      %p188 = pneg %p73
      %p189 = pneg %p70
      %p190 = scmp.lt.s32.totalorder %s19, 0
      %s191 = scalar_select %p190, %s19, 0
      %s192 = scalar_lea.vmem %s2, %s191
      %p193 = pneg %p99
      %p194 = pneg %p96
      %p195 = pneg %p127
      %p196 = pneg %p124
      %s197 = smul.u32 32, %s18
      %p198 = scmp.lt.s32.totalorder %s197, 63
      %s199 = scalar_select %p198, %s197, 63
      %p200 = scmp.lt.s32.totalorder %s19, 0
      %s201 = scalar_select %p200, %s19, 0
      %s202 = sadd.s32 %s201, %s199
      %s203 = smul.addr %s202, 4
      %s204 = scalar_lea.vmem %s3, %s203
      %s205 = smul.u32 32, %s18
      %p206 = scmp.lt.s32.totalorder %s205, 63
      %s207 = scalar_select %p206, %s205, 63
      %s208 = smul.addr %s207, 2
      %s209 = smul.addr %s208, 4
      %s210 = scalar_lea.vmem %s0, %s209
      %s211 = smul.u32 32, %s18
      %p212 = scmp.lt.s32.totalorder %s19, 0
      %s213 = scalar_select %p212, %s19, 0
      %s214 = smul.addr %s213, 4
      %s215 = scalar_lea.vmem %s1, %s214
      %p216 = scmp.lt.s32.totalorder %s19, 0
      %s217 = scalar_select %p216, %s19, 0
      %s218 = scalar_lea.vmem %s2, %s217
      %s219 = smul.u32 32, %s18
      %p220 = scmp.lt.s32.totalorder %s219, 63
      %s221 = scalar_select %p220, %s219, 63
      %p222 = scmp.lt.s32.totalorder %s19, 0
      %s223 = scalar_select %p222, %s19, 0
      %s224 = sadd.s32 %s223, %s221
      %s225 = smul.addr %s224, 4
      %s226 = scalar_lea.vmem %s3, %s225
      %s227 = smul.u32 32, %s18
      %v229 = vld [vmem:[%s210] sm:$0xff]
      %v230 = vld [vmem:[%s210 + $0x8] sm:$0xff]
      %v231 = vld [vmem:[%s210 + $0x10] sm:$0xff]
      %v232 = vld [vmem:[%s210 + $0x18] sm:$0xff]
      %v233 = vld [vmem:[%s210 + $0x20] sm:$0xff]
      %v234 = vld [vmem:[%s210 + $0x28] sm:$0xff]
      %v235 = vld [vmem:[%s210 + $0x30] sm:$0xff]
      %v236 = vld [vmem:[%s210 + $0x38] sm:$0xff]
      %v237 = vld [vmem:[%s210 + $0x40] sm:$0xff]
      %v238 = vld [vmem:[%s210 + $0x48] sm:$0xff]
      %v239 = vld [vmem:[%s210 + $0x50] sm:$0xff]
      %v240 = vld [vmem:[%s210 + $0x58] sm:$0xff]
      %v241 = vld [vmem:[%s210 + $0x60] sm:$0xff]
      %v242 = vld [vmem:[%s210 + $0x68] sm:$0xff]
      %v243 = vld [vmem:[%s210 + $0x70] sm:$0xff]
      %v244 = vld [vmem:[%s210 + $0x78] sm:$0xff]
      %v245 = vld [vmem:[%s210 + $0x80] sm:$0xff]
      %v246 = vld [vmem:[%s210 + $0x88] sm:$0xff]
      %v247 = vld [vmem:[%s210 + $0x90] sm:$0xff]
      %v248 = vld [vmem:[%s210 + $0x98] sm:$0xff]
      %v249 = vld [vmem:[%s210 + $0xa0] sm:$0xff]
      %v250 = vld [vmem:[%s210 + $0xa8] sm:$0xff]
      %v251 = vld [vmem:[%s210 + $0xb0] sm:$0xff]
      %v252 = vld [vmem:[%s210 + $0xb8] sm:$0xff]
      %v253 = vld [vmem:[%s210 + $0xc0] sm:$0xff]
      %v254 = vld [vmem:[%s210 + $0xc8] sm:$0xff]
      %v255 = vld [vmem:[%s210 + $0xd0] sm:$0xff]
      %v256 = vld [vmem:[%s210 + $0xd8] sm:$0xff]
      %v257 = vld [vmem:[%s210 + $0xe0] sm:$0xff]
      %v258 = vld [vmem:[%s210 + $0xe8] sm:$0xff]
      %v259 = vld [vmem:[%s210 + $0xf0] sm:$0xff]
      %v260 = vld [vmem:[%s210 + $0xf8] sm:$0xff]
      %v261 = vld [vmem:[%s215] sm:$0xf]
      %v262 = vld [vmem:[%s215 + $0x4] sm:$0xf]
      %v263 = vld [vmem:[%s215 + $0x8] sm:$0xf]
      %v264 = vld [vmem:[%s215 + $0xc] sm:$0xf]
      %v265 = vld [vmem:[%s215 + $0x10] sm:$0xf]
      %v266 = vld [vmem:[%s215 + $0x14] sm:$0xf]
      %v267 = vld [vmem:[%s215 + $0x18] sm:$0xf]
      %v268 = vld [vmem:[%s215 + $0x1c] sm:$0xf]
      %v269 = vld [vmem:[%s215 + $0x20] sm:$0xf]
      %v270 = vld [vmem:[%s215 + $0x24] sm:$0xf]
      %v271 = vld [vmem:[%s215 + $0x28] sm:$0xf]
      %v272 = vld [vmem:[%s215 + $0x2c] sm:$0xf]
      %v273 = vld [vmem:[%s215 + $0x30] sm:$0xf]
      %v274 = vld [vmem:[%s215 + $0x34] sm:$0xf]
      %v275 = vld [vmem:[%s215 + $0x38] sm:$0xf]
      %v276 = vld [vmem:[%s215 + $0x3c] sm:$0xf]
      %v277 = vld [vmem:[%s215 + $0x40] sm:$0xf]
      %v278 = vld [vmem:[%s215 + $0x44] sm:$0xf]
      %v279 = vld [vmem:[%s215 + $0x48] sm:$0x3]
      %v280 = vld [vmem:[%s218] sm:$0x1]
      %v282 = vperm.slane %v280, 0
      %v316 = vunpack.c.l.b16 %v229
      %v317 = vunpack.c.h.b16 %v229
      %v318 = vunpack.c.l.b16 %v230
      %v319 = vunpack.c.h.b16 %v230
      %v320 = vunpack.c.l.b16 %v231
      %v321 = vunpack.c.h.b16 %v231
      %v322 = vunpack.c.l.b16 %v232
      %v323 = vunpack.c.h.b16 %v232
      %v324 = vunpack.c.l.b16 %v233
      %v325 = vunpack.c.h.b16 %v233
      %v326 = vunpack.c.l.b16 %v234
      %v327 = vunpack.c.h.b16 %v234
      %v328 = vunpack.c.l.b16 %v235
      %v329 = vunpack.c.h.b16 %v235
      %v330 = vunpack.c.l.b16 %v236
      %v331 = vunpack.c.h.b16 %v236
      %v332 = vunpack.c.l.b16 %v237
      %v333 = vunpack.c.h.b16 %v237
      %v334 = vunpack.c.l.b16 %v238
      %v335 = vunpack.c.h.b16 %v238
      %v336 = vunpack.c.l.b16 %v239
      %v337 = vunpack.c.h.b16 %v239
      %v338 = vunpack.c.l.b16 %v240
      %v339 = vunpack.c.h.b16 %v240
      %v340 = vunpack.c.l.b16 %v241
      %v341 = vunpack.c.h.b16 %v241
      %v342 = vunpack.c.l.b16 %v242
      %v343 = vunpack.c.h.b16 %v242
      %v344 = vunpack.c.l.b16 %v243
      %v345 = vunpack.c.h.b16 %v243
      %v346 = vunpack.c.l.b16 %v244
      %v347 = vunpack.c.h.b16 %v244
      %v348 = vunpack.c.l.b16 %v245
      %v349 = vunpack.c.h.b16 %v245
      %v350 = vunpack.c.l.b16 %v246
      %v351 = vunpack.c.h.b16 %v246
      %v352 = vunpack.c.l.b16 %v247
      %v353 = vunpack.c.h.b16 %v247
      %v354 = vunpack.c.l.b16 %v248
      %v355 = vunpack.c.h.b16 %v248
      %v356 = vunpack.c.l.b16 %v249
      %v357 = vunpack.c.h.b16 %v249
      %v358 = vunpack.c.l.b16 %v250
      %v359 = vunpack.c.h.b16 %v250
      %v360 = vunpack.c.l.b16 %v251
      %v361 = vunpack.c.h.b16 %v251
      %v362 = vunpack.c.l.b16 %v252
      %v363 = vunpack.c.h.b16 %v252
      %v364 = vunpack.c.l.b16 %v253
      %v365 = vunpack.c.h.b16 %v253
      %v366 = vunpack.c.l.b16 %v254
      %v367 = vunpack.c.h.b16 %v254
      %v368 = vunpack.c.l.b16 %v255
      %v369 = vunpack.c.h.b16 %v255
      %v370 = vunpack.c.l.b16 %v256
      %v371 = vunpack.c.h.b16 %v256
      %v372 = vunpack.c.l.b16 %v257
      %v373 = vunpack.c.h.b16 %v257
      %v374 = vunpack.c.l.b16 %v258
      %v375 = vunpack.c.h.b16 %v258
      %v376 = vunpack.c.l.b16 %v259
      %v377 = vunpack.c.h.b16 %v259
      %v378 = vunpack.c.l.b16 %v260
      %v379 = vunpack.c.h.b16 %v260
      %v380 = vpack.c.b16 %v318, %v316
      %v381 = vpack.c.b16 %v319, %v317
      %v382 = vpack.c.b16 %v322, %v320
      %v383 = vpack.c.b16 %v323, %v321
      %v384 = vpack.c.b16 %v326, %v324
      %v385 = vpack.c.b16 %v327, %v325
      %v386 = vpack.c.b16 %v330, %v328
      %v387 = vpack.c.b16 %v331, %v329
      %v388 = vpack.c.b16 %v334, %v332
      %v389 = vpack.c.b16 %v335, %v333
      %v390 = vpack.c.b16 %v338, %v336
      %v391 = vpack.c.b16 %v339, %v337
      %v392 = vpack.c.b16 %v342, %v340
      %v393 = vpack.c.b16 %v343, %v341
      %v394 = vpack.c.b16 %v346, %v344
      %v395 = vpack.c.b16 %v347, %v345
      %v396 = vpack.c.b16 %v350, %v348
      %v397 = vpack.c.b16 %v351, %v349
      %v398 = vpack.c.b16 %v354, %v352
      %v399 = vpack.c.b16 %v355, %v353
      %v400 = vpack.c.b16 %v358, %v356
      %v401 = vpack.c.b16 %v359, %v357
      %v402 = vpack.c.b16 %v362, %v360
      %v403 = vpack.c.b16 %v363, %v361
      %v404 = vpack.c.b16 %v366, %v364
      %v405 = vpack.c.b16 %v367, %v365
      %v406 = vpack.c.b16 %v370, %v368
      %v407 = vpack.c.b16 %v371, %v369
      %v408 = vpack.c.b16 %v374, %v372
      %v409 = vpack.c.b16 %v375, %v373
      %v410 = vpack.c.b16 %v378, %v376
      %v411 = vpack.c.b16 %v379, %v377
      %v447 = vunpack.c.l.b16 %v261
      %v448 = vunpack.c.l.b16 %v262
      %v449 = vunpack.c.l.b16 %v263
      %v450 = vunpack.c.l.b16 %v264
      %v451 = vunpack.c.l.b16 %v265
      %v452 = vunpack.c.l.b16 %v266
      %v453 = vunpack.c.l.b16 %v267
      %v454 = vunpack.c.l.b16 %v268
      %v455 = vunpack.c.l.b16 %v269
      %v456 = vunpack.c.l.b16 %v270
      %v457 = vunpack.c.l.b16 %v271
      %v458 = vunpack.c.l.b16 %v272
      %v459 = vunpack.c.l.b16 %v273
      %v460 = vunpack.c.l.b16 %v274
      %v461 = vunpack.c.l.b16 %v275
      %v462 = vunpack.c.l.b16 %v276
      %v463 = vunpack.c.l.b16 %v277
      %v464 = vunpack.c.l.b16 %v278
      %v465 = vunpack.c.l.b16 %v279
      %v466 = vpack.c.b16 %v448, %v447
      %v467 = vpack.c.b16 %v450, %v449
      %v468 = vpack.c.b16 %v452, %v451
      %v469 = vpack.c.b16 %v454, %v453
      %v470 = vpack.c.b16 %v456, %v455
      %v471 = vpack.c.b16 %v458, %v457
      %v472 = vpack.c.b16 %v460, %v459
      %v473 = vpack.c.b16 %v462, %v461
      %v474 = vpack.c.b16 %v464, %v463
      %v475 = vpack.c.b16 %v465, %v465
      %vm485 = vcmask 154624
      %v487 = vsel %vm485, %v381, 0
      %v490 = vsel %vm485, %v383, 0
      %v493 = vsel %vm485, %v385, 0
      %v496 = vsel %vm485, %v387, 0
      %v499 = vsel %vm485, %v389, 0
      %v502 = vsel %vm485, %v391, 0
      %v505 = vsel %vm485, %v393, 0
      %v508 = vsel %vm485, %v395, 0
      %v511 = vsel %vm485, %v397, 0
      %v514 = vsel %vm485, %v399, 0
      %v517 = vsel %vm485, %v401, 0
      %v520 = vsel %vm485, %v403, 0
      %v523 = vsel %vm485, %v405, 0
      %v526 = vsel %vm485, %v407, 0
      %v529 = vsel %vm485, %v409, 0
      %v532 = vsel %vm485, %v411, 0
      %vm534 = vcmask 1040384
      %vm535 = vcmask 1041408
      %v536 = vsel %vm534, 4294967295, 65535
      %v537 = vsel %vm535, %v536, 0
      %v539 = vand.u32 %v475, %v537
      %541 = vmatpush.bf16.msra.mxu0 %v473
      %542 = vmatpush.bf16.msra.mxu0 %v472
      %543 = vmatpush.bf16.msra.mxu0 %v471
      %544 = vmatpush.bf16.msra.mxu0 %v470
      %545 = vmatpush.bf16.msra.mxu0 %v469
      %546 = vmatpush.bf16.msra.mxu0 %v468
      %547 = vmatpush.bf16.msra.mxu0 %v467
      %548 = vmatpush.bf16.msra.mxu0 %v466
      %549 = vmatmul.bf16.gmra.mxu0 %v380
      %v550 = vpop.f32.mrf.mxu0
      %v551 = vadd.f32 %v282, %v550
      %v552 = vpop.f32.mrf.mxu0
      %v553 = vadd.f32 %v282, %v552
      %554 = vmatmul.bf16.gmra.mxu0 %v382
      %v555 = vpop.f32.mrf.mxu0
      %v556 = vadd.f32 %v282, %v555
      %v557 = vpop.f32.mrf.mxu0
      %v558 = vadd.f32 %v282, %v557
      %559 = vmatmul.bf16.gmra.mxu0 %v384
      %v560 = vpop.f32.mrf.mxu0
      %v561 = vadd.f32 %v282, %v560
      %v562 = vpop.f32.mrf.mxu0
      %v563 = vadd.f32 %v282, %v562
      %564 = vmatmul.bf16.gmra.mxu0 %v386
      %v565 = vpop.f32.mrf.mxu0
      %v566 = vadd.f32 %v282, %v565
      %v567 = vpop.f32.mrf.mxu0
      %v568 = vadd.f32 %v282, %v567
      %569 = vmatmul.bf16.gmra.mxu0 %v388
      %v570 = vpop.f32.mrf.mxu0
      %v571 = vadd.f32 %v282, %v570
      %v572 = vpop.f32.mrf.mxu0
      %v573 = vadd.f32 %v282, %v572
      %574 = vmatmul.bf16.gmra.mxu0 %v390
      %v575 = vpop.f32.mrf.mxu0
      %v576 = vadd.f32 %v282, %v575
      %v577 = vpop.f32.mrf.mxu0
      %v578 = vadd.f32 %v282, %v577
      %579 = vmatmul.bf16.gmra.mxu0 %v392
      %v580 = vpop.f32.mrf.mxu0
      %v581 = vadd.f32 %v282, %v580
      %v582 = vpop.f32.mrf.mxu0
      %v583 = vadd.f32 %v282, %v582
      %584 = vmatmul.bf16.gmra.mxu0 %v394
      %v585 = vpop.f32.mrf.mxu0
      %v586 = vadd.f32 %v282, %v585
      %v587 = vpop.f32.mrf.mxu0
      %v588 = vadd.f32 %v282, %v587
      %589 = vmatmul.bf16.gmra.mxu0 %v396
      %v590 = vpop.f32.mrf.mxu0
      %v591 = vadd.f32 %v282, %v590
      %v592 = vpop.f32.mrf.mxu0
      %v593 = vadd.f32 %v282, %v592
      %594 = vmatmul.bf16.gmra.mxu0 %v398
      %v595 = vpop.f32.mrf.mxu0
      %v596 = vadd.f32 %v282, %v595
      %v597 = vpop.f32.mrf.mxu0
      %v598 = vadd.f32 %v282, %v597
      %599 = vmatmul.bf16.gmra.mxu0 %v400
      %v600 = vpop.f32.mrf.mxu0
      %v601 = vadd.f32 %v282, %v600
      %v602 = vpop.f32.mrf.mxu0
      %v603 = vadd.f32 %v282, %v602
      %604 = vmatmul.bf16.gmra.mxu0 %v402
      %v605 = vpop.f32.mrf.mxu0
      %v606 = vadd.f32 %v282, %v605
      %v607 = vpop.f32.mrf.mxu0
      %v608 = vadd.f32 %v282, %v607
      %609 = vmatmul.bf16.gmra.mxu0 %v404
      %v610 = vpop.f32.mrf.mxu0
      %v611 = vadd.f32 %v282, %v610
      %v612 = vpop.f32.mrf.mxu0
      %v613 = vadd.f32 %v282, %v612
      %614 = vmatmul.bf16.gmra.mxu0 %v406
      %v615 = vpop.f32.mrf.mxu0
      %v616 = vadd.f32 %v282, %v615
      %v617 = vpop.f32.mrf.mxu0
      %v618 = vadd.f32 %v282, %v617
      %619 = vmatmul.bf16.gmra.mxu0 %v408
      %v620 = vpop.f32.mrf.mxu0
      %v621 = vadd.f32 %v282, %v620
      %v622 = vpop.f32.mrf.mxu0
      %v623 = vadd.f32 %v282, %v622
      %624 = vmatmul.bf16.gmra.mxu0 %v410
      %v625 = vpop.f32.mrf.mxu0
      %v626 = vadd.f32 %v282, %v625
      %v627 = vpop.f32.mrf.mxu0
      %v628 = vadd.f32 %v282, %v627
      %629 = vdwg.mxu0
      %630 = vmatpush.bf16.msra.mxu0 0
      %631 = vmatpush.bf16.msra.mxu0 0
      %632 = vmatpush.bf16.msra.mxu0 0
      %633 = vmatpush.bf16.msra.mxu0 0
      %634 = vmatpush.bf16.msra.mxu0 0
      %635 = vmatpush.bf16.msra.mxu0 0
      %636 = vmatpush.bf16.msra.mxu0 %v539
      %637 = vmatpush.bf16.msra.mxu0 %v474
      %638 = vmatmul.bf16.gmra.mxu0 %v487
      %v639 = vpop.f32.mrf.mxu0
      %v640 = vadd.f32 %v551, %v639
      %v641 = vpop.f32.mrf.mxu0
      %v642 = vadd.f32 %v553, %v641
      %643 = vmatmul.bf16.gmra.mxu0 %v490
      %v644 = vpop.f32.mrf.mxu0
      %v645 = vadd.f32 %v556, %v644
      %v646 = vpop.f32.mrf.mxu0
      %v647 = vadd.f32 %v558, %v646
      %648 = vmatmul.bf16.gmra.mxu0 %v493
      %v649 = vpop.f32.mrf.mxu0
      %v650 = vadd.f32 %v561, %v649
      %v651 = vpop.f32.mrf.mxu0
      %v652 = vadd.f32 %v563, %v651
      %653 = vmatmul.bf16.gmra.mxu0 %v496
      %v654 = vpop.f32.mrf.mxu0
      %v655 = vadd.f32 %v566, %v654
      %v656 = vpop.f32.mrf.mxu0
      %v657 = vadd.f32 %v568, %v656
      %658 = vmatmul.bf16.gmra.mxu0 %v499
      %v659 = vpop.f32.mrf.mxu0
      %v660 = vadd.f32 %v571, %v659
      %v661 = vpop.f32.mrf.mxu0
      %v662 = vadd.f32 %v573, %v661
      %663 = vmatmul.bf16.gmra.mxu0 %v502
      %v664 = vpop.f32.mrf.mxu0
      %v665 = vadd.f32 %v576, %v664
      %v666 = vpop.f32.mrf.mxu0
      %v667 = vadd.f32 %v578, %v666
      %668 = vmatmul.bf16.gmra.mxu0 %v505
      %v669 = vpop.f32.mrf.mxu0
      %v670 = vadd.f32 %v581, %v669
      %v671 = vpop.f32.mrf.mxu0
      %v672 = vadd.f32 %v583, %v671
      %673 = vmatmul.bf16.gmra.mxu0 %v508
      %v674 = vpop.f32.mrf.mxu0
      %v675 = vadd.f32 %v586, %v674
      %v676 = vpop.f32.mrf.mxu0
      %v677 = vadd.f32 %v588, %v676
      %678 = vmatmul.bf16.gmra.mxu0 %v511
      %v679 = vpop.f32.mrf.mxu0
      %v680 = vadd.f32 %v591, %v679
      %v681 = vpop.f32.mrf.mxu0
      %v682 = vadd.f32 %v593, %v681
      %683 = vmatmul.bf16.gmra.mxu0 %v514
      %v684 = vpop.f32.mrf.mxu0
      %v685 = vadd.f32 %v596, %v684
      %v686 = vpop.f32.mrf.mxu0
      %v687 = vadd.f32 %v598, %v686
      %688 = vmatmul.bf16.gmra.mxu0 %v517
      %v689 = vpop.f32.mrf.mxu0
      %v690 = vadd.f32 %v601, %v689
      %v691 = vpop.f32.mrf.mxu0
      %v692 = vadd.f32 %v603, %v691
      %693 = vmatmul.bf16.gmra.mxu0 %v520
      %v694 = vpop.f32.mrf.mxu0
      %v695 = vadd.f32 %v606, %v694
      %v696 = vpop.f32.mrf.mxu0
      %v697 = vadd.f32 %v608, %v696
      %698 = vmatmul.bf16.gmra.mxu0 %v523
      %v699 = vpop.f32.mrf.mxu0
      %v700 = vadd.f32 %v611, %v699
      %v701 = vpop.f32.mrf.mxu0
      %v702 = vadd.f32 %v613, %v701
      %703 = vmatmul.bf16.gmra.mxu0 %v526
      %v704 = vpop.f32.mrf.mxu0
      %v705 = vadd.f32 %v616, %v704
      %v706 = vpop.f32.mrf.mxu0
      %v707 = vadd.f32 %v618, %v706
      %708 = vmatmul.bf16.gmra.mxu0 %v529
      %v709 = vpop.f32.mrf.mxu0
      %v710 = vadd.f32 %v621, %v709
      %v711 = vpop.f32.mrf.mxu0
      %v712 = vadd.f32 %v623, %v711
      %713 = vmatmul.bf16.gmra.mxu0 %v532
      %v714 = vpop.f32.mrf.mxu0
      %v715 = vadd.f32 %v626, %v714
      %v716 = vpop.f32.mrf.mxu0
      %v717 = vadd.f32 %v628, %v716
      %718 = vdwg.mxu0
      %v719 = vmax.f32 %v640, 0.0
      %v720 = vmax.f32 %v642, 0.0
      %v721 = vmax.f32 %v645, 0.0
      %v722 = vmax.f32 %v647, 0.0
      %v723 = vmax.f32 %v650, 0.0
      %v724 = vmax.f32 %v652, 0.0
      %v725 = vmax.f32 %v655, 0.0
      %v726 = vmax.f32 %v657, 0.0
      %v727 = vmax.f32 %v660, 0.0
      %v728 = vmax.f32 %v662, 0.0
      %v729 = vmax.f32 %v665, 0.0
      %v730 = vmax.f32 %v667, 0.0
      %v731 = vmax.f32 %v670, 0.0
      %v732 = vmax.f32 %v672, 0.0
      %v733 = vmax.f32 %v675, 0.0
      %v734 = vmax.f32 %v677, 0.0
      %v735 = vmax.f32 %v680, 0.0
      %v736 = vmax.f32 %v682, 0.0
      %v737 = vmax.f32 %v685, 0.0
      %v738 = vmax.f32 %v687, 0.0
      %v739 = vmax.f32 %v690, 0.0
      %v740 = vmax.f32 %v692, 0.0
      %v741 = vmax.f32 %v695, 0.0
      %v742 = vmax.f32 %v697, 0.0
      %v743 = vmax.f32 %v700, 0.0
      %v744 = vmax.f32 %v702, 0.0
      %v745 = vmax.f32 %v705, 0.0
      %v746 = vmax.f32 %v707, 0.0
      %v747 = vmax.f32 %v710, 0.0
      %v748 = vmax.f32 %v712, 0.0
      %v749 = vmax.f32 %v715, 0.0
      %v750 = vmax.f32 %v717, 0.0
      %v751 = vpack.c.bf16 %v719, %v719
      %v752 = vpack.c.bf16 %v720, %v720
      %v753 = vpack.c.bf16 %v721, %v721
      %v754 = vpack.c.bf16 %v722, %v722
      %v755 = vpack.c.bf16 %v723, %v723
      %v756 = vpack.c.bf16 %v724, %v724
      %v757 = vpack.c.bf16 %v725, %v725
      %v758 = vpack.c.bf16 %v726, %v726
      %v759 = vpack.c.bf16 %v727, %v727
      %v760 = vpack.c.bf16 %v728, %v728
      %v761 = vpack.c.bf16 %v729, %v729
      %v762 = vpack.c.bf16 %v730, %v730
      %v763 = vpack.c.bf16 %v731, %v731
      %v764 = vpack.c.bf16 %v732, %v732
      %v765 = vpack.c.bf16 %v733, %v733
      %v766 = vpack.c.bf16 %v734, %v734
      %v767 = vpack.c.bf16 %v735, %v735
      %v768 = vpack.c.bf16 %v736, %v736
      %v769 = vpack.c.bf16 %v737, %v737
      %v770 = vpack.c.bf16 %v738, %v738
      %v771 = vpack.c.bf16 %v739, %v739
      %v772 = vpack.c.bf16 %v740, %v740
      %v773 = vpack.c.bf16 %v741, %v741
      %v774 = vpack.c.bf16 %v742, %v742
      %v775 = vpack.c.bf16 %v743, %v743
      %v776 = vpack.c.bf16 %v744, %v744
      %v777 = vpack.c.bf16 %v745, %v745
      %v778 = vpack.c.bf16 %v746, %v746
      %v779 = vpack.c.bf16 %v747, %v747
      %v780 = vpack.c.bf16 %v748, %v748
      %v781 = vpack.c.bf16 %v749, %v749
      %v782 = vpack.c.bf16 %v750, %v750
      %vm783 = vcmask 519168
      %784 = vst.msk [vmem:[%s226] sm:$0xf] %vm783, %v751
      %785 = vst.msk [vmem:[%s226 + $0x4] sm:$0xf] %vm783, %v752
      %786 = vst.msk [vmem:[%s226 + $0x8] sm:$0xf] %vm783, %v753
      %787 = vst.msk [vmem:[%s226 + $0xc] sm:$0xf] %vm783, %v754
      %788 = vst.msk [vmem:[%s226 + $0x10] sm:$0xf] %vm783, %v755
      %789 = vst.msk [vmem:[%s226 + $0x14] sm:$0xf] %vm783, %v756
      %790 = vst.msk [vmem:[%s226 + $0x18] sm:$0xf] %vm783, %v757
      %791 = vst.msk [vmem:[%s226 + $0x1c] sm:$0xf] %vm783, %v758
      %792 = vst.msk [vmem:[%s226 + $0x20] sm:$0xf] %vm783, %v759
      %793 = vst.msk [vmem:[%s226 + $0x24] sm:$0xf] %vm783, %v760
      %794 = vst.msk [vmem:[%s226 + $0x28] sm:$0xf] %vm783, %v761
      %795 = vst.msk [vmem:[%s226 + $0x2c] sm:$0xf] %vm783, %v762
      %796 = vst.msk [vmem:[%s226 + $0x30] sm:$0xf] %vm783, %v763
      %797 = vst.msk [vmem:[%s226 + $0x34] sm:$0xf] %vm783, %v764
      %798 = vst.msk [vmem:[%s226 + $0x38] sm:$0xf] %vm783, %v765
      %799 = vst.msk [vmem:[%s226 + $0x3c] sm:$0xf] %vm783, %v766
      %800 = vst.msk [vmem:[%s226 + $0x40] sm:$0xf] %vm783, %v767
      %801 = vst.msk [vmem:[%s226 + $0x44] sm:$0xf] %vm783, %v768
      %802 = vst.msk [vmem:[%s226 + $0x48] sm:$0xf] %vm783, %v769
      %803 = vst.msk [vmem:[%s226 + $0x4c] sm:$0xf] %vm783, %v770
      %804 = vst.msk [vmem:[%s226 + $0x50] sm:$0xf] %vm783, %v771
      %805 = vst.msk [vmem:[%s226 + $0x54] sm:$0xf] %vm783, %v772
      %806 = vst.msk [vmem:[%s226 + $0x58] sm:$0xf] %vm783, %v773
      %807 = vst.msk [vmem:[%s226 + $0x5c] sm:$0xf] %vm783, %v774
      %808 = vst.msk [vmem:[%s226 + $0x60] sm:$0xf] %vm783, %v775
      %809 = vst.msk [vmem:[%s226 + $0x64] sm:$0xf] %vm783, %v776
      %810 = vst.msk [vmem:[%s226 + $0x68] sm:$0xf] %vm783, %v777
      %811 = vst.msk [vmem:[%s226 + $0x6c] sm:$0xf] %vm783, %v778
      %812 = vst.msk [vmem:[%s226 + $0x70] sm:$0xf] %vm783, %v779
      %813 = vst.msk [vmem:[%s226 + $0x74] sm:$0xf] %vm783, %v780
      %814 = vst.msk [vmem:[%s226 + $0x78] sm:$0xf] %vm783, %v781
      %815 = vst.msk [vmem:[%s226 + $0x7c] sm:$0xf] %vm783, %v782
      %s816 = smul.u32 32, %s18
      %p817 = scmp.lt.s32.totalorder %s816, 63
      %s818 = scalar_select %p817, %s816, 63
      %p819 = scmp.lt.s32.totalorder %s19, 0
      %s820 = scalar_select %p819, %s19, 0
      %s821 = sadd.s32 %s820, %s818
      %s822 = smul.addr %s821, 4
      %s823 = scalar_lea.vmem %s3, %s822
      // Predicated region
      $region33: #{ash_resnet18_forward.10} parent=31 // pred_check
        %p824 = pneg %p124
      $region34: #{ash_resnet18_forward.10} parent=31 // pred_check_branch
        %826 = sbr.rel (%p824) target = $region36
      $region35: #{ash_resnet18_forward.10} parent=31 // pred_region
        %s827 = smul.u32 32, %s18
      $region36: #{ash_resnet18_forward.10} parent=31 // pred_fallthru
        _
    $region32: #{ash_resnet18_forward.10} parent=5 // pred_fallthru
      _
    %p828 = scmp.le.s32.totalorder 2, %s9
    // Predicated region
    $region37: #{ash_resnet18_forward.10} parent=5 // pred_check
      %p829 = pneg %p828
    $region38: #{ash_resnet18_forward.10} parent=5 // pred_check_branch
      %831 = sbr.rel (%p829) target = $region40
    $region39: #{ash_resnet18_forward.10} parent=5 // pred_region
      %s832 = ssub.s32 %s9, 2
      // Predicated region
      $region41: #{ash_resnet18_forward.10} parent=39 // pred_check
        %p833 = pneg %p130
      $region42: #{ash_resnet18_forward.10} parent=39 // pred_check_branch
        %835 = sbr.rel (%p833) target = $region44
      $region43: #{ash_resnet18_forward.10} parent=39 // pred_region
        %s836 = smul.u32 32, %s20
        %p837 = scmp.lt.s32.totalorder %s836, 63
        %s838 = scalar_select %p837, %s836, 63
        %p839 = scmp.lt.s32.totalorder %s21, 0
        %s840 = scalar_select %p839, %s21, 0
        %s841 = sadd.s32 %s840, %s838
        %s842 = smul.addr %s841, 4
        %s843 = scalar_lea.vmem %s3, %s842
      $region44: #{ash_resnet18_forward.10} parent=39 // pred_fallthru
        _
    $region40: #{ash_resnet18_forward.10} parent=5 // pred_fallthru
      _
  $region6: #{ash_resnet18_forward.10} parent=0 // loop_footer
    %s13 = sadd.s32 1, %s9
  $region7: #{ash_resnet18_forward.10} parent=0 // loop_footer_branch
    %8 = sbr.rel target = $region3
  $region8: #{ash_resnet18_forward.10} parent=0 // loop_exit
    _

// kernel: ash_resnet18_forward.11
$region0: #{ash_resnet18_forward.11}
  #allocation0 [shape = 'u32[]', space=smem, size = 0x4, offset = 0x4, fixed_abs, tag = 'smem constant byte address 0x4 - core index']
  #allocation1 [shape = 'u32[72,128]{1,0:T(1,128)}', space=vmem, size = 0x9000, scoped, tag = 'internal scratch']
  %s0 = inlined_call_operand.vmem [shape: bf16[128,576], index: 0, kind: input, shape index: {}]
  %s1 = inlined_call_operand.vmem [shape: bf16[576,64], index: 1, kind: input, shape index: {}]
  %s2 = inlined_call_operand.vmem [shape: f32[1,64], index: 2, kind: input, shape index: {}]
  %s3 = inlined_call_operand.vmem [shape: bf16[128,64], index: 3, kind: output, shape index: {}]
  %s4 = sld [smem:[#allocation0]]
  $region22: #{ash_resnet18_forward.11} parent=0
    _
  %s6 = ssub.s32 1, %s4
  %s7 = scalar_select 0, %s6, %s4
  // Predicated region
  $region2: #{ash_resnet18_forward.11} parent=0 // pred_check
    _
  $region3: #{ash_resnet18_forward.11} parent=0 // pred_check_branch
    %9 = sbr.rel (0) target = $region5
  $region4: #{ash_resnet18_forward.11} parent=0 // pred_region
    _
  $region5: #{ash_resnet18_forward.11} parent=0 // pred_fallthru
    _
  // Predicated region
  $region6: #{ash_resnet18_forward.11} parent=0 // pred_check
    _
  $region7: #{ash_resnet18_forward.11} parent=0 // pred_check_branch
    %11 = sbr.rel (0) target = $region9
  $region8: #{ash_resnet18_forward.11} parent=0 // pred_region
    _
  $region9: #{ash_resnet18_forward.11} parent=0 // pred_fallthru
    _
  // Predicated region
  $region10: #{ash_resnet18_forward.11} parent=0 // pred_check
    _
  $region11: #{ash_resnet18_forward.11} parent=0 // pred_check_branch
    %13 = sbr.rel (0) target = $region13
  $region12: #{ash_resnet18_forward.11} parent=0 // pred_region
    _
  $region13: #{ash_resnet18_forward.11} parent=0 // pred_fallthru
    _
  %v15 = vld [vmem:[%s0] sm:$0xff]
  %v16 = vld [vmem:[%s0 + $0x8] sm:$0xff]
  %v17 = vld [vmem:[%s0 + $0x10] sm:$0xf]
  %v18 = vld [vmem:[%s0 + $0x14] sm:$0xff]
  %v19 = vld [vmem:[%s0 + $0x1c] sm:$0xff]
  %v20 = vld [vmem:[%s0 + $0x24] sm:$0xf]
  %v21 = vld [vmem:[%s0 + $0x28] sm:$0xff]
  %v22 = vld [vmem:[%s0 + $0x30] sm:$0xff]
  %v23 = vld [vmem:[%s0 + $0x38] sm:$0xf]
  %v24 = vld [vmem:[%s0 + $0x3c] sm:$0xff]
  %v25 = vld [vmem:[%s0 + $0x44] sm:$0xff]
  %v26 = vld [vmem:[%s0 + $0x4c] sm:$0xf]
  %v27 = vld [vmem:[%s0 + $0x50] sm:$0xff]
  %v28 = vld [vmem:[%s0 + $0x58] sm:$0xff]
  %v29 = vld [vmem:[%s0 + $0x60] sm:$0xf]
  %v30 = vld [vmem:[%s0 + $0x64] sm:$0xff]
  %v31 = vld [vmem:[%s0 + $0x6c] sm:$0xff]
  %v32 = vld [vmem:[%s0 + $0x74] sm:$0xf]
  %v33 = vld [vmem:[%s0 + $0x78] sm:$0xff]
  %v34 = vld [vmem:[%s0 + $0x80] sm:$0xff]
  %v35 = vld [vmem:[%s0 + $0x88] sm:$0xf]
  %v36 = vld [vmem:[%s0 + $0x8c] sm:$0xff]
  %v37 = vld [vmem:[%s0 + $0x94] sm:$0xff]
  %v38 = vld [vmem:[%s0 + $0x9c] sm:$0xf]
  %v39 = vld [vmem:[%s0 + $0xa0] sm:$0xff]
  %v40 = vld [vmem:[%s0 + $0xa8] sm:$0xff]
  %v41 = vld [vmem:[%s0 + $0xb0] sm:$0xf]
  %v42 = vld [vmem:[%s0 + $0xb4] sm:$0xff]
  %v43 = vld [vmem:[%s0 + $0xbc] sm:$0xff]
  %v44 = vld [vmem:[%s0 + $0xc4] sm:$0xf]
  %v45 = vld [vmem:[%s0 + $0xc8] sm:$0xff]
  %v46 = vld [vmem:[%s0 + $0xd0] sm:$0xff]
  %v47 = vld [vmem:[%s0 + $0xd8] sm:$0xf]
  %v48 = vld [vmem:[%s0 + $0xdc] sm:$0xff]
  %v49 = vld [vmem:[%s0 + $0xe4] sm:$0xff]
  %v50 = vld [vmem:[%s0 + $0xec] sm:$0xf]
  %v51 = vld [vmem:[%s0 + $0xf0] sm:$0xff]
  %v52 = vld [vmem:[%s0 + $0xf8] sm:$0xff]
  %v53 = vld [vmem:[%s0 + $0x100] sm:$0xf]
  %v54 = vld [vmem:[%s0 + $0x104] sm:$0xff]
  %v55 = vld [vmem:[%s0 + $0x10c] sm:$0xff]
  %v56 = vld [vmem:[%s0 + $0x114] sm:$0xf]
  %v57 = vld [vmem:[%s0 + $0x118] sm:$0xff]
  %v58 = vld [vmem:[%s0 + $0x120] sm:$0xff]
  %v59 = vld [vmem:[%s0 + $0x128] sm:$0xf]
  %v60 = vld [vmem:[%s0 + $0x12c] sm:$0xff]
  %v61 = vld [vmem:[%s0 + $0x134] sm:$0xff]
  %v62 = vld [vmem:[%s0 + $0x13c] sm:$0xf]
  %v63 = vld [vmem:[%s1] sm:$0xf]
  %v64 = vld [vmem:[%s1 + $0x4] sm:$0xf]
  %v65 = vld [vmem:[%s1 + $0x8] sm:$0xf]
  %v66 = vld [vmem:[%s1 + $0xc] sm:$0xf]
  %v67 = vld [vmem:[%s1 + $0x10] sm:$0xf]
  %v68 = vld [vmem:[%s1 + $0x14] sm:$0xf]
  %v69 = vld [vmem:[%s1 + $0x18] sm:$0xf]
  %v70 = vld [vmem:[%s1 + $0x1c] sm:$0xf]
  %v71 = vld [vmem:[%s1 + $0x20] sm:$0xf]
  %v72 = vld [vmem:[%s1 + $0x24] sm:$0xf]
  %v73 = vld [vmem:[%s1 + $0x28] sm:$0xf]
  %v74 = vld [vmem:[%s1 + $0x2c] sm:$0xf]
  %v75 = vld [vmem:[%s1 + $0x30] sm:$0xf]
  %v76 = vld [vmem:[%s1 + $0x34] sm:$0xf]
  %v77 = vld [vmem:[%s1 + $0x38] sm:$0xf]
  %v78 = vld [vmem:[%s1 + $0x3c] sm:$0xf]
  %v79 = vld [vmem:[%s1 + $0x40] sm:$0xf]
  %v80 = vld [vmem:[%s1 + $0x44] sm:$0xf]
  %v81 = vld [vmem:[%s1 + $0x48] sm:$0xf]
  %v82 = vld [vmem:[%s1 + $0x4c] sm:$0xf]
  %v83 = vld [vmem:[%s1 + $0x50] sm:$0xf]
  %v84 = vld [vmem:[%s1 + $0x54] sm:$0xf]
  %v85 = vld [vmem:[%s1 + $0x58] sm:$0xf]
  %v86 = vld [vmem:[%s1 + $0x5c] sm:$0xf]
  %v87 = vld [vmem:[%s1 + $0x60] sm:$0xf]
  %v88 = vld [vmem:[%s1 + $0x64] sm:$0xf]
  %v89 = vld [vmem:[%s1 + $0x68] sm:$0xf]
  %v90 = vld [vmem:[%s1 + $0x6c] sm:$0xf]
  %v91 = vld [vmem:[%s1 + $0x70] sm:$0xf]
  %v92 = vld [vmem:[%s1 + $0x74] sm:$0xf]
  %v93 = vld [vmem:[%s1 + $0x78] sm:$0xf]
  %v94 = vld [vmem:[%s1 + $0x7c] sm:$0xf]
  %v95 = vld [vmem:[%s1 + $0x80] sm:$0xf]
  %v96 = vld [vmem:[%s1 + $0x84] sm:$0xf]
  %v97 = vld [vmem:[%s1 + $0x88] sm:$0xf]
  %v98 = vld [vmem:[%s1 + $0x8c] sm:$0xf]
  %v99 = vld [vmem:[%s1 + $0x90] sm:$0xf]
  %v100 = vld [vmem:[%s1 + $0x94] sm:$0xf]
  %v101 = vld [vmem:[%s1 + $0x98] sm:$0xf]
  %v102 = vld [vmem:[%s1 + $0x9c] sm:$0xf]
  %v103 = vld [vmem:[%s1 + $0xa0] sm:$0xf]
  %v104 = vld [vmem:[%s1 + $0xa4] sm:$0xf]
  %v105 = vld [vmem:[%s1 + $0xa8] sm:$0xf]
  %v106 = vld [vmem:[%s1 + $0xac] sm:$0xf]
  %v107 = vld [vmem:[%s1 + $0xb0] sm:$0xf]
  %v108 = vld [vmem:[%s1 + $0xb4] sm:$0xf]
  %v109 = vld [vmem:[%s1 + $0xb8] sm:$0xf]
  %v110 = vld [vmem:[%s1 + $0xbc] sm:$0xf]
  %v111 = vld [vmem:[%s1 + $0xc0] sm:$0xf]
  %v112 = vld [vmem:[%s1 + $0xc4] sm:$0xf]
  %v113 = vld [vmem:[%s1 + $0xc8] sm:$0xf]
  %v114 = vld [vmem:[%s1 + $0xcc] sm:$0xf]
  %v115 = vld [vmem:[%s1 + $0xd0] sm:$0xf]
  %v116 = vld [vmem:[%s1 + $0xd4] sm:$0xf]
  %v117 = vld [vmem:[%s1 + $0xd8] sm:$0xf]
  %v118 = vld [vmem:[%s1 + $0xdc] sm:$0xf]
  %v119 = vld [vmem:[%s1 + $0xe0] sm:$0xf]
  %v120 = vld [vmem:[%s1 + $0xe4] sm:$0xf]
  %v121 = vld [vmem:[%s1 + $0xe8] sm:$0xf]
  %v122 = vld [vmem:[%s1 + $0xec] sm:$0xf]
  %v123 = vld [vmem:[%s1 + $0xf0] sm:$0xf]
  %v124 = vld [vmem:[%s1 + $0xf4] sm:$0xf]
  %v125 = vld [vmem:[%s1 + $0xf8] sm:$0xf]
  %v126 = vld [vmem:[%s1 + $0xfc] sm:$0xf]
  %v127 = vld [vmem:[%s1 + $0x100] sm:$0xf]
  %v128 = vld [vmem:[%s1 + $0x104] sm:$0xf]
  %v129 = vld [vmem:[%s1 + $0x108] sm:$0xf]
  %v130 = vld [vmem:[%s1 + $0x10c] sm:$0xf]
  %v131 = vld [vmem:[%s1 + $0x110] sm:$0xf]
  %v132 = vld [vmem:[%s1 + $0x114] sm:$0xf]
  %v133 = vld [vmem:[%s1 + $0x118] sm:$0xf]
  %v134 = vld [vmem:[%s1 + $0x11c] sm:$0xf]
  %v135 = vld [vmem:[%s2] sm:$0x1]
  %v137 = vperm.slane %v135, 0
  %v187 = vunpack.c.l.b16 %v15
  %v188 = vunpack.c.h.b16 %v15
  %v189 = vunpack.c.l.b16 %v16
  %v190 = vunpack.c.h.b16 %v16
  %v191 = vunpack.c.l.b16 %v17
  %v192 = vunpack.c.l.b16 %v18
  %v193 = vunpack.c.h.b16 %v18
  %v194 = vunpack.c.l.b16 %v19
  %v195 = vunpack.c.h.b16 %v19
  %v196 = vunpack.c.l.b16 %v20
  %v197 = vunpack.c.l.b16 %v21
  %v198 = vunpack.c.h.b16 %v21
  %v199 = vunpack.c.l.b16 %v22
  %v200 = vunpack.c.h.b16 %v22
  %v201 = vunpack.c.l.b16 %v23
  %v202 = vunpack.c.l.b16 %v24
  %v203 = vunpack.c.h.b16 %v24
  %v204 = vunpack.c.l.b16 %v25
  %v205 = vunpack.c.h.b16 %v25
  %v206 = vunpack.c.l.b16 %v26
  %v207 = vunpack.c.l.b16 %v27
  %v208 = vunpack.c.h.b16 %v27
  %v209 = vunpack.c.l.b16 %v28
  %v210 = vunpack.c.h.b16 %v28
  %v211 = vunpack.c.l.b16 %v29
  %v212 = vunpack.c.l.b16 %v30
  %v213 = vunpack.c.h.b16 %v30
  %v214 = vunpack.c.l.b16 %v31
  %v215 = vunpack.c.h.b16 %v31
  %v216 = vunpack.c.l.b16 %v32
  %v217 = vunpack.c.l.b16 %v33
  %v218 = vunpack.c.h.b16 %v33
  %v219 = vunpack.c.l.b16 %v34
  %v220 = vunpack.c.h.b16 %v34
  %v221 = vunpack.c.l.b16 %v35
  %v222 = vunpack.c.l.b16 %v36
  %v223 = vunpack.c.h.b16 %v36
  %v224 = vunpack.c.l.b16 %v37
  %v225 = vunpack.c.h.b16 %v37
  %v226 = vunpack.c.l.b16 %v38
  %v227 = vunpack.c.l.b16 %v39
  %v228 = vunpack.c.h.b16 %v39
  %v229 = vunpack.c.l.b16 %v40
  %v230 = vunpack.c.h.b16 %v40
  %v231 = vunpack.c.l.b16 %v41
  %v232 = vunpack.c.l.b16 %v42
  %v233 = vunpack.c.h.b16 %v42
  %v234 = vunpack.c.l.b16 %v43
  %v235 = vunpack.c.h.b16 %v43
  %v236 = vunpack.c.l.b16 %v44
  %v237 = vunpack.c.l.b16 %v45
  %v238 = vunpack.c.h.b16 %v45
  %v239 = vunpack.c.l.b16 %v46
  %v240 = vunpack.c.h.b16 %v46
  %v241 = vunpack.c.l.b16 %v47
  %v242 = vunpack.c.l.b16 %v48
  %v243 = vunpack.c.h.b16 %v48
  %v244 = vunpack.c.l.b16 %v49
  %v245 = vunpack.c.h.b16 %v49
  %v246 = vunpack.c.l.b16 %v50
  %v247 = vunpack.c.l.b16 %v51
  %v248 = vunpack.c.h.b16 %v51
  %v249 = vunpack.c.l.b16 %v52
  %v250 = vunpack.c.h.b16 %v52
  %v251 = vunpack.c.l.b16 %v53
  %v252 = vunpack.c.l.b16 %v54
  %v253 = vunpack.c.h.b16 %v54
  %v254 = vunpack.c.l.b16 %v55
  %v255 = vunpack.c.h.b16 %v55
  %v256 = vunpack.c.l.b16 %v56
  %v257 = vunpack.c.l.b16 %v57
  %v258 = vunpack.c.h.b16 %v57
  %v259 = vunpack.c.l.b16 %v58
  %v260 = vunpack.c.h.b16 %v58
  %v261 = vunpack.c.l.b16 %v59
  %v262 = vunpack.c.l.b16 %v60
  %v263 = vunpack.c.h.b16 %v60
  %v264 = vunpack.c.l.b16 %v61
  %v265 = vunpack.c.h.b16 %v61
  %v266 = vunpack.c.l.b16 %v62
  %v267 = vpack.c.b16 %v192, %v187
  %v268 = vpack.c.b16 %v193, %v188
  %v269 = vpack.c.b16 %v194, %v189
  %v270 = vpack.c.b16 %v195, %v190
  %v271 = vpack.c.b16 %v196, %v191
  %v272 = vpack.c.b16 %v202, %v197
  %v273 = vpack.c.b16 %v203, %v198
  %v274 = vpack.c.b16 %v204, %v199
  %v275 = vpack.c.b16 %v205, %v200
  %v276 = vpack.c.b16 %v206, %v201
  %v277 = vpack.c.b16 %v212, %v207
  %v278 = vpack.c.b16 %v213, %v208
  %v279 = vpack.c.b16 %v214, %v209
  %v280 = vpack.c.b16 %v215, %v210
  %v281 = vpack.c.b16 %v216, %v211
  %v282 = vpack.c.b16 %v222, %v217
  %v283 = vpack.c.b16 %v223, %v218
  %v284 = vpack.c.b16 %v224, %v219
  %v285 = vpack.c.b16 %v225, %v220
  %v286 = vpack.c.b16 %v226, %v221
  %v287 = vpack.c.b16 %v232, %v227
  %v288 = vpack.c.b16 %v233, %v228
  %v289 = vpack.c.b16 %v234, %v229
  %v290 = vpack.c.b16 %v235, %v230
  %v291 = vpack.c.b16 %v236, %v231
  %v292 = vpack.c.b16 %v242, %v237
  %v293 = vpack.c.b16 %v243, %v238
  %v294 = vpack.c.b16 %v244, %v239
  %v295 = vpack.c.b16 %v245, %v240
  %v296 = vpack.c.b16 %v246, %v241
  %v297 = vpack.c.b16 %v252, %v247
  %v298 = vpack.c.b16 %v253, %v248
  %v299 = vpack.c.b16 %v254, %v249
  %v300 = vpack.c.b16 %v255, %v250
  %v301 = vpack.c.b16 %v256, %v251
  %v302 = vpack.c.b16 %v262, %v257
  %v303 = vpack.c.b16 %v263, %v258
  %v304 = vpack.c.b16 %v264, %v259
  %v305 = vpack.c.b16 %v265, %v260
  %v306 = vpack.c.b16 %v266, %v261
  %v411 = vunpack.c.l.b16 %v63
  %v412 = vunpack.c.l.b16 %v64
  %v413 = vunpack.c.l.b16 %v65
  %v414 = vunpack.c.l.b16 %v66
  %v415 = vunpack.c.l.b16 %v67
  %v416 = vunpack.c.l.b16 %v68
  %v417 = vunpack.c.l.b16 %v69
  %v418 = vunpack.c.l.b16 %v70
  %v419 = vunpack.c.l.b16 %v71
  %v420 = vunpack.c.l.b16 %v72
  %v421 = vunpack.c.l.b16 %v73
  %v422 = vunpack.c.l.b16 %v74
  %v423 = vunpack.c.l.b16 %v75
  %v424 = vunpack.c.l.b16 %v76
  %v425 = vunpack.c.l.b16 %v77
  %v426 = vunpack.c.l.b16 %v78
  %v427 = vunpack.c.l.b16 %v79
  %v428 = vunpack.c.l.b16 %v80
  %v429 = vunpack.c.l.b16 %v81
  %v430 = vunpack.c.l.b16 %v82
  %v431 = vunpack.c.l.b16 %v83
  %v432 = vunpack.c.l.b16 %v84
  %v433 = vunpack.c.l.b16 %v85
  %v434 = vunpack.c.l.b16 %v86
  %v435 = vunpack.c.l.b16 %v87
  %v436 = vunpack.c.l.b16 %v88
  %v437 = vunpack.c.l.b16 %v89
  %v438 = vunpack.c.l.b16 %v90
  %v439 = vunpack.c.l.b16 %v91
  %v440 = vunpack.c.l.b16 %v92
  %v441 = vunpack.c.l.b16 %v93
  %v442 = vunpack.c.l.b16 %v94
  %v443 = vunpack.c.l.b16 %v95
  %v444 = vunpack.c.l.b16 %v96
  %v445 = vunpack.c.l.b16 %v97
  %v446 = vunpack.c.l.b16 %v98
  %v447 = vunpack.c.l.b16 %v99
  %v448 = vunpack.c.l.b16 %v100
  %v449 = vunpack.c.l.b16 %v101
  %v450 = vunpack.c.l.b16 %v102
  %v451 = vunpack.c.l.b16 %v103
  %v452 = vunpack.c.l.b16 %v104
  %v453 = vunpack.c.l.b16 %v105
  %v454 = vunpack.c.l.b16 %v106
  %v455 = vunpack.c.l.b16 %v107
  %v456 = vunpack.c.l.b16 %v108
  %v457 = vunpack.c.l.b16 %v109
  %v458 = vunpack.c.l.b16 %v110
  %v459 = vunpack.c.l.b16 %v111
  %v460 = vunpack.c.l.b16 %v112
  %v461 = vunpack.c.l.b16 %v113
  %v462 = vunpack.c.l.b16 %v114
  %v463 = vunpack.c.l.b16 %v115
  %v464 = vunpack.c.l.b16 %v116
  %v465 = vunpack.c.l.b16 %v117
  %v466 = vunpack.c.l.b16 %v118
  %v467 = vunpack.c.l.b16 %v119
  %v468 = vunpack.c.l.b16 %v120
  %v469 = vunpack.c.l.b16 %v121
  %v470 = vunpack.c.l.b16 %v122
  %v471 = vunpack.c.l.b16 %v123
  %v472 = vunpack.c.l.b16 %v124
  %v473 = vunpack.c.l.b16 %v125
  %v474 = vunpack.c.l.b16 %v126
  %v475 = vunpack.c.l.b16 %v127
  %v476 = vunpack.c.l.b16 %v128
  %v477 = vunpack.c.l.b16 %v129
  %v478 = vunpack.c.l.b16 %v130
  %v479 = vunpack.c.l.b16 %v131
  %v480 = vunpack.c.l.b16 %v132
  %v481 = vunpack.c.l.b16 %v133
  %v482 = vunpack.c.l.b16 %v134
  %v483 = vpack.c.b16 %v412, %v411
  %v484 = vpack.c.b16 %v414, %v413
  %v485 = vpack.c.b16 %v416, %v415
  %v486 = vpack.c.b16 %v418, %v417
  %v487 = vpack.c.b16 %v420, %v419
  %v488 = vpack.c.b16 %v422, %v421
  %v489 = vpack.c.b16 %v424, %v423
  %v490 = vpack.c.b16 %v426, %v425
  %v491 = vpack.c.b16 %v428, %v427
  %v492 = vpack.c.b16 %v430, %v429
  %v493 = vpack.c.b16 %v432, %v431
  %v494 = vpack.c.b16 %v434, %v433
  %v495 = vpack.c.b16 %v436, %v435
  %v496 = vpack.c.b16 %v438, %v437
  %v497 = vpack.c.b16 %v440, %v439
  %v498 = vpack.c.b16 %v442, %v441
  %v499 = vpack.c.b16 %v444, %v443
  %v500 = vpack.c.b16 %v446, %v445
  %v501 = vpack.c.b16 %v448, %v447
  %v502 = vpack.c.b16 %v450, %v449
  %v503 = vpack.c.b16 %v452, %v451
  %v504 = vpack.c.b16 %v454, %v453
  %v505 = vpack.c.b16 %v456, %v455
  %v506 = vpack.c.b16 %v458, %v457
  %v507 = vpack.c.b16 %v460, %v459
  %v508 = vpack.c.b16 %v462, %v461
  %v509 = vpack.c.b16 %v464, %v463
  %v510 = vpack.c.b16 %v466, %v465
  %v511 = vpack.c.b16 %v468, %v467
  %v512 = vpack.c.b16 %v470, %v469
  %v513 = vpack.c.b16 %v472, %v471
  %v514 = vpack.c.b16 %v474, %v473
  %v515 = vpack.c.b16 %v476, %v475
  %v516 = vpack.c.b16 %v478, %v477
  %v517 = vpack.c.b16 %v480, %v479
  %v518 = vpack.c.b16 %v482, %v481
  %vm555 = vcmask 523264
  %v557 = vsel %vm555, %v271, 0
  %v560 = vsel %vm555, %v276, 0
  %v563 = vsel %vm555, %v281, 0
  %v566 = vsel %vm555, %v286, 0
  %v569 = vsel %vm555, %v291, 0
  %v572 = vsel %vm555, %v296, 0
  %v575 = vsel %vm555, %v301, 0
  %v578 = vsel %vm555, %v306, 0
  %580 = vmatpush.bf16.msra.mxu0 %v490
  %581 = vmatpush.bf16.msra.mxu0 %v489
  %582 = vmatpush.bf16.msra.mxu0 %v488
  %583 = vmatpush.bf16.msra.mxu0 %v487
  %584 = vmatpush.bf16.msra.mxu0 %v486
  %585 = vmatpush.bf16.msra.mxu0 %v485
  %586 = vmatpush.bf16.msra.mxu0 %v484
  %587 = vmatpush.bf16.msra.mxu0 %v483
  %588 = vmatmul.bf16.gmra.mxu0 %v267
  %v589 = vpop.f32.mrf.mxu0
  %v590 = vadd.f32 %v137, %v589
  %v591 = vpop.f32.mrf.mxu0
  %v592 = vadd.f32 %v137, %v591
  %593 = vmatmul.bf16.gmra.mxu0 %v272
  %v594 = vpop.f32.mrf.mxu0
  %v595 = vadd.f32 %v137, %v594
  %v596 = vpop.f32.mrf.mxu0
  %v597 = vadd.f32 %v137, %v596
  %598 = vmatmul.bf16.gmra.mxu0 %v277
  %v599 = vpop.f32.mrf.mxu0
  %v600 = vadd.f32 %v137, %v599
  %v601 = vpop.f32.mrf.mxu0
  %v602 = vadd.f32 %v137, %v601
  %603 = vmatmul.bf16.gmra.mxu0 %v282
  %v604 = vpop.f32.mrf.mxu0
  %v605 = vadd.f32 %v137, %v604
  %v606 = vpop.f32.mrf.mxu0
  %v607 = vadd.f32 %v137, %v606
  %608 = vmatmul.bf16.gmra.mxu0 %v287
  %v609 = vpop.f32.mrf.mxu0
  %v610 = vadd.f32 %v137, %v609
  %v611 = vpop.f32.mrf.mxu0
  %v612 = vadd.f32 %v137, %v611
  %613 = vmatmul.bf16.gmra.mxu0 %v292
  %v614 = vpop.f32.mrf.mxu0
  %v615 = vadd.f32 %v137, %v614
  %v616 = vpop.f32.mrf.mxu0
  %v617 = vadd.f32 %v137, %v616
  %618 = vmatmul.bf16.gmra.mxu0 %v297
  %v619 = vpop.f32.mrf.mxu0
  %v620 = vadd.f32 %v137, %v619
  %v621 = vpop.f32.mrf.mxu0
  %v622 = vadd.f32 %v137, %v621
  %623 = vmatmul.bf16.gmra.mxu0 %v302
  %v624 = vpop.f32.mrf.mxu0
  %v625 = vadd.f32 %v137, %v624
  %v626 = vpop.f32.mrf.mxu0
  %v627 = vadd.f32 %v137, %v626
  %628 = vdwg.mxu0
  %629 = vmatpush.bf16.msra.mxu0 %v498
  %630 = vmatpush.bf16.msra.mxu0 %v497
  %631 = vmatpush.bf16.msra.mxu0 %v496
  %632 = vmatpush.bf16.msra.mxu0 %v495
  %633 = vmatpush.bf16.msra.mxu0 %v494
  %634 = vmatpush.bf16.msra.mxu0 %v493
  %635 = vmatpush.bf16.msra.mxu0 %v492
  %636 = vmatpush.bf16.msra.mxu0 %v491
  %637 = vmatmul.bf16.gmra.mxu0 %v268
  %v638 = vpop.f32.mrf.mxu0
  %v639 = vadd.f32 %v590, %v638
  %v640 = vpop.f32.mrf.mxu0
  %v641 = vadd.f32 %v592, %v640
  %642 = vmatmul.bf16.gmra.mxu0 %v273
  %v643 = vpop.f32.mrf.mxu0
  %v644 = vadd.f32 %v595, %v643
  %v645 = vpop.f32.mrf.mxu0
  %v646 = vadd.f32 %v597, %v645
  %647 = vmatmul.bf16.gmra.mxu0 %v278
  %v648 = vpop.f32.mrf.mxu0
  %v649 = vadd.f32 %v600, %v648
  %v650 = vpop.f32.mrf.mxu0
  %v651 = vadd.f32 %v602, %v650
  %652 = vmatmul.bf16.gmra.mxu0 %v283
  %v653 = vpop.f32.mrf.mxu0
  %v654 = vadd.f32 %v605, %v653
  %v655 = vpop.f32.mrf.mxu0
  %v656 = vadd.f32 %v607, %v655
  %657 = vmatmul.bf16.gmra.mxu0 %v288
  %v658 = vpop.f32.mrf.mxu0
  %v659 = vadd.f32 %v610, %v658
  %v660 = vpop.f32.mrf.mxu0
  %v661 = vadd.f32 %v612, %v660
  %662 = vmatmul.bf16.gmra.mxu0 %v293
  %v663 = vpop.f32.mrf.mxu0
  %v664 = vadd.f32 %v615, %v663
  %v665 = vpop.f32.mrf.mxu0
  %v666 = vadd.f32 %v617, %v665
  %667 = vmatmul.bf16.gmra.mxu0 %v298
  %v668 = vpop.f32.mrf.mxu0
  %v669 = vadd.f32 %v620, %v668
  %v670 = vpop.f32.mrf.mxu0
  %v671 = vadd.f32 %v622, %v670
  %672 = vmatmul.bf16.gmra.mxu0 %v303
  %v673 = vpop.f32.mrf.mxu0
  %v674 = vadd.f32 %v625, %v673
  %v675 = vpop.f32.mrf.mxu0
  %v676 = vadd.f32 %v627, %v675
  %677 = vdwg.mxu0
  %678 = vmatpush.bf16.msra.mxu0 %v506
  %679 = vmatpush.bf16.msra.mxu0 %v505
  %680 = vmatpush.bf16.msra.mxu0 %v504
  %681 = vmatpush.bf16.msra.mxu0 %v503
  %682 = vmatpush.bf16.msra.mxu0 %v502
  %683 = vmatpush.bf16.msra.mxu0 %v501
  %684 = vmatpush.bf16.msra.mxu0 %v500
  %685 = vmatpush.bf16.msra.mxu0 %v499
  %686 = vmatmul.bf16.gmra.mxu0 %v269
  %v687 = vpop.f32.mrf.mxu0
  %v688 = vadd.f32 %v639, %v687
  %v689 = vpop.f32.mrf.mxu0
  %v690 = vadd.f32 %v641, %v689
  %691 = vmatmul.bf16.gmra.mxu0 %v274
  %v692 = vpop.f32.mrf.mxu0
  %v693 = vadd.f32 %v644, %v692
  %v694 = vpop.f32.mrf.mxu0
  %v695 = vadd.f32 %v646, %v694
  %696 = vmatmul.bf16.gmra.mxu0 %v279
  %v697 = vpop.f32.mrf.mxu0
  %v698 = vadd.f32 %v649, %v697
  %v699 = vpop.f32.mrf.mxu0
  %v700 = vadd.f32 %v651, %v699
  %701 = vmatmul.bf16.gmra.mxu0 %v284
  %v702 = vpop.f32.mrf.mxu0
  %v703 = vadd.f32 %v654, %v702
  %v704 = vpop.f32.mrf.mxu0
  %v705 = vadd.f32 %v656, %v704
  %706 = vmatmul.bf16.gmra.mxu0 %v289
  %v707 = vpop.f32.mrf.mxu0
  %v708 = vadd.f32 %v659, %v707
  %v709 = vpop.f32.mrf.mxu0
  %v710 = vadd.f32 %v661, %v709
  %711 = vmatmul.bf16.gmra.mxu0 %v294
  %v712 = vpop.f32.mrf.mxu0
  %v713 = vadd.f32 %v664, %v712
  %v714 = vpop.f32.mrf.mxu0
  %v715 = vadd.f32 %v666, %v714
  %716 = vmatmul.bf16.gmra.mxu0 %v299
  %v717 = vpop.f32.mrf.mxu0
  %v718 = vadd.f32 %v669, %v717
  %v719 = vpop.f32.mrf.mxu0
  %v720 = vadd.f32 %v671, %v719
  %721 = vmatmul.bf16.gmra.mxu0 %v304
  %v722 = vpop.f32.mrf.mxu0
  %v723 = vadd.f32 %v674, %v722
  %v724 = vpop.f32.mrf.mxu0
  %v725 = vadd.f32 %v676, %v724
  %726 = vdwg.mxu0
  %727 = vmatpush.bf16.msra.mxu0 %v514
  %728 = vmatpush.bf16.msra.mxu0 %v513
  %729 = vmatpush.bf16.msra.mxu0 %v512
  %730 = vmatpush.bf16.msra.mxu0 %v511
  %731 = vmatpush.bf16.msra.mxu0 %v510
  %732 = vmatpush.bf16.msra.mxu0 %v509
  %733 = vmatpush.bf16.msra.mxu0 %v508
  %734 = vmatpush.bf16.msra.mxu0 %v507
  %735 = vmatmul.bf16.gmra.mxu0 %v270
  %v736 = vpop.f32.mrf.mxu0
  %v737 = vadd.f32 %v688, %v736
  %v738 = vpop.f32.mrf.mxu0
  %v739 = vadd.f32 %v690, %v738
  %740 = vmatmul.bf16.gmra.mxu0 %v275
  %v741 = vpop.f32.mrf.mxu0
  %v742 = vadd.f32 %v693, %v741
  %v743 = vpop.f32.mrf.mxu0
  %v744 = vadd.f32 %v695, %v743
  %745 = vmatmul.bf16.gmra.mxu0 %v280
  %v746 = vpop.f32.mrf.mxu0
  %v747 = vadd.f32 %v698, %v746
  %v748 = vpop.f32.mrf.mxu0
  %v749 = vadd.f32 %v700, %v748
  %750 = vmatmul.bf16.gmra.mxu0 %v285
  %v751 = vpop.f32.mrf.mxu0
  %v752 = vadd.f32 %v703, %v751
  %v753 = vpop.f32.mrf.mxu0
  %v754 = vadd.f32 %v705, %v753
  %755 = vmatmul.bf16.gmra.mxu0 %v290
  %v756 = vpop.f32.mrf.mxu0
  %v757 = vadd.f32 %v708, %v756
  %v758 = vpop.f32.mrf.mxu0
  %v759 = vadd.f32 %v710, %v758
  %760 = vmatmul.bf16.gmra.mxu0 %v295
  %v761 = vpop.f32.mrf.mxu0
  %v762 = vadd.f32 %v713, %v761
  %v763 = vpop.f32.mrf.mxu0
  %v764 = vadd.f32 %v715, %v763
  %765 = vmatmul.bf16.gmra.mxu0 %v300
  %v766 = vpop.f32.mrf.mxu0
  %v767 = vadd.f32 %v718, %v766
  %v768 = vpop.f32.mrf.mxu0
  %v769 = vadd.f32 %v720, %v768
  %770 = vmatmul.bf16.gmra.mxu0 %v305
  %v771 = vpop.f32.mrf.mxu0
  %v772 = vadd.f32 %v723, %v771
  %v773 = vpop.f32.mrf.mxu0
  %v774 = vadd.f32 %v725, %v773
  %775 = vdwg.mxu0
  %776 = vmatpush.bf16.msra.mxu0 0
  %777 = vmatpush.bf16.msra.mxu0 0
  %778 = vmatpush.bf16.msra.mxu0 0
  %779 = vmatpush.bf16.msra.mxu0 0
  %780 = vmatpush.bf16.msra.mxu0 %v518
  %781 = vmatpush.bf16.msra.mxu0 %v517
  %782 = vmatpush.bf16.msra.mxu0 %v516
  %783 = vmatpush.bf16.msra.mxu0 %v515
  %784 = vmatmul.bf16.gmra.mxu0 %v557
  %v785 = vpop.f32.mrf.mxu0
  %v786 = vadd.f32 %v737, %v785
  %v787 = vpop.f32.mrf.mxu0
  %v788 = vadd.f32 %v739, %v787
  %789 = vmatmul.bf16.gmra.mxu0 %v560
  %v790 = vpop.f32.mrf.mxu0
  %v791 = vadd.f32 %v742, %v790
  %v792 = vpop.f32.mrf.mxu0
  %v793 = vadd.f32 %v744, %v792
  %794 = vmatmul.bf16.gmra.mxu0 %v563
  %v795 = vpop.f32.mrf.mxu0
  %v796 = vadd.f32 %v747, %v795
  %v797 = vpop.f32.mrf.mxu0
  %v798 = vadd.f32 %v749, %v797
  %799 = vmatmul.bf16.gmra.mxu0 %v566
  %v800 = vpop.f32.mrf.mxu0
  %v801 = vadd.f32 %v752, %v800
  %v802 = vpop.f32.mrf.mxu0
  %v803 = vadd.f32 %v754, %v802
  %804 = vmatmul.bf16.gmra.mxu0 %v569
  %v805 = vpop.f32.mrf.mxu0
  %v806 = vadd.f32 %v757, %v805
  %v807 = vpop.f32.mrf.mxu0
  %v808 = vadd.f32 %v759, %v807
  %809 = vmatmul.bf16.gmra.mxu0 %v572
  %v810 = vpop.f32.mrf.mxu0
  %v811 = vadd.f32 %v762, %v810
  %v812 = vpop.f32.mrf.mxu0
  %v813 = vadd.f32 %v764, %v812
  %814 = vmatmul.bf16.gmra.mxu0 %v575
  %v815 = vpop.f32.mrf.mxu0
  %v816 = vadd.f32 %v767, %v815
  %v817 = vpop.f32.mrf.mxu0
  %v818 = vadd.f32 %v769, %v817
  %819 = vmatmul.bf16.gmra.mxu0 %v578
  %v820 = vpop.f32.mrf.mxu0
  %v821 = vadd.f32 %v772, %v820
  %v822 = vpop.f32.mrf.mxu0
  %v823 = vadd.f32 %v774, %v822
  %824 = vdwg.mxu0
  %v825 = vmax.f32 %v786, 0.0
  %v826 = vmax.f32 %v788, 0.0
  %v827 = vmax.f32 %v791, 0.0
  %v828 = vmax.f32 %v793, 0.0
  %v829 = vmax.f32 %v796, 0.0
  %v830 = vmax.f32 %v798, 0.0
  %v831 = vmax.f32 %v801, 0.0
  %v832 = vmax.f32 %v803, 0.0
  %v833 = vmax.f32 %v806, 0.0
  %v834 = vmax.f32 %v808, 0.0
  %v835 = vmax.f32 %v811, 0.0
  %v836 = vmax.f32 %v813, 0.0
  %v837 = vmax.f32 %v816, 0.0
  %v838 = vmax.f32 %v818, 0.0
  %v839 = vmax.f32 %v821, 0.0
  %v840 = vmax.f32 %v823, 0.0
  %v841 = vpack.c.bf16 %v825, %v825
  %v842 = vpack.c.bf16 %v826, %v826
  %v843 = vpack.c.bf16 %v827, %v827
  %v844 = vpack.c.bf16 %v828, %v828
  %v845 = vpack.c.bf16 %v829, %v829
  %v846 = vpack.c.bf16 %v830, %v830
  %v847 = vpack.c.bf16 %v831, %v831
  %v848 = vpack.c.bf16 %v832, %v832
  %v849 = vpack.c.bf16 %v833, %v833
  %v850 = vpack.c.bf16 %v834, %v834
  %v851 = vpack.c.bf16 %v835, %v835
  %v852 = vpack.c.bf16 %v836, %v836
  %v853 = vpack.c.bf16 %v837, %v837
  %v854 = vpack.c.bf16 %v838, %v838
  %v855 = vpack.c.bf16 %v839, %v839
  %v856 = vpack.c.bf16 %v840, %v840
  %vm857 = vcmask 519168
  %858 = vst.msk [vmem:[%s3] sm:$0xf] %vm857, %v841
  %859 = vst.msk [vmem:[%s3 + $0x4] sm:$0xf] %vm857, %v842
  %860 = vst.msk [vmem:[%s3 + $0x8] sm:$0xf] %vm857, %v843
  %861 = vst.msk [vmem:[%s3 + $0xc] sm:$0xf] %vm857, %v844
  %862 = vst.msk [vmem:[%s3 + $0x10] sm:$0xf] %vm857, %v845
  %863 = vst.msk [vmem:[%s3 + $0x14] sm:$0xf] %vm857, %v846
  %864 = vst.msk [vmem:[%s3 + $0x18] sm:$0xf] %vm857, %v847
  %865 = vst.msk [vmem:[%s3 + $0x1c] sm:$0xf] %vm857, %v848
  %866 = vst.msk [vmem:[%s3 + $0x20] sm:$0xf] %vm857, %v849
  %867 = vst.msk [vmem:[%s3 + $0x24] sm:$0xf] %vm857, %v850
  %868 = vst.msk [vmem:[%s3 + $0x28] sm:$0xf] %vm857, %v851
  %869 = vst.msk [vmem:[%s3 + $0x2c] sm:$0xf] %vm857, %v852
  %870 = vst.msk [vmem:[%s3 + $0x30] sm:$0xf] %vm857, %v853
  %871 = vst.msk [vmem:[%s3 + $0x34] sm:$0xf] %vm857, %v854
  %872 = vst.msk [vmem:[%s3 + $0x38] sm:$0xf] %vm857, %v855
  %873 = vst.msk [vmem:[%s3 + $0x3c] sm:$0xf] %vm857, %v856
  // Predicated region
  $region14: #{ash_resnet18_forward.11} parent=0 // pred_check
    _
  $region15: #{ash_resnet18_forward.11} parent=0 // pred_check_branch
    %875 = sbr.rel (0) target = $region17
  $region16: #{ash_resnet18_forward.11} parent=0 // pred_region
    _
  $region17: #{ash_resnet18_forward.11} parent=0 // pred_fallthru
    _
  // Predicated region
  $region18: #{ash_resnet18_forward.11} parent=0 // pred_check
    _
  $region19: #{ash_resnet18_forward.11} parent=0 // pred_check_branch
    %877 = sbr.rel (0) target = $region21
  $region20: #{ash_resnet18_forward.11} parent=0 // pred_region
    _
  $region21: #{ash_resnet18_forward.11} parent=0 // pred_fallthru
    _

// kernel: ash_resnet18_forward.12
$region0: #{ash_resnet18_forward.12}
  #allocation0 [shape = 'u32[]', space=smem, size = 0x4, offset = 0x4, fixed_abs, tag = 'smem constant byte address 0x4 - core index']
  #allocation1 [shape = 'u32[72,128]{1,0:T(1,128)}', space=vmem, size = 0x9000, scoped, tag = 'internal scratch']
  %s0 = inlined_call_operand.vmem [shape: bf16[128,576], index: 0, kind: input, shape index: {}]
  %s1 = inlined_call_operand.vmem [shape: bf16[576,64], index: 1, kind: input, shape index: {}]
  %s2 = inlined_call_operand.vmem [shape: f32[1,64], index: 2, kind: input, shape index: {}]
  %s3 = inlined_call_operand.vmem [shape: bf16[128,64], index: 3, kind: input, shape index: {}]
  %s4 = inlined_call_operand.vmem [shape: bf16[128,64], index: 4, kind: output, shape index: {}]
  %s5 = sld [smem:[#allocation0]]
  $region26: #{ash_resnet18_forward.12} parent=0
    _
  %s7 = ssub.s32 1, %s5
  %s8 = scalar_select 0, %s7, %s5
  // Predicated region
  $region2: #{ash_resnet18_forward.12} parent=0 // pred_check
    _
  $region3: #{ash_resnet18_forward.12} parent=0 // pred_check_branch
    %10 = sbr.rel (0) target = $region5
  $region4: #{ash_resnet18_forward.12} parent=0 // pred_region
    _
  $region5: #{ash_resnet18_forward.12} parent=0 // pred_fallthru
    _
  // Predicated region
  $region6: #{ash_resnet18_forward.12} parent=0 // pred_check
    _
  $region7: #{ash_resnet18_forward.12} parent=0 // pred_check_branch
    %12 = sbr.rel (0) target = $region9
  $region8: #{ash_resnet18_forward.12} parent=0 // pred_region
    _
  $region9: #{ash_resnet18_forward.12} parent=0 // pred_fallthru
    _
  // Predicated region
  $region10: #{ash_resnet18_forward.12} parent=0 // pred_check
    _
  $region11: #{ash_resnet18_forward.12} parent=0 // pred_check_branch
    %14 = sbr.rel (0) target = $region13
  $region12: #{ash_resnet18_forward.12} parent=0 // pred_region
    _
  $region13: #{ash_resnet18_forward.12} parent=0 // pred_fallthru
    _
  // Predicated region
  $region14: #{ash_resnet18_forward.12} parent=0 // pred_check
    _
  $region15: #{ash_resnet18_forward.12} parent=0 // pred_check_branch
    %16 = sbr.rel (0) target = $region17
  $region16: #{ash_resnet18_forward.12} parent=0 // pred_region
    _
  $region17: #{ash_resnet18_forward.12} parent=0 // pred_fallthru
    _
  %v18 = vld [vmem:[%s0] sm:$0xff]
  %v19 = vld [vmem:[%s0 + $0x8] sm:$0xff]
  %v20 = vld [vmem:[%s0 + $0x10] sm:$0xf]
  %v21 = vld [vmem:[%s0 + $0x14] sm:$0xff]
  %v22 = vld [vmem:[%s0 + $0x1c] sm:$0xff]
  %v23 = vld [vmem:[%s0 + $0x24] sm:$0xf]
  %v24 = vld [vmem:[%s0 + $0x28] sm:$0xff]
  %v25 = vld [vmem:[%s0 + $0x30] sm:$0xff]
  %v26 = vld [vmem:[%s0 + $0x38] sm:$0xf]
  %v27 = vld [vmem:[%s0 + $0x3c] sm:$0xff]
  %v28 = vld [vmem:[%s0 + $0x44] sm:$0xff]
  %v29 = vld [vmem:[%s0 + $0x4c] sm:$0xf]
  %v30 = vld [vmem:[%s0 + $0x50] sm:$0xff]
  %v31 = vld [vmem:[%s0 + $0x58] sm:$0xff]
  %v32 = vld [vmem:[%s0 + $0x60] sm:$0xf]
  %v33 = vld [vmem:[%s0 + $0x64] sm:$0xff]
  %v34 = vld [vmem:[%s0 + $0x6c] sm:$0xff]
  %v35 = vld [vmem:[%s0 + $0x74] sm:$0xf]
  %v36 = vld [vmem:[%s0 + $0x78] sm:$0xff]
  %v37 = vld [vmem:[%s0 + $0x80] sm:$0xff]
  %v38 = vld [vmem:[%s0 + $0x88] sm:$0xf]
  %v39 = vld [vmem:[%s0 + $0x8c] sm:$0xff]
  %v40 = vld [vmem:[%s0 + $0x94] sm:$0xff]
  %v41 = vld [vmem:[%s0 + $0x9c] sm:$0xf]
  %v42 = vld [vmem:[%s0 + $0xa0] sm:$0xff]
  %v43 = vld [vmem:[%s0 + $0xa8] sm:$0xff]
  %v44 = vld [vmem:[%s0 + $0xb0] sm:$0xf]
  %v45 = vld [vmem:[%s0 + $0xb4] sm:$0xff]
  %v46 = vld [vmem:[%s0 + $0xbc] sm:$0xff]
  %v47 = vld [vmem:[%s0 + $0xc4] sm:$0xf]
  %v48 = vld [vmem:[%s0 + $0xc8] sm:$0xff]
  %v49 = vld [vmem:[%s0 + $0xd0] sm:$0xff]
  %v50 = vld [vmem:[%s0 + $0xd8] sm:$0xf]
  %v51 = vld [vmem:[%s0 + $0xdc] sm:$0xff]
  %v52 = vld [vmem:[%s0 + $0xe4] sm:$0xff]
  %v53 = vld [vmem:[%s0 + $0xec] sm:$0xf]
  %v54 = vld [vmem:[%s0 + $0xf0] sm:$0xff]
  %v55 = vld [vmem:[%s0 + $0xf8] sm:$0xff]
  %v56 = vld [vmem:[%s0 + $0x100] sm:$0xf]
  %v57 = vld [vmem:[%s0 + $0x104] sm:$0xff]
  %v58 = vld [vmem:[%s0 + $0x10c] sm:$0xff]
  %v59 = vld [vmem:[%s0 + $0x114] sm:$0xf]
  %v60 = vld [vmem:[%s0 + $0x118] sm:$0xff]
  %v61 = vld [vmem:[%s0 + $0x120] sm:$0xff]
  %v62 = vld [vmem:[%s0 + $0x128] sm:$0xf]
  %v63 = vld [vmem:[%s0 + $0x12c] sm:$0xff]
  %v64 = vld [vmem:[%s0 + $0x134] sm:$0xff]
  %v65 = vld [vmem:[%s0 + $0x13c] sm:$0xf]
  %v66 = vld [vmem:[%s1] sm:$0xf]
  %v67 = vld [vmem:[%s1 + $0x4] sm:$0xf]
  %v68 = vld [vmem:[%s1 + $0x8] sm:$0xf]
  %v69 = vld [vmem:[%s1 + $0xc] sm:$0xf]
  %v70 = vld [vmem:[%s1 + $0x10] sm:$0xf]
  %v71 = vld [vmem:[%s1 + $0x14] sm:$0xf]
  %v72 = vld [vmem:[%s1 + $0x18] sm:$0xf]
  %v73 = vld [vmem:[%s1 + $0x1c] sm:$0xf]
  %v74 = vld [vmem:[%s1 + $0x20] sm:$0xf]
  %v75 = vld [vmem:[%s1 + $0x24] sm:$0xf]
  %v76 = vld [vmem:[%s1 + $0x28] sm:$0xf]
  %v77 = vld [vmem:[%s1 + $0x2c] sm:$0xf]
  %v78 = vld [vmem:[%s1 + $0x30] sm:$0xf]
  %v79 = vld [vmem:[%s1 + $0x34] sm:$0xf]
  %v80 = vld [vmem:[%s1 + $0x38] sm:$0xf]
  %v81 = vld [vmem:[%s1 + $0x3c] sm:$0xf]
  %v82 = vld [vmem:[%s1 + $0x40] sm:$0xf]
  %v83 = vld [vmem:[%s1 + $0x44] sm:$0xf]
  %v84 = vld [vmem:[%s1 + $0x48] sm:$0xf]
  %v85 = vld [vmem:[%s1 + $0x4c] sm:$0xf]
  %v86 = vld [vmem:[%s1 + $0x50] sm:$0xf]
  %v87 = vld [vmem:[%s1 + $0x54] sm:$0xf]
  %v88 = vld [vmem:[%s1 + $0x58] sm:$0xf]
  %v89 = vld [vmem:[%s1 + $0x5c] sm:$0xf]
  %v90 = vld [vmem:[%s1 + $0x60] sm:$0xf]
  %v91 = vld [vmem:[%s1 + $0x64] sm:$0xf]
  %v92 = vld [vmem:[%s1 + $0x68] sm:$0xf]
  %v93 = vld [vmem:[%s1 + $0x6c] sm:$0xf]
  %v94 = vld [vmem:[%s1 + $0x70] sm:$0xf]
  %v95 = vld [vmem:[%s1 + $0x74] sm:$0xf]
  %v96 = vld [vmem:[%s1 + $0x78] sm:$0xf]
  %v97 = vld [vmem:[%s1 + $0x7c] sm:$0xf]
  %v98 = vld [vmem:[%s1 + $0x80] sm:$0xf]
  %v99 = vld [vmem:[%s1 + $0x84] sm:$0xf]
  %v100 = vld [vmem:[%s1 + $0x88] sm:$0xf]
  %v101 = vld [vmem:[%s1 + $0x8c] sm:$0xf]
  %v102 = vld [vmem:[%s1 + $0x90] sm:$0xf]
  %v103 = vld [vmem:[%s1 + $0x94] sm:$0xf]
  %v104 = vld [vmem:[%s1 + $0x98] sm:$0xf]
  %v105 = vld [vmem:[%s1 + $0x9c] sm:$0xf]
  %v106 = vld [vmem:[%s1 + $0xa0] sm:$0xf]
  %v107 = vld [vmem:[%s1 + $0xa4] sm:$0xf]
  %v108 = vld [vmem:[%s1 + $0xa8] sm:$0xf]
  %v109 = vld [vmem:[%s1 + $0xac] sm:$0xf]
  %v110 = vld [vmem:[%s1 + $0xb0] sm:$0xf]
  %v111 = vld [vmem:[%s1 + $0xb4] sm:$0xf]
  %v112 = vld [vmem:[%s1 + $0xb8] sm:$0xf]
  %v113 = vld [vmem:[%s1 + $0xbc] sm:$0xf]
  %v114 = vld [vmem:[%s1 + $0xc0] sm:$0xf]
  %v115 = vld [vmem:[%s1 + $0xc4] sm:$0xf]
  %v116 = vld [vmem:[%s1 + $0xc8] sm:$0xf]
  %v117 = vld [vmem:[%s1 + $0xcc] sm:$0xf]
  %v118 = vld [vmem:[%s1 + $0xd0] sm:$0xf]
  %v119 = vld [vmem:[%s1 + $0xd4] sm:$0xf]
  %v120 = vld [vmem:[%s1 + $0xd8] sm:$0xf]
  %v121 = vld [vmem:[%s1 + $0xdc] sm:$0xf]
  %v122 = vld [vmem:[%s1 + $0xe0] sm:$0xf]
  %v123 = vld [vmem:[%s1 + $0xe4] sm:$0xf]
  %v124 = vld [vmem:[%s1 + $0xe8] sm:$0xf]
  %v125 = vld [vmem:[%s1 + $0xec] sm:$0xf]
  %v126 = vld [vmem:[%s1 + $0xf0] sm:$0xf]
  %v127 = vld [vmem:[%s1 + $0xf4] sm:$0xf]
  %v128 = vld [vmem:[%s1 + $0xf8] sm:$0xf]
  %v129 = vld [vmem:[%s1 + $0xfc] sm:$0xf]
  %v130 = vld [vmem:[%s1 + $0x100] sm:$0xf]
  %v131 = vld [vmem:[%s1 + $0x104] sm:$0xf]
  %v132 = vld [vmem:[%s1 + $0x108] sm:$0xf]
  %v133 = vld [vmem:[%s1 + $0x10c] sm:$0xf]
  %v134 = vld [vmem:[%s1 + $0x110] sm:$0xf]
  %v135 = vld [vmem:[%s1 + $0x114] sm:$0xf]
  %v136 = vld [vmem:[%s1 + $0x118] sm:$0xf]
  %v137 = vld [vmem:[%s1 + $0x11c] sm:$0xf]
  %v138 = vld [vmem:[%s2] sm:$0x1]
  %v140 = vperm.slane %v138, 0
  %v190 = vunpack.c.l.b16 %v18
  %v191 = vunpack.c.h.b16 %v18
  %v192 = vunpack.c.l.b16 %v19
  %v193 = vunpack.c.h.b16 %v19
  %v194 = vunpack.c.l.b16 %v20
  %v195 = vunpack.c.l.b16 %v21
  %v196 = vunpack.c.h.b16 %v21
  %v197 = vunpack.c.l.b16 %v22
  %v198 = vunpack.c.h.b16 %v22
  %v199 = vunpack.c.l.b16 %v23
  %v200 = vunpack.c.l.b16 %v24
  %v201 = vunpack.c.h.b16 %v24
  %v202 = vunpack.c.l.b16 %v25
  %v203 = vunpack.c.h.b16 %v25
  %v204 = vunpack.c.l.b16 %v26
  %v205 = vunpack.c.l.b16 %v27
  %v206 = vunpack.c.h.b16 %v27
  %v207 = vunpack.c.l.b16 %v28
  %v208 = vunpack.c.h.b16 %v28
  %v209 = vunpack.c.l.b16 %v29
  %v210 = vunpack.c.l.b16 %v30
  %v211 = vunpack.c.h.b16 %v30
  %v212 = vunpack.c.l.b16 %v31
  %v213 = vunpack.c.h.b16 %v31
  %v214 = vunpack.c.l.b16 %v32
  %v215 = vunpack.c.l.b16 %v33
  %v216 = vunpack.c.h.b16 %v33
  %v217 = vunpack.c.l.b16 %v34
  %v218 = vunpack.c.h.b16 %v34
  %v219 = vunpack.c.l.b16 %v35
  %v220 = vunpack.c.l.b16 %v36
  %v221 = vunpack.c.h.b16 %v36
  %v222 = vunpack.c.l.b16 %v37
  %v223 = vunpack.c.h.b16 %v37
  %v224 = vunpack.c.l.b16 %v38
  %v225 = vunpack.c.l.b16 %v39
  %v226 = vunpack.c.h.b16 %v39
  %v227 = vunpack.c.l.b16 %v40
  %v228 = vunpack.c.h.b16 %v40
  %v229 = vunpack.c.l.b16 %v41
  %v230 = vunpack.c.l.b16 %v42
  %v231 = vunpack.c.h.b16 %v42
  %v232 = vunpack.c.l.b16 %v43
  %v233 = vunpack.c.h.b16 %v43
  %v234 = vunpack.c.l.b16 %v44
  %v235 = vunpack.c.l.b16 %v45
  %v236 = vunpack.c.h.b16 %v45
  %v237 = vunpack.c.l.b16 %v46
  %v238 = vunpack.c.h.b16 %v46
  %v239 = vunpack.c.l.b16 %v47
  %v240 = vunpack.c.l.b16 %v48
  %v241 = vunpack.c.h.b16 %v48
  %v242 = vunpack.c.l.b16 %v49
  %v243 = vunpack.c.h.b16 %v49
  %v244 = vunpack.c.l.b16 %v50
  %v245 = vunpack.c.l.b16 %v51
  %v246 = vunpack.c.h.b16 %v51
  %v247 = vunpack.c.l.b16 %v52
  %v248 = vunpack.c.h.b16 %v52
  %v249 = vunpack.c.l.b16 %v53
  %v250 = vunpack.c.l.b16 %v54
  %v251 = vunpack.c.h.b16 %v54
  %v252 = vunpack.c.l.b16 %v55
  %v253 = vunpack.c.h.b16 %v55
  %v254 = vunpack.c.l.b16 %v56
  %v255 = vunpack.c.l.b16 %v57
  %v256 = vunpack.c.h.b16 %v57
  %v257 = vunpack.c.l.b16 %v58
  %v258 = vunpack.c.h.b16 %v58
  %v259 = vunpack.c.l.b16 %v59
  %v260 = vunpack.c.l.b16 %v60
  %v261 = vunpack.c.h.b16 %v60
  %v262 = vunpack.c.l.b16 %v61
  %v263 = vunpack.c.h.b16 %v61
  %v264 = vunpack.c.l.b16 %v62
  %v265 = vunpack.c.l.b16 %v63
  %v266 = vunpack.c.h.b16 %v63
  %v267 = vunpack.c.l.b16 %v64
  %v268 = vunpack.c.h.b16 %v64
  %v269 = vunpack.c.l.b16 %v65
  %v270 = vpack.c.b16 %v195, %v190
  %v271 = vpack.c.b16 %v196, %v191
  %v272 = vpack.c.b16 %v197, %v192
  %v273 = vpack.c.b16 %v198, %v193
  %v274 = vpack.c.b16 %v199, %v194
  %v275 = vpack.c.b16 %v205, %v200
  %v276 = vpack.c.b16 %v206, %v201
  %v277 = vpack.c.b16 %v207, %v202
  %v278 = vpack.c.b16 %v208, %v203
  %v279 = vpack.c.b16 %v209, %v204
  %v280 = vpack.c.b16 %v215, %v210
  %v281 = vpack.c.b16 %v216, %v211
  %v282 = vpack.c.b16 %v217, %v212
  %v283 = vpack.c.b16 %v218, %v213
  %v284 = vpack.c.b16 %v219, %v214
  %v285 = vpack.c.b16 %v225, %v220
  %v286 = vpack.c.b16 %v226, %v221
  %v287 = vpack.c.b16 %v227, %v222
  %v288 = vpack.c.b16 %v228, %v223
  %v289 = vpack.c.b16 %v229, %v224
  %v290 = vpack.c.b16 %v235, %v230
  %v291 = vpack.c.b16 %v236, %v231
  %v292 = vpack.c.b16 %v237, %v232
  %v293 = vpack.c.b16 %v238, %v233
  %v294 = vpack.c.b16 %v239, %v234
  %v295 = vpack.c.b16 %v245, %v240
  %v296 = vpack.c.b16 %v246, %v241
  %v297 = vpack.c.b16 %v247, %v242
  %v298 = vpack.c.b16 %v248, %v243
  %v299 = vpack.c.b16 %v249, %v244
  %v300 = vpack.c.b16 %v255, %v250
  %v301 = vpack.c.b16 %v256, %v251
  %v302 = vpack.c.b16 %v257, %v252
  %v303 = vpack.c.b16 %v258, %v253
  %v304 = vpack.c.b16 %v259, %v254
  %v305 = vpack.c.b16 %v265, %v260
  %v306 = vpack.c.b16 %v266, %v261
  %v307 = vpack.c.b16 %v267, %v262
  %v308 = vpack.c.b16 %v268, %v263
  %v309 = vpack.c.b16 %v269, %v264
  %v414 = vunpack.c.l.b16 %v66
  %v415 = vunpack.c.l.b16 %v67
  %v416 = vunpack.c.l.b16 %v68
  %v417 = vunpack.c.l.b16 %v69
  %v418 = vunpack.c.l.b16 %v70
  %v419 = vunpack.c.l.b16 %v71
  %v420 = vunpack.c.l.b16 %v72
  %v421 = vunpack.c.l.b16 %v73
  %v422 = vunpack.c.l.b16 %v74
  %v423 = vunpack.c.l.b16 %v75
  %v424 = vunpack.c.l.b16 %v76
  %v425 = vunpack.c.l.b16 %v77
  %v426 = vunpack.c.l.b16 %v78
  %v427 = vunpack.c.l.b16 %v79
  %v428 = vunpack.c.l.b16 %v80
  %v429 = vunpack.c.l.b16 %v81
  %v430 = vunpack.c.l.b16 %v82
  %v431 = vunpack.c.l.b16 %v83
  %v432 = vunpack.c.l.b16 %v84
  %v433 = vunpack.c.l.b16 %v85
  %v434 = vunpack.c.l.b16 %v86
  %v435 = vunpack.c.l.b16 %v87
  %v436 = vunpack.c.l.b16 %v88
  %v437 = vunpack.c.l.b16 %v89
  %v438 = vunpack.c.l.b16 %v90
  %v439 = vunpack.c.l.b16 %v91
  %v440 = vunpack.c.l.b16 %v92
  %v441 = vunpack.c.l.b16 %v93
  %v442 = vunpack.c.l.b16 %v94
  %v443 = vunpack.c.l.b16 %v95
  %v444 = vunpack.c.l.b16 %v96
  %v445 = vunpack.c.l.b16 %v97
  %v446 = vunpack.c.l.b16 %v98
  %v447 = vunpack.c.l.b16 %v99
  %v448 = vunpack.c.l.b16 %v100
  %v449 = vunpack.c.l.b16 %v101
  %v450 = vunpack.c.l.b16 %v102
  %v451 = vunpack.c.l.b16 %v103
  %v452 = vunpack.c.l.b16 %v104
  %v453 = vunpack.c.l.b16 %v105
  %v454 = vunpack.c.l.b16 %v106
  %v455 = vunpack.c.l.b16 %v107
  %v456 = vunpack.c.l.b16 %v108
  %v457 = vunpack.c.l.b16 %v109
  %v458 = vunpack.c.l.b16 %v110
  %v459 = vunpack.c.l.b16 %v111
  %v460 = vunpack.c.l.b16 %v112
  %v461 = vunpack.c.l.b16 %v113
  %v462 = vunpack.c.l.b16 %v114
  %v463 = vunpack.c.l.b16 %v115
  %v464 = vunpack.c.l.b16 %v116
  %v465 = vunpack.c.l.b16 %v117
  %v466 = vunpack.c.l.b16 %v118
  %v467 = vunpack.c.l.b16 %v119
  %v468 = vunpack.c.l.b16 %v120
  %v469 = vunpack.c.l.b16 %v121
  %v470 = vunpack.c.l.b16 %v122
  %v471 = vunpack.c.l.b16 %v123
  %v472 = vunpack.c.l.b16 %v124
  %v473 = vunpack.c.l.b16 %v125
  %v474 = vunpack.c.l.b16 %v126
  %v475 = vunpack.c.l.b16 %v127
  %v476 = vunpack.c.l.b16 %v128
  %v477 = vunpack.c.l.b16 %v129
  %v478 = vunpack.c.l.b16 %v130
  %v479 = vunpack.c.l.b16 %v131
  %v480 = vunpack.c.l.b16 %v132
  %v481 = vunpack.c.l.b16 %v133
  %v482 = vunpack.c.l.b16 %v134
  %v483 = vunpack.c.l.b16 %v135
  %v484 = vunpack.c.l.b16 %v136
  %v485 = vunpack.c.l.b16 %v137
  %v486 = vpack.c.b16 %v415, %v414
  %v487 = vpack.c.b16 %v417, %v416
  %v488 = vpack.c.b16 %v419, %v418
  %v489 = vpack.c.b16 %v421, %v420
  %v490 = vpack.c.b16 %v423, %v422
  %v491 = vpack.c.b16 %v425, %v424
  %v492 = vpack.c.b16 %v427, %v426
  %v493 = vpack.c.b16 %v429, %v428
  %v494 = vpack.c.b16 %v431, %v430
  %v495 = vpack.c.b16 %v433, %v432
  %v496 = vpack.c.b16 %v435, %v434
  %v497 = vpack.c.b16 %v437, %v436
  %v498 = vpack.c.b16 %v439, %v438
  %v499 = vpack.c.b16 %v441, %v440
  %v500 = vpack.c.b16 %v443, %v442
  %v501 = vpack.c.b16 %v445, %v444
  %v502 = vpack.c.b16 %v447, %v446
  %v503 = vpack.c.b16 %v449, %v448
  %v504 = vpack.c.b16 %v451, %v450
  %v505 = vpack.c.b16 %v453, %v452
  %v506 = vpack.c.b16 %v455, %v454
  %v507 = vpack.c.b16 %v457, %v456
  %v508 = vpack.c.b16 %v459, %v458
  %v509 = vpack.c.b16 %v461, %v460
  %v510 = vpack.c.b16 %v463, %v462
  %v511 = vpack.c.b16 %v465, %v464
  %v512 = vpack.c.b16 %v467, %v466
  %v513 = vpack.c.b16 %v469, %v468
  %v514 = vpack.c.b16 %v471, %v470
  %v515 = vpack.c.b16 %v473, %v472
  %v516 = vpack.c.b16 %v475, %v474
  %v517 = vpack.c.b16 %v477, %v476
  %v518 = vpack.c.b16 %v479, %v478
  %v519 = vpack.c.b16 %v481, %v480
  %v520 = vpack.c.b16 %v483, %v482
  %v521 = vpack.c.b16 %v485, %v484
  %vm558 = vcmask 523264
  %v560 = vsel %vm558, %v274, 0
  %v563 = vsel %vm558, %v279, 0
  %v566 = vsel %vm558, %v284, 0
  %v569 = vsel %vm558, %v289, 0
  %v572 = vsel %vm558, %v294, 0
  %v575 = vsel %vm558, %v299, 0
  %v578 = vsel %vm558, %v304, 0
  %v581 = vsel %vm558, %v309, 0
  %583 = vmatpush.bf16.msra.mxu0 %v493
  %584 = vmatpush.bf16.msra.mxu0 %v492
  %585 = vmatpush.bf16.msra.mxu0 %v491
  %586 = vmatpush.bf16.msra.mxu0 %v490
  %587 = vmatpush.bf16.msra.mxu0 %v489
  %588 = vmatpush.bf16.msra.mxu0 %v488
  %589 = vmatpush.bf16.msra.mxu0 %v487
  %590 = vmatpush.bf16.msra.mxu0 %v486
  %591 = vmatmul.bf16.gmra.mxu0 %v270
  %v592 = vpop.f32.mrf.mxu0
  %v593 = vadd.f32 %v140, %v592
  %v594 = vpop.f32.mrf.mxu0
  %v595 = vadd.f32 %v140, %v594
  %596 = vmatmul.bf16.gmra.mxu0 %v275
  %v597 = vpop.f32.mrf.mxu0
  %v598 = vadd.f32 %v140, %v597
  %v599 = vpop.f32.mrf.mxu0
  %v600 = vadd.f32 %v140, %v599
  %601 = vmatmul.bf16.gmra.mxu0 %v280
  %v602 = vpop.f32.mrf.mxu0
  %v603 = vadd.f32 %v140, %v602
  %v604 = vpop.f32.mrf.mxu0
  %v605 = vadd.f32 %v140, %v604
  %606 = vmatmul.bf16.gmra.mxu0 %v285
  %v607 = vpop.f32.mrf.mxu0
  %v608 = vadd.f32 %v140, %v607
  %v609 = vpop.f32.mrf.mxu0
  %v610 = vadd.f32 %v140, %v609
  %611 = vmatmul.bf16.gmra.mxu0 %v290
  %v612 = vpop.f32.mrf.mxu0
  %v613 = vadd.f32 %v140, %v612
  %v614 = vpop.f32.mrf.mxu0
  %v615 = vadd.f32 %v140, %v614
  %616 = vmatmul.bf16.gmra.mxu0 %v295
  %v617 = vpop.f32.mrf.mxu0
  %v618 = vadd.f32 %v140, %v617
  %v619 = vpop.f32.mrf.mxu0
  %v620 = vadd.f32 %v140, %v619
  %621 = vmatmul.bf16.gmra.mxu0 %v300
  %v622 = vpop.f32.mrf.mxu0
  %v623 = vadd.f32 %v140, %v622
  %v624 = vpop.f32.mrf.mxu0
  %v625 = vadd.f32 %v140, %v624
  %626 = vmatmul.bf16.gmra.mxu0 %v305
  %v627 = vpop.f32.mrf.mxu0
  %v628 = vadd.f32 %v140, %v627
  %v629 = vpop.f32.mrf.mxu0
  %v630 = vadd.f32 %v140, %v629
  %631 = vdwg.mxu0
  %632 = vmatpush.bf16.msra.mxu0 %v501
  %633 = vmatpush.bf16.msra.mxu0 %v500
  %634 = vmatpush.bf16.msra.mxu0 %v499
  %635 = vmatpush.bf16.msra.mxu0 %v498
  %636 = vmatpush.bf16.msra.mxu0 %v497
  %637 = vmatpush.bf16.msra.mxu0 %v496
  %638 = vmatpush.bf16.msra.mxu0 %v495
  %639 = vmatpush.bf16.msra.mxu0 %v494
  %640 = vmatmul.bf16.gmra.mxu0 %v271
  %v641 = vpop.f32.mrf.mxu0
  %v642 = vadd.f32 %v593, %v641
  %v643 = vpop.f32.mrf.mxu0
  %v644 = vadd.f32 %v595, %v643
  %645 = vmatmul.bf16.gmra.mxu0 %v276
  %v646 = vpop.f32.mrf.mxu0
  %v647 = vadd.f32 %v598, %v646
  %v648 = vpop.f32.mrf.mxu0
  %v649 = vadd.f32 %v600, %v648
  %650 = vmatmul.bf16.gmra.mxu0 %v281
  %v651 = vpop.f32.mrf.mxu0
  %v652 = vadd.f32 %v603, %v651
  %v653 = vpop.f32.mrf.mxu0
  %v654 = vadd.f32 %v605, %v653
  %655 = vmatmul.bf16.gmra.mxu0 %v286
  %v656 = vpop.f32.mrf.mxu0
  %v657 = vadd.f32 %v608, %v656
  %v658 = vpop.f32.mrf.mxu0
  %v659 = vadd.f32 %v610, %v658
  %660 = vmatmul.bf16.gmra.mxu0 %v291
  %v661 = vpop.f32.mrf.mxu0
  %v662 = vadd.f32 %v613, %v661
  %v663 = vpop.f32.mrf.mxu0
  %v664 = vadd.f32 %v615, %v663
  %665 = vmatmul.bf16.gmra.mxu0 %v296
  %v666 = vpop.f32.mrf.mxu0
  %v667 = vadd.f32 %v618, %v666
  %v668 = vpop.f32.mrf.mxu0
  %v669 = vadd.f32 %v620, %v668
  %670 = vmatmul.bf16.gmra.mxu0 %v301
  %v671 = vpop.f32.mrf.mxu0
  %v672 = vadd.f32 %v623, %v671
  %v673 = vpop.f32.mrf.mxu0
  %v674 = vadd.f32 %v625, %v673
  %675 = vmatmul.bf16.gmra.mxu0 %v306
  %v676 = vpop.f32.mrf.mxu0
  %v677 = vadd.f32 %v628, %v676
  %v678 = vpop.f32.mrf.mxu0
  %v679 = vadd.f32 %v630, %v678
  %680 = vdwg.mxu0
  %681 = vmatpush.bf16.msra.mxu0 %v509
  %682 = vmatpush.bf16.msra.mxu0 %v508
  %683 = vmatpush.bf16.msra.mxu0 %v507
  %684 = vmatpush.bf16.msra.mxu0 %v506
  %685 = vmatpush.bf16.msra.mxu0 %v505
  %686 = vmatpush.bf16.msra.mxu0 %v504
  %687 = vmatpush.bf16.msra.mxu0 %v503
  %688 = vmatpush.bf16.msra.mxu0 %v502
  %689 = vmatmul.bf16.gmra.mxu0 %v272
  %v690 = vpop.f32.mrf.mxu0
  %v691 = vadd.f32 %v642, %v690
  %v692 = vpop.f32.mrf.mxu0
  %v693 = vadd.f32 %v644, %v692
  %694 = vmatmul.bf16.gmra.mxu0 %v277
  %v695 = vpop.f32.mrf.mxu0
  %v696 = vadd.f32 %v647, %v695
  %v697 = vpop.f32.mrf.mxu0
  %v698 = vadd.f32 %v649, %v697
  %699 = vmatmul.bf16.gmra.mxu0 %v282
  %v700 = vpop.f32.mrf.mxu0
  %v701 = vadd.f32 %v652, %v700
  %v702 = vpop.f32.mrf.mxu0
  %v703 = vadd.f32 %v654, %v702
  %704 = vmatmul.bf16.gmra.mxu0 %v287
  %v705 = vpop.f32.mrf.mxu0
  %v706 = vadd.f32 %v657, %v705
  %v707 = vpop.f32.mrf.mxu0
  %v708 = vadd.f32 %v659, %v707
  %709 = vmatmul.bf16.gmra.mxu0 %v292
  %v710 = vpop.f32.mrf.mxu0
  %v711 = vadd.f32 %v662, %v710
  %v712 = vpop.f32.mrf.mxu0
  %v713 = vadd.f32 %v664, %v712
  %714 = vmatmul.bf16.gmra.mxu0 %v297
  %v715 = vpop.f32.mrf.mxu0
  %v716 = vadd.f32 %v667, %v715
  %v717 = vpop.f32.mrf.mxu0
  %v718 = vadd.f32 %v669, %v717
  %719 = vmatmul.bf16.gmra.mxu0 %v302
  %v720 = vpop.f32.mrf.mxu0
  %v721 = vadd.f32 %v672, %v720
  %v722 = vpop.f32.mrf.mxu0
  %v723 = vadd.f32 %v674, %v722
  %724 = vmatmul.bf16.gmra.mxu0 %v307
  %v725 = vpop.f32.mrf.mxu0
  %v726 = vadd.f32 %v677, %v725
  %v727 = vpop.f32.mrf.mxu0
  %v728 = vadd.f32 %v679, %v727
  %729 = vdwg.mxu0
  %730 = vmatpush.bf16.msra.mxu0 %v517
  %731 = vmatpush.bf16.msra.mxu0 %v516
  %732 = vmatpush.bf16.msra.mxu0 %v515
  %733 = vmatpush.bf16.msra.mxu0 %v514
  %734 = vmatpush.bf16.msra.mxu0 %v513
  %735 = vmatpush.bf16.msra.mxu0 %v512
  %736 = vmatpush.bf16.msra.mxu0 %v511
  %737 = vmatpush.bf16.msra.mxu0 %v510
  %738 = vmatmul.bf16.gmra.mxu0 %v273
  %v739 = vpop.f32.mrf.mxu0
  %v740 = vadd.f32 %v691, %v739
  %v741 = vpop.f32.mrf.mxu0
  %v742 = vadd.f32 %v693, %v741
  %743 = vmatmul.bf16.gmra.mxu0 %v278
  %v744 = vpop.f32.mrf.mxu0
  %v745 = vadd.f32 %v696, %v744
  %v746 = vpop.f32.mrf.mxu0
  %v747 = vadd.f32 %v698, %v746
  %748 = vmatmul.bf16.gmra.mxu0 %v283
  %v749 = vpop.f32.mrf.mxu0
  %v750 = vadd.f32 %v701, %v749
  %v751 = vpop.f32.mrf.mxu0
  %v752 = vadd.f32 %v703, %v751
  %753 = vmatmul.bf16.gmra.mxu0 %v288
  %v754 = vpop.f32.mrf.mxu0
  %v755 = vadd.f32 %v706, %v754
  %v756 = vpop.f32.mrf.mxu0
  %v757 = vadd.f32 %v708, %v756
  %758 = vmatmul.bf16.gmra.mxu0 %v293
  %v759 = vpop.f32.mrf.mxu0
  %v760 = vadd.f32 %v711, %v759
  %v761 = vpop.f32.mrf.mxu0
  %v762 = vadd.f32 %v713, %v761
  %763 = vmatmul.bf16.gmra.mxu0 %v298
  %v764 = vpop.f32.mrf.mxu0
  %v765 = vadd.f32 %v716, %v764
  %v766 = vpop.f32.mrf.mxu0
  %v767 = vadd.f32 %v718, %v766
  %768 = vmatmul.bf16.gmra.mxu0 %v303
  %v769 = vpop.f32.mrf.mxu0
  %v770 = vadd.f32 %v721, %v769
  %v771 = vpop.f32.mrf.mxu0
  %v772 = vadd.f32 %v723, %v771
  %773 = vmatmul.bf16.gmra.mxu0 %v308
  %v774 = vpop.f32.mrf.mxu0
  %v775 = vadd.f32 %v726, %v774
  %v776 = vpop.f32.mrf.mxu0
  %v777 = vadd.f32 %v728, %v776
  %778 = vdwg.mxu0
  %779 = vmatpush.bf16.msra.mxu0 0
  %780 = vmatpush.bf16.msra.mxu0 0
  %781 = vmatpush.bf16.msra.mxu0 0
  %782 = vmatpush.bf16.msra.mxu0 0
  %783 = vmatpush.bf16.msra.mxu0 %v521
  %784 = vmatpush.bf16.msra.mxu0 %v520
  %785 = vmatpush.bf16.msra.mxu0 %v519
  %786 = vmatpush.bf16.msra.mxu0 %v518
  %787 = vmatmul.bf16.gmra.mxu0 %v560
  %v788 = vpop.f32.mrf.mxu0
  %v789 = vadd.f32 %v740, %v788
  %v790 = vpop.f32.mrf.mxu0
  %v791 = vadd.f32 %v742, %v790
  %792 = vmatmul.bf16.gmra.mxu0 %v563
  %v793 = vpop.f32.mrf.mxu0
  %v794 = vadd.f32 %v745, %v793
  %v795 = vpop.f32.mrf.mxu0
  %v796 = vadd.f32 %v747, %v795
  %797 = vmatmul.bf16.gmra.mxu0 %v566
  %v798 = vpop.f32.mrf.mxu0
  %v799 = vadd.f32 %v750, %v798
  %v800 = vpop.f32.mrf.mxu0
  %v801 = vadd.f32 %v752, %v800
  %802 = vmatmul.bf16.gmra.mxu0 %v569
  %v803 = vpop.f32.mrf.mxu0
  %v804 = vadd.f32 %v755, %v803
  %v805 = vpop.f32.mrf.mxu0
  %v806 = vadd.f32 %v757, %v805
  %807 = vmatmul.bf16.gmra.mxu0 %v572
  %v808 = vpop.f32.mrf.mxu0
  %v809 = vadd.f32 %v760, %v808
  %v810 = vpop.f32.mrf.mxu0
  %v811 = vadd.f32 %v762, %v810
  %812 = vmatmul.bf16.gmra.mxu0 %v575
  %v813 = vpop.f32.mrf.mxu0
  %v814 = vadd.f32 %v765, %v813
  %v815 = vpop.f32.mrf.mxu0
  %v816 = vadd.f32 %v767, %v815
  %817 = vmatmul.bf16.gmra.mxu0 %v578
  %v818 = vpop.f32.mrf.mxu0
  %v819 = vadd.f32 %v770, %v818
  %v820 = vpop.f32.mrf.mxu0
  %v821 = vadd.f32 %v772, %v820
  %822 = vmatmul.bf16.gmra.mxu0 %v581
  %v823 = vpop.f32.mrf.mxu0
  %v824 = vadd.f32 %v775, %v823
  %v825 = vpop.f32.mrf.mxu0
  %v826 = vadd.f32 %v777, %v825
  %827 = vdwg.mxu0
  %v828 = vld [vmem:[%s3] sm:$0xf]
  %v829 = vld [vmem:[%s3 + $0x4] sm:$0xf]
  %v830 = vld [vmem:[%s3 + $0x8] sm:$0xf]
  %v831 = vld [vmem:[%s3 + $0xc] sm:$0xf]
  %v832 = vld [vmem:[%s3 + $0x10] sm:$0xf]
  %v833 = vld [vmem:[%s3 + $0x14] sm:$0xf]
  %v834 = vld [vmem:[%s3 + $0x18] sm:$0xf]
  %v835 = vld [vmem:[%s3 + $0x1c] sm:$0xf]
  %v836 = vld [vmem:[%s3 + $0x20] sm:$0xf]
  %v837 = vld [vmem:[%s3 + $0x24] sm:$0xf]
  %v838 = vld [vmem:[%s3 + $0x28] sm:$0xf]
  %v839 = vld [vmem:[%s3 + $0x2c] sm:$0xf]
  %v840 = vld [vmem:[%s3 + $0x30] sm:$0xf]
  %v841 = vld [vmem:[%s3 + $0x34] sm:$0xf]
  %v842 = vld [vmem:[%s3 + $0x38] sm:$0xf]
  %v843 = vld [vmem:[%s3 + $0x3c] sm:$0xf]
  %v844 = vunpack.c.l.bf16 %v828
  %v845 = vunpack.c.l.bf16 %v829
  %v846 = vunpack.c.l.bf16 %v830
  %v847 = vunpack.c.l.bf16 %v831
  %v848 = vunpack.c.l.bf16 %v832
  %v849 = vunpack.c.l.bf16 %v833
  %v850 = vunpack.c.l.bf16 %v834
  %v851 = vunpack.c.l.bf16 %v835
  %v852 = vunpack.c.l.bf16 %v836
  %v853 = vunpack.c.l.bf16 %v837
  %v854 = vunpack.c.l.bf16 %v838
  %v855 = vunpack.c.l.bf16 %v839
  %v856 = vunpack.c.l.bf16 %v840
  %v857 = vunpack.c.l.bf16 %v841
  %v858 = vunpack.c.l.bf16 %v842
  %v859 = vunpack.c.l.bf16 %v843
  %v860 = vadd.f32 %v789, %v844
  %v861 = vadd.f32 %v791, %v845
  %v862 = vadd.f32 %v794, %v846
  %v863 = vadd.f32 %v796, %v847
  %v864 = vadd.f32 %v799, %v848
  %v865 = vadd.f32 %v801, %v849
  %v866 = vadd.f32 %v804, %v850
  %v867 = vadd.f32 %v806, %v851
  %v868 = vadd.f32 %v809, %v852
  %v869 = vadd.f32 %v811, %v853
  %v870 = vadd.f32 %v814, %v854
  %v871 = vadd.f32 %v816, %v855
  %v872 = vadd.f32 %v819, %v856
  %v873 = vadd.f32 %v821, %v857
  %v874 = vadd.f32 %v824, %v858
  %v875 = vadd.f32 %v826, %v859
  %v876 = vmax.f32 %v860, 0.0
  %v877 = vmax.f32 %v861, 0.0
  %v878 = vmax.f32 %v862, 0.0
  %v879 = vmax.f32 %v863, 0.0
  %v880 = vmax.f32 %v864, 0.0
  %v881 = vmax.f32 %v865, 0.0
  %v882 = vmax.f32 %v866, 0.0
  %v883 = vmax.f32 %v867, 0.0
  %v884 = vmax.f32 %v868, 0.0
  %v885 = vmax.f32 %v869, 0.0
  %v886 = vmax.f32 %v870, 0.0
  %v887 = vmax.f32 %v871, 0.0
  %v888 = vmax.f32 %v872, 0.0
  %v889 = vmax.f32 %v873, 0.0
  %v890 = vmax.f32 %v874, 0.0
  %v891 = vmax.f32 %v875, 0.0
  %v892 = vpack.c.bf16 %v876, %v876
  %v893 = vpack.c.bf16 %v877, %v877
  %v894 = vpack.c.bf16 %v878, %v878
  %v895 = vpack.c.bf16 %v879, %v879
  %v896 = vpack.c.bf16 %v880, %v880
  %v897 = vpack.c.bf16 %v881, %v881
  %v898 = vpack.c.bf16 %v882, %v882
  %v899 = vpack.c.bf16 %v883, %v883
  %v900 = vpack.c.bf16 %v884, %v884
  %v901 = vpack.c.bf16 %v885, %v885
  %v902 = vpack.c.bf16 %v886, %v886
  %v903 = vpack.c.bf16 %v887, %v887
  %v904 = vpack.c.bf16 %v888, %v888
  %v905 = vpack.c.bf16 %v889, %v889
  %v906 = vpack.c.bf16 %v890, %v890
  %v907 = vpack.c.bf16 %v891, %v891
  %vm908 = vcmask 519168
  %909 = vst.msk [vmem:[%s4] sm:$0xf] %vm908, %v892
  %910 = vst.msk [vmem:[%s4 + $0x4] sm:$0xf] %vm908, %v893
  %911 = vst.msk [vmem:[%s4 + $0x8] sm:$0xf] %vm908, %v894
  %912 = vst.msk [vmem:[%s4 + $0xc] sm:$0xf] %vm908, %v895
  %913 = vst.msk [vmem:[%s4 + $0x10] sm:$0xf] %vm908, %v896
  %914 = vst.msk [vmem:[%s4 + $0x14] sm:$0xf] %vm908, %v897
  %915 = vst.msk [vmem:[%s4 + $0x18] sm:$0xf] %vm908, %v898
  %916 = vst.msk [vmem:[%s4 + $0x1c] sm:$0xf] %vm908, %v899
  %917 = vst.msk [vmem:[%s4 + $0x20] sm:$0xf] %vm908, %v900
  %918 = vst.msk [vmem:[%s4 + $0x24] sm:$0xf] %vm908, %v901
  %919 = vst.msk [vmem:[%s4 + $0x28] sm:$0xf] %vm908, %v902
  %920 = vst.msk [vmem:[%s4 + $0x2c] sm:$0xf] %vm908, %v903
  %921 = vst.msk [vmem:[%s4 + $0x30] sm:$0xf] %vm908, %v904
  %922 = vst.msk [vmem:[%s4 + $0x34] sm:$0xf] %vm908, %v905
  %923 = vst.msk [vmem:[%s4 + $0x38] sm:$0xf] %vm908, %v906
  %924 = vst.msk [vmem:[%s4 + $0x3c] sm:$0xf] %vm908, %v907
  // Predicated region
  $region18: #{ash_resnet18_forward.12} parent=0 // pred_check
    _
  $region19: #{ash_resnet18_forward.12} parent=0 // pred_check_branch
    %926 = sbr.rel (0) target = $region21
  $region20: #{ash_resnet18_forward.12} parent=0 // pred_region
    _
  $region21: #{ash_resnet18_forward.12} parent=0 // pred_fallthru
    _
  // Predicated region
  $region22: #{ash_resnet18_forward.12} parent=0 // pred_check
    _
  $region23: #{ash_resnet18_forward.12} parent=0 // pred_check_branch
    %928 = sbr.rel (0) target = $region25
  $region24: #{ash_resnet18_forward.12} parent=0 // pred_region
    _
  $region25: #{ash_resnet18_forward.12} parent=0 // pred_fallthru
    _

// kernel: ash_resnet18_forward.15
$region0: #{ash_resnet18_forward.15}
  #allocation0 [shape = 'u32[]', space=smem, size = 0x4, offset = 0x4, fixed_abs, tag = 'smem constant byte address 0x4 - core index']
  #allocation1 [shape = 'u32[72,128]{1,0:T(1,128)}', space=vmem, size = 0x9000, scoped, tag = 'internal scratch']
  %s0 = inlined_call_operand.vmem [shape: bf16[32,576], index: 0, kind: input, shape index: {}]
  %s1 = inlined_call_operand.vmem [shape: bf16[576,128], index: 1, kind: input, shape index: {}]
  %s2 = inlined_call_operand.vmem [shape: f32[1,128], index: 2, kind: input, shape index: {}]
  %s3 = inlined_call_operand.vmem [shape: bf16[32,128], index: 3, kind: output, shape index: {}]
  %s4 = sld [smem:[#allocation0]]
  $region22: #{ash_resnet18_forward.15} parent=0
    _
  %s6 = ssub.s32 1, %s4
  %s7 = scalar_select 0, %s6, %s4
  // Predicated region
  $region2: #{ash_resnet18_forward.15} parent=0 // pred_check
    _
  $region3: #{ash_resnet18_forward.15} parent=0 // pred_check_branch
    %9 = sbr.rel (0) target = $region5
  $region4: #{ash_resnet18_forward.15} parent=0 // pred_region
    _
  $region5: #{ash_resnet18_forward.15} parent=0 // pred_fallthru
    _
  // Predicated region
  $region6: #{ash_resnet18_forward.15} parent=0 // pred_check
    _
  $region7: #{ash_resnet18_forward.15} parent=0 // pred_check_branch
    %11 = sbr.rel (0) target = $region9
  $region8: #{ash_resnet18_forward.15} parent=0 // pred_region
    _
  $region9: #{ash_resnet18_forward.15} parent=0 // pred_fallthru
    _
  // Predicated region
  $region10: #{ash_resnet18_forward.15} parent=0 // pred_check
    _
  $region11: #{ash_resnet18_forward.15} parent=0 // pred_check_branch
    %13 = sbr.rel (0) target = $region13
  $region12: #{ash_resnet18_forward.15} parent=0 // pred_region
    _
  $region13: #{ash_resnet18_forward.15} parent=0 // pred_fallthru
    _
  %v15 = vld [vmem:[%s0] sm:$0xff]
  %v16 = vld [vmem:[%s0 + $0x8] sm:$0xff]
  %v17 = vld [vmem:[%s0 + $0x10] sm:$0xf]
  %v18 = vld [vmem:[%s0 + $0x14] sm:$0xff]
  %v19 = vld [vmem:[%s0 + $0x1c] sm:$0xff]
  %v20 = vld [vmem:[%s0 + $0x24] sm:$0xf]
  %v21 = vld [vmem:[%s0 + $0x28] sm:$0xff]
  %v22 = vld [vmem:[%s0 + $0x30] sm:$0xff]
  %v23 = vld [vmem:[%s0 + $0x38] sm:$0xf]
  %v24 = vld [vmem:[%s0 + $0x3c] sm:$0xff]
  %v25 = vld [vmem:[%s0 + $0x44] sm:$0xff]
  %v26 = vld [vmem:[%s0 + $0x4c] sm:$0xf]
  %v27 = vld [vmem:[%s1] sm:$0xf]
  %v28 = vld [vmem:[%s1 + $0x4] sm:$0xf]
  %v29 = vld [vmem:[%s1 + $0x8] sm:$0xf]
  %v30 = vld [vmem:[%s1 + $0xc] sm:$0xf]
  %v31 = vld [vmem:[%s1 + $0x10] sm:$0xf]
  %v32 = vld [vmem:[%s1 + $0x14] sm:$0xf]
  %v33 = vld [vmem:[%s1 + $0x18] sm:$0xf]
  %v34 = vld [vmem:[%s1 + $0x1c] sm:$0xf]
  %v35 = vld [vmem:[%s1 + $0x20] sm:$0xf]
  %v36 = vld [vmem:[%s1 + $0x24] sm:$0xf]
  %v37 = vld [vmem:[%s1 + $0x28] sm:$0xf]
  %v38 = vld [vmem:[%s1 + $0x2c] sm:$0xf]
  %v39 = vld [vmem:[%s1 + $0x30] sm:$0xf]
  %v40 = vld [vmem:[%s1 + $0x34] sm:$0xf]
  %v41 = vld [vmem:[%s1 + $0x38] sm:$0xf]
  %v42 = vld [vmem:[%s1 + $0x3c] sm:$0xf]
  %v43 = vld [vmem:[%s1 + $0x40] sm:$0xf]
  %v44 = vld [vmem:[%s1 + $0x44] sm:$0xf]
  %v45 = vld [vmem:[%s1 + $0x48] sm:$0xf]
  %v46 = vld [vmem:[%s1 + $0x4c] sm:$0xf]
  %v47 = vld [vmem:[%s1 + $0x50] sm:$0xf]
  %v48 = vld [vmem:[%s1 + $0x54] sm:$0xf]
  %v49 = vld [vmem:[%s1 + $0x58] sm:$0xf]
  %v50 = vld [vmem:[%s1 + $0x5c] sm:$0xf]
  %v51 = vld [vmem:[%s1 + $0x60] sm:$0xf]
  %v52 = vld [vmem:[%s1 + $0x64] sm:$0xf]
  %v53 = vld [vmem:[%s1 + $0x68] sm:$0xf]
  %v54 = vld [vmem:[%s1 + $0x6c] sm:$0xf]
  %v55 = vld [vmem:[%s1 + $0x70] sm:$0xf]
  %v56 = vld [vmem:[%s1 + $0x74] sm:$0xf]
  %v57 = vld [vmem:[%s1 + $0x78] sm:$0xf]
  %v58 = vld [vmem:[%s1 + $0x7c] sm:$0xf]
  %v59 = vld [vmem:[%s1 + $0x80] sm:$0xf]
  %v60 = vld [vmem:[%s1 + $0x84] sm:$0xf]
  %v61 = vld [vmem:[%s1 + $0x88] sm:$0xf]
  %v62 = vld [vmem:[%s1 + $0x8c] sm:$0xf]
  %v63 = vld [vmem:[%s1 + $0x90] sm:$0xf]
  %v64 = vld [vmem:[%s1 + $0x94] sm:$0xf]
  %v65 = vld [vmem:[%s1 + $0x98] sm:$0xf]
  %v66 = vld [vmem:[%s1 + $0x9c] sm:$0xf]
  %v67 = vld [vmem:[%s1 + $0xa0] sm:$0xf]
  %v68 = vld [vmem:[%s1 + $0xa4] sm:$0xf]
  %v69 = vld [vmem:[%s1 + $0xa8] sm:$0xf]
  %v70 = vld [vmem:[%s1 + $0xac] sm:$0xf]
  %v71 = vld [vmem:[%s1 + $0xb0] sm:$0xf]
  %v72 = vld [vmem:[%s1 + $0xb4] sm:$0xf]
  %v73 = vld [vmem:[%s1 + $0xb8] sm:$0xf]
  %v74 = vld [vmem:[%s1 + $0xbc] sm:$0xf]
  %v75 = vld [vmem:[%s1 + $0xc0] sm:$0xf]
  %v76 = vld [vmem:[%s1 + $0xc4] sm:$0xf]
  %v77 = vld [vmem:[%s1 + $0xc8] sm:$0xf]
  %v78 = vld [vmem:[%s1 + $0xcc] sm:$0xf]
  %v79 = vld [vmem:[%s1 + $0xd0] sm:$0xf]
  %v80 = vld [vmem:[%s1 + $0xd4] sm:$0xf]
  %v81 = vld [vmem:[%s1 + $0xd8] sm:$0xf]
  %v82 = vld [vmem:[%s1 + $0xdc] sm:$0xf]
  %v83 = vld [vmem:[%s1 + $0xe0] sm:$0xf]
  %v84 = vld [vmem:[%s1 + $0xe4] sm:$0xf]
  %v85 = vld [vmem:[%s1 + $0xe8] sm:$0xf]
  %v86 = vld [vmem:[%s1 + $0xec] sm:$0xf]
  %v87 = vld [vmem:[%s1 + $0xf0] sm:$0xf]
  %v88 = vld [vmem:[%s1 + $0xf4] sm:$0xf]
  %v89 = vld [vmem:[%s1 + $0xf8] sm:$0xf]
  %v90 = vld [vmem:[%s1 + $0xfc] sm:$0xf]
  %v91 = vld [vmem:[%s1 + $0x100] sm:$0xf]
  %v92 = vld [vmem:[%s1 + $0x104] sm:$0xf]
  %v93 = vld [vmem:[%s1 + $0x108] sm:$0xf]
  %v94 = vld [vmem:[%s1 + $0x10c] sm:$0xf]
  %v95 = vld [vmem:[%s1 + $0x110] sm:$0xf]
  %v96 = vld [vmem:[%s1 + $0x114] sm:$0xf]
  %v97 = vld [vmem:[%s1 + $0x118] sm:$0xf]
  %v98 = vld [vmem:[%s1 + $0x11c] sm:$0xf]
  %v99 = vld [vmem:[%s2] sm:$0x1]
  %v101 = vperm.slane %v99, 0
  %v115 = vunpack.c.l.b16 %v15
  %v116 = vunpack.c.h.b16 %v15
  %v117 = vunpack.c.l.b16 %v16
  %v118 = vunpack.c.h.b16 %v16
  %v119 = vunpack.c.l.b16 %v17
  %v120 = vunpack.c.l.b16 %v18
  %v121 = vunpack.c.h.b16 %v18
  %v122 = vunpack.c.l.b16 %v19
  %v123 = vunpack.c.h.b16 %v19
  %v124 = vunpack.c.l.b16 %v20
  %v125 = vunpack.c.l.b16 %v21
  %v126 = vunpack.c.h.b16 %v21
  %v127 = vunpack.c.l.b16 %v22
  %v128 = vunpack.c.h.b16 %v22
  %v129 = vunpack.c.l.b16 %v23
  %v130 = vunpack.c.l.b16 %v24
  %v131 = vunpack.c.h.b16 %v24
  %v132 = vunpack.c.l.b16 %v25
  %v133 = vunpack.c.h.b16 %v25
  %v134 = vunpack.c.l.b16 %v26
  %v135 = vpack.c.b16 %v120, %v115
  %v136 = vpack.c.b16 %v121, %v116
  %v137 = vpack.c.b16 %v122, %v117
  %v138 = vpack.c.b16 %v123, %v118
  %v139 = vpack.c.b16 %v124, %v119
  %v140 = vpack.c.b16 %v130, %v125
  %v141 = vpack.c.b16 %v131, %v126
  %v142 = vpack.c.b16 %v132, %v127
  %v143 = vpack.c.b16 %v133, %v128
  %v144 = vpack.c.b16 %v134, %v129
  %v225 = vunpack.c.l.b16 %v27
  %v226 = vunpack.c.l.b16 %v28
  %v227 = vunpack.c.l.b16 %v29
  %v228 = vunpack.c.l.b16 %v30
  %v229 = vunpack.c.l.b16 %v31
  %v230 = vunpack.c.l.b16 %v32
  %v231 = vunpack.c.l.b16 %v33
  %v232 = vunpack.c.l.b16 %v34
  %v233 = vunpack.c.l.b16 %v35
  %v234 = vunpack.c.l.b16 %v36
  %v235 = vunpack.c.l.b16 %v37
  %v236 = vunpack.c.l.b16 %v38
  %v237 = vunpack.c.l.b16 %v39
  %v238 = vunpack.c.l.b16 %v40
  %v239 = vunpack.c.l.b16 %v41
  %v240 = vunpack.c.l.b16 %v42
  %v241 = vunpack.c.l.b16 %v43
  %v242 = vunpack.c.l.b16 %v44
  %v243 = vunpack.c.l.b16 %v45
  %v244 = vunpack.c.l.b16 %v46
  %v245 = vunpack.c.l.b16 %v47
  %v246 = vunpack.c.l.b16 %v48
  %v247 = vunpack.c.l.b16 %v49
  %v248 = vunpack.c.l.b16 %v50
  %v249 = vunpack.c.l.b16 %v51
  %v250 = vunpack.c.l.b16 %v52
  %v251 = vunpack.c.l.b16 %v53
  %v252 = vunpack.c.l.b16 %v54
  %v253 = vunpack.c.l.b16 %v55
  %v254 = vunpack.c.l.b16 %v56
  %v255 = vunpack.c.l.b16 %v57
  %v256 = vunpack.c.l.b16 %v58
  %v257 = vunpack.c.l.b16 %v59
  %v258 = vunpack.c.l.b16 %v60
  %v259 = vunpack.c.l.b16 %v61
  %v260 = vunpack.c.l.b16 %v62
  %v261 = vunpack.c.l.b16 %v63
  %v262 = vunpack.c.l.b16 %v64
  %v263 = vunpack.c.l.b16 %v65
  %v264 = vunpack.c.l.b16 %v66
  %v265 = vunpack.c.l.b16 %v67
  %v266 = vunpack.c.l.b16 %v68
  %v267 = vunpack.c.l.b16 %v69
  %v268 = vunpack.c.l.b16 %v70
  %v269 = vunpack.c.l.b16 %v71
  %v270 = vunpack.c.l.b16 %v72
  %v271 = vunpack.c.l.b16 %v73
  %v272 = vunpack.c.l.b16 %v74
  %v273 = vunpack.c.l.b16 %v75
  %v274 = vunpack.c.l.b16 %v76
  %v275 = vunpack.c.l.b16 %v77
  %v276 = vunpack.c.l.b16 %v78
  %v277 = vunpack.c.l.b16 %v79
  %v278 = vunpack.c.l.b16 %v80
  %v279 = vunpack.c.l.b16 %v81
  %v280 = vunpack.c.l.b16 %v82
  %v281 = vunpack.c.l.b16 %v83
  %v282 = vunpack.c.l.b16 %v84
  %v283 = vunpack.c.l.b16 %v85
  %v284 = vunpack.c.l.b16 %v86
  %v285 = vunpack.c.l.b16 %v87
  %v286 = vunpack.c.l.b16 %v88
  %v287 = vunpack.c.l.b16 %v89
  %v288 = vunpack.c.l.b16 %v90
  %v289 = vunpack.c.l.b16 %v91
  %v290 = vunpack.c.l.b16 %v92
  %v291 = vunpack.c.l.b16 %v93
  %v292 = vunpack.c.l.b16 %v94
  %v293 = vunpack.c.l.b16 %v95
  %v294 = vunpack.c.l.b16 %v96
  %v295 = vunpack.c.l.b16 %v97
  %v296 = vunpack.c.l.b16 %v98
  %v297 = vpack.c.b16 %v226, %v225
  %v298 = vpack.c.b16 %v228, %v227
  %v299 = vpack.c.b16 %v230, %v229
  %v300 = vpack.c.b16 %v232, %v231
  %v301 = vpack.c.b16 %v234, %v233
  %v302 = vpack.c.b16 %v236, %v235
  %v303 = vpack.c.b16 %v238, %v237
  %v304 = vpack.c.b16 %v240, %v239
  %v305 = vpack.c.b16 %v242, %v241
  %v306 = vpack.c.b16 %v244, %v243
  %v307 = vpack.c.b16 %v246, %v245
  %v308 = vpack.c.b16 %v248, %v247
  %v309 = vpack.c.b16 %v250, %v249
  %v310 = vpack.c.b16 %v252, %v251
  %v311 = vpack.c.b16 %v254, %v253
  %v312 = vpack.c.b16 %v256, %v255
  %v313 = vpack.c.b16 %v258, %v257
  %v314 = vpack.c.b16 %v260, %v259
  %v315 = vpack.c.b16 %v262, %v261
  %v316 = vpack.c.b16 %v264, %v263
  %v317 = vpack.c.b16 %v266, %v265
  %v318 = vpack.c.b16 %v268, %v267
  %v319 = vpack.c.b16 %v270, %v269
  %v320 = vpack.c.b16 %v272, %v271
  %v321 = vpack.c.b16 %v274, %v273
  %v322 = vpack.c.b16 %v276, %v275
  %v323 = vpack.c.b16 %v278, %v277
  %v324 = vpack.c.b16 %v280, %v279
  %v325 = vpack.c.b16 %v282, %v281
  %v326 = vpack.c.b16 %v284, %v283
  %v327 = vpack.c.b16 %v286, %v285
  %v328 = vpack.c.b16 %v288, %v287
  %v329 = vpack.c.b16 %v290, %v289
  %v330 = vpack.c.b16 %v292, %v291
  %v331 = vpack.c.b16 %v294, %v293
  %v332 = vpack.c.b16 %v296, %v295
  %vm369 = vcmask 523264
  %v371 = vsel %vm369, %v139, 0
  %v374 = vsel %vm369, %v144, 0
  %376 = vmatpush.bf16.msra.mxu0 %v304
  %377 = vmatpush.bf16.msra.mxu0 %v303
  %378 = vmatpush.bf16.msra.mxu0 %v302
  %379 = vmatpush.bf16.msra.mxu0 %v301
  %380 = vmatpush.bf16.msra.mxu0 %v300
  %381 = vmatpush.bf16.msra.mxu0 %v299
  %382 = vmatpush.bf16.msra.mxu0 %v298
  %383 = vmatpush.bf16.msra.mxu0 %v297
  %384 = vmatmul.bf16.gmra.mxu0 %v135
  %v385 = vpop.f32.mrf.mxu0
  %v386 = vadd.f32 %v101, %v385
  %v387 = vpop.f32.mrf.mxu0
  %v388 = vadd.f32 %v101, %v387
  %389 = vmatmul.bf16.gmra.mxu0 %v140
  %v390 = vpop.f32.mrf.mxu0
  %v391 = vadd.f32 %v101, %v390
  %v392 = vpop.f32.mrf.mxu0
  %v393 = vadd.f32 %v101, %v392
  %394 = vdwg.mxu0
  %395 = vmatpush.bf16.msra.mxu0 %v312
  %396 = vmatpush.bf16.msra.mxu0 %v311
  %397 = vmatpush.bf16.msra.mxu0 %v310
  %398 = vmatpush.bf16.msra.mxu0 %v309
  %399 = vmatpush.bf16.msra.mxu0 %v308
  %400 = vmatpush.bf16.msra.mxu0 %v307
  %401 = vmatpush.bf16.msra.mxu0 %v306
  %402 = vmatpush.bf16.msra.mxu0 %v305
  %403 = vmatmul.bf16.gmra.mxu0 %v136
  %v404 = vpop.f32.mrf.mxu0
  %v405 = vadd.f32 %v386, %v404
  %v406 = vpop.f32.mrf.mxu0
  %v407 = vadd.f32 %v388, %v406
  %408 = vmatmul.bf16.gmra.mxu0 %v141
  %v409 = vpop.f32.mrf.mxu0
  %v410 = vadd.f32 %v391, %v409
  %v411 = vpop.f32.mrf.mxu0
  %v412 = vadd.f32 %v393, %v411
  %413 = vdwg.mxu0
  %414 = vmatpush.bf16.msra.mxu0 %v320
  %415 = vmatpush.bf16.msra.mxu0 %v319
  %416 = vmatpush.bf16.msra.mxu0 %v318
  %417 = vmatpush.bf16.msra.mxu0 %v317
  %418 = vmatpush.bf16.msra.mxu0 %v316
  %419 = vmatpush.bf16.msra.mxu0 %v315
  %420 = vmatpush.bf16.msra.mxu0 %v314
  %421 = vmatpush.bf16.msra.mxu0 %v313
  %422 = vmatmul.bf16.gmra.mxu0 %v137
  %v423 = vpop.f32.mrf.mxu0
  %v424 = vadd.f32 %v405, %v423
  %v425 = vpop.f32.mrf.mxu0
  %v426 = vadd.f32 %v407, %v425
  %427 = vmatmul.bf16.gmra.mxu0 %v142
  %v428 = vpop.f32.mrf.mxu0
  %v429 = vadd.f32 %v410, %v428
  %v430 = vpop.f32.mrf.mxu0
  %v431 = vadd.f32 %v412, %v430
  %432 = vdwg.mxu0
  %433 = vmatpush.bf16.msra.mxu0 %v328
  %434 = vmatpush.bf16.msra.mxu0 %v327
  %435 = vmatpush.bf16.msra.mxu0 %v326
  %436 = vmatpush.bf16.msra.mxu0 %v325
  %437 = vmatpush.bf16.msra.mxu0 %v324
  %438 = vmatpush.bf16.msra.mxu0 %v323
  %439 = vmatpush.bf16.msra.mxu0 %v322
  %440 = vmatpush.bf16.msra.mxu0 %v321
  %441 = vmatmul.bf16.gmra.mxu0 %v138
  %v442 = vpop.f32.mrf.mxu0
  %v443 = vadd.f32 %v424, %v442
  %v444 = vpop.f32.mrf.mxu0
  %v445 = vadd.f32 %v426, %v444
  %446 = vmatmul.bf16.gmra.mxu0 %v143
  %v447 = vpop.f32.mrf.mxu0
  %v448 = vadd.f32 %v429, %v447
  %v449 = vpop.f32.mrf.mxu0
  %v450 = vadd.f32 %v431, %v449
  %451 = vdwg.mxu0
  %452 = vmatpush.bf16.msra.mxu0 0
  %453 = vmatpush.bf16.msra.mxu0 0
  %454 = vmatpush.bf16.msra.mxu0 0
  %455 = vmatpush.bf16.msra.mxu0 0
  %456 = vmatpush.bf16.msra.mxu0 %v332
  %457 = vmatpush.bf16.msra.mxu0 %v331
  %458 = vmatpush.bf16.msra.mxu0 %v330
  %459 = vmatpush.bf16.msra.mxu0 %v329
  %460 = vmatmul.bf16.gmra.mxu0 %v371
  %v461 = vpop.f32.mrf.mxu0
  %v462 = vadd.f32 %v443, %v461
  %v463 = vpop.f32.mrf.mxu0
  %v464 = vadd.f32 %v445, %v463
  %465 = vmatmul.bf16.gmra.mxu0 %v374
  %v466 = vpop.f32.mrf.mxu0
  %v467 = vadd.f32 %v448, %v466
  %v468 = vpop.f32.mrf.mxu0
  %v469 = vadd.f32 %v450, %v468
  %470 = vdwg.mxu0
  %v471 = vmax.f32 %v462, 0.0
  %v472 = vmax.f32 %v464, 0.0
  %v473 = vmax.f32 %v467, 0.0
  %v474 = vmax.f32 %v469, 0.0
  %v475 = vpack.c.bf16 %v471, %v471
  %v476 = vpack.c.bf16 %v472, %v472
  %v477 = vpack.c.bf16 %v473, %v473
  %v478 = vpack.c.bf16 %v474, %v474
  %479 = vst [vmem:[%s3] sm:$0xf] %v475
  %480 = vst [vmem:[%s3 + $0x4] sm:$0xf] %v476
  %481 = vst [vmem:[%s3 + $0x8] sm:$0xf] %v477
  %482 = vst [vmem:[%s3 + $0xc] sm:$0xf] %v478
  // Predicated region
  $region14: #{ash_resnet18_forward.15} parent=0 // pred_check
    _
  $region15: #{ash_resnet18_forward.15} parent=0 // pred_check_branch
    %484 = sbr.rel (0) target = $region17
  $region16: #{ash_resnet18_forward.15} parent=0 // pred_region
    _
  $region17: #{ash_resnet18_forward.15} parent=0 // pred_fallthru
    _
  // Predicated region
  $region18: #{ash_resnet18_forward.15} parent=0 // pred_check
    _
  $region19: #{ash_resnet18_forward.15} parent=0 // pred_check_branch
    %486 = sbr.rel (0) target = $region21
  $region20: #{ash_resnet18_forward.15} parent=0 // pred_region
    _
  $region21: #{ash_resnet18_forward.15} parent=0 // pred_fallthru
    _

// kernel: ash_resnet18_forward.16
$region0: #{ash_resnet18_forward.16}
  #allocation0 [shape = 'u32[]', space=smem, size = 0x4, offset = 0x4, fixed_abs, tag = 'smem constant byte address 0x4 - core index']
  #allocation1 [shape = 'u32[72,128]{1,0:T(1,128)}', space=vmem, size = 0x9000, scoped, tag = 'internal scratch']
  %s0 = inlined_call_operand.vmem [shape: bf16[32,64], index: 0, kind: input, shape index: {}]
  %s1 = inlined_call_operand.vmem [shape: bf16[64,128], index: 1, kind: input, shape index: {}]
  %s2 = inlined_call_operand.vmem [shape: f32[1,128], index: 2, kind: input, shape index: {}]
  %s3 = inlined_call_operand.vmem [shape: bf16[32,128], index: 3, kind: output, shape index: {}]
  %s4 = sld [smem:[#allocation0]]
  $region22: #{ash_resnet18_forward.16} parent=0
    _
  %s6 = ssub.s32 1, %s4
  %s7 = scalar_select 0, %s6, %s4
  // Predicated region
  $region2: #{ash_resnet18_forward.16} parent=0 // pred_check
    _
  $region3: #{ash_resnet18_forward.16} parent=0 // pred_check_branch
    %9 = sbr.rel (0) target = $region5
  $region4: #{ash_resnet18_forward.16} parent=0 // pred_region
    _
  $region5: #{ash_resnet18_forward.16} parent=0 // pred_fallthru
    _
  // Predicated region
  $region6: #{ash_resnet18_forward.16} parent=0 // pred_check
    _
  $region7: #{ash_resnet18_forward.16} parent=0 // pred_check_branch
    %11 = sbr.rel (0) target = $region9
  $region8: #{ash_resnet18_forward.16} parent=0 // pred_region
    _
  $region9: #{ash_resnet18_forward.16} parent=0 // pred_fallthru
    _
  // Predicated region
  $region10: #{ash_resnet18_forward.16} parent=0 // pred_check
    _
  $region11: #{ash_resnet18_forward.16} parent=0 // pred_check_branch
    %13 = sbr.rel (0) target = $region13
  $region12: #{ash_resnet18_forward.16} parent=0 // pred_region
    _
  $region13: #{ash_resnet18_forward.16} parent=0 // pred_fallthru
    _
  %v15 = vld [vmem:[%s0] sm:$0xf]
  %v16 = vld [vmem:[%s0 + $0x4] sm:$0xf]
  %v17 = vld [vmem:[%s0 + $0x8] sm:$0xf]
  %v18 = vld [vmem:[%s0 + $0xc] sm:$0xf]
  %v19 = vld [vmem:[%s1] sm:$0xf]
  %v20 = vld [vmem:[%s1 + $0x4] sm:$0xf]
  %v21 = vld [vmem:[%s1 + $0x8] sm:$0xf]
  %v22 = vld [vmem:[%s1 + $0xc] sm:$0xf]
  %v23 = vld [vmem:[%s1 + $0x10] sm:$0xf]
  %v24 = vld [vmem:[%s1 + $0x14] sm:$0xf]
  %v25 = vld [vmem:[%s1 + $0x18] sm:$0xf]
  %v26 = vld [vmem:[%s1 + $0x1c] sm:$0xf]
  %v27 = vld [vmem:[%s2] sm:$0x1]
  %v29 = vperm.slane %v27, 0
  %v35 = vunpack.c.l.b16 %v15
  %v36 = vunpack.c.l.b16 %v16
  %v37 = vunpack.c.l.b16 %v17
  %v38 = vunpack.c.l.b16 %v18
  %v39 = vpack.c.b16 %v36, %v35
  %v40 = vpack.c.b16 %v38, %v37
  %v49 = vunpack.c.l.b16 %v19
  %v50 = vunpack.c.l.b16 %v20
  %v51 = vunpack.c.l.b16 %v21
  %v52 = vunpack.c.l.b16 %v22
  %v53 = vunpack.c.l.b16 %v23
  %v54 = vunpack.c.l.b16 %v24
  %v55 = vunpack.c.l.b16 %v25
  %v56 = vunpack.c.l.b16 %v26
  %v57 = vpack.c.b16 %v50, %v49
  %v58 = vpack.c.b16 %v52, %v51
  %v59 = vpack.c.b16 %v54, %v53
  %v60 = vpack.c.b16 %v56, %v55
  %vm65 = vcmask 523264
  %v67 = vsel %vm65, %v39, 0
  %v70 = vsel %vm65, %v40, 0
  %72 = vmatpush.bf16.msra.mxu0 0
  %73 = vmatpush.bf16.msra.mxu0 0
  %74 = vmatpush.bf16.msra.mxu0 0
  %75 = vmatpush.bf16.msra.mxu0 0
  %76 = vmatpush.bf16.msra.mxu0 %v60
  %77 = vmatpush.bf16.msra.mxu0 %v59
  %78 = vmatpush.bf16.msra.mxu0 %v58
  %79 = vmatpush.bf16.msra.mxu0 %v57
  %80 = vmatmul.bf16.gmra.mxu0 %v67
  %v81 = vpop.f32.mrf.mxu0
  %v82 = vadd.f32 %v29, %v81
  %v83 = vpop.f32.mrf.mxu0
  %v84 = vadd.f32 %v29, %v83
  %85 = vmatmul.bf16.gmra.mxu0 %v70
  %v86 = vpop.f32.mrf.mxu0
  %v87 = vadd.f32 %v29, %v86
  %v88 = vpop.f32.mrf.mxu0
  %v89 = vadd.f32 %v29, %v88
  %90 = vdwg.mxu0
  %v91 = vpack.c.bf16 %v82, %v82
  %v92 = vpack.c.bf16 %v84, %v84
  %v93 = vpack.c.bf16 %v87, %v87
  %v94 = vpack.c.bf16 %v89, %v89
  %95 = vst [vmem:[%s3] sm:$0xf] %v91
  %96 = vst [vmem:[%s3 + $0x4] sm:$0xf] %v92
  %97 = vst [vmem:[%s3 + $0x8] sm:$0xf] %v93
  %98 = vst [vmem:[%s3 + $0xc] sm:$0xf] %v94
  // Predicated region
  $region14: #{ash_resnet18_forward.16} parent=0 // pred_check
    _
  $region15: #{ash_resnet18_forward.16} parent=0 // pred_check_branch
    %100 = sbr.rel (0) target = $region17
  $region16: #{ash_resnet18_forward.16} parent=0 // pred_region
    _
  $region17: #{ash_resnet18_forward.16} parent=0 // pred_fallthru
    _
  // Predicated region
  $region18: #{ash_resnet18_forward.16} parent=0 // pred_check
    _
  $region19: #{ash_resnet18_forward.16} parent=0 // pred_check_branch
    %102 = sbr.rel (0) target = $region21
  $region20: #{ash_resnet18_forward.16} parent=0 // pred_region
    _
  $region21: #{ash_resnet18_forward.16} parent=0 // pred_fallthru
    _

// kernel: ash_resnet18_forward.17
$region0: #{ash_resnet18_forward.17}
  #allocation0 [shape = 'u32[]', space=smem, size = 0x4, offset = 0x4, fixed_abs, tag = 'smem constant byte address 0x4 - core index']
  #allocation1 [shape = 'u32[72,128]{1,0:T(1,128)}', space=vmem, size = 0x9000, scoped, tag = 'internal scratch']
  %s0 = inlined_call_operand.vmem [shape: bf16[32,1152], index: 0, kind: input, shape index: {}]
  %s1 = inlined_call_operand.vmem [shape: bf16[1152,128], index: 1, kind: input, shape index: {}]
  %s2 = inlined_call_operand.vmem [shape: f32[1,128], index: 2, kind: input, shape index: {}]
  %s3 = inlined_call_operand.vmem [shape: bf16[32,128], index: 3, kind: input, shape index: {}]
  %s4 = inlined_call_operand.vmem [shape: bf16[32,128], index: 4, kind: output, shape index: {}]
  %s5 = sld [smem:[#allocation0]]
  $region26: #{ash_resnet18_forward.17} parent=0
    _
  %s7 = ssub.s32 1, %s5
  %s8 = scalar_select 0, %s7, %s5
  // Predicated region
  $region2: #{ash_resnet18_forward.17} parent=0 // pred_check
    _
  $region3: #{ash_resnet18_forward.17} parent=0 // pred_check_branch
    %10 = sbr.rel (0) target = $region5
  $region4: #{ash_resnet18_forward.17} parent=0 // pred_region
    _
  $region5: #{ash_resnet18_forward.17} parent=0 // pred_fallthru
    _
  // Predicated region
  $region6: #{ash_resnet18_forward.17} parent=0 // pred_check
    _
  $region7: #{ash_resnet18_forward.17} parent=0 // pred_check_branch
    %12 = sbr.rel (0) target = $region9
  $region8: #{ash_resnet18_forward.17} parent=0 // pred_region
    _
  $region9: #{ash_resnet18_forward.17} parent=0 // pred_fallthru
    _
  // Predicated region
  $region10: #{ash_resnet18_forward.17} parent=0 // pred_check
    _
  $region11: #{ash_resnet18_forward.17} parent=0 // pred_check_branch
    %14 = sbr.rel (0) target = $region13
  $region12: #{ash_resnet18_forward.17} parent=0 // pred_region
    _
  $region13: #{ash_resnet18_forward.17} parent=0 // pred_fallthru
    _
  // Predicated region
  $region14: #{ash_resnet18_forward.17} parent=0 // pred_check
    _
  $region15: #{ash_resnet18_forward.17} parent=0 // pred_check_branch
    %16 = sbr.rel (0) target = $region17
  $region16: #{ash_resnet18_forward.17} parent=0 // pred_region
    _
  $region17: #{ash_resnet18_forward.17} parent=0 // pred_fallthru
    _
  %v17 = vld [vmem:[%s0] sm:$0xff]
  %v18 = vld [vmem:[%s0 + $0x8] sm:$0xff]
  %v19 = vld [vmem:[%s0 + $0x10] sm:$0xff]
  %v20 = vld [vmem:[%s0 + $0x18] sm:$0xff]
  %v21 = vld [vmem:[%s0 + $0x20] sm:$0xf]
  %v22 = vld [vmem:[%s0 + $0x24] sm:$0xff]
  %v23 = vld [vmem:[%s0 + $0x2c] sm:$0xff]
  %v24 = vld [vmem:[%s0 + $0x34] sm:$0xff]
  %v25 = vld [vmem:[%s0 + $0x3c] sm:$0xff]
  %v26 = vld [vmem:[%s0 + $0x44] sm:$0xf]
  %v27 = vld [vmem:[%s0 + $0x48] sm:$0xff]
  %v28 = vld [vmem:[%s0 + $0x50] sm:$0xff]
  %v29 = vld [vmem:[%s0 + $0x58] sm:$0xff]
  %v30 = vld [vmem:[%s0 + $0x60] sm:$0xff]
  %v31 = vld [vmem:[%s0 + $0x68] sm:$0xf]
  %v32 = vld [vmem:[%s0 + $0x6c] sm:$0xff]
  %v33 = vld [vmem:[%s0 + $0x74] sm:$0xff]
  %v34 = vld [vmem:[%s0 + $0x7c] sm:$0xff]
  %v35 = vld [vmem:[%s0 + $0x84] sm:$0xff]
  %v36 = vld [vmem:[%s0 + $0x8c] sm:$0xf]
  %v37 = vld [vmem:[%s1] sm:$0xf]
  %v38 = vld [vmem:[%s1 + $0x4] sm:$0xf]
  %v39 = vld [vmem:[%s1 + $0x8] sm:$0xf]
  %v40 = vld [vmem:[%s1 + $0xc] sm:$0xf]
  %v41 = vld [vmem:[%s1 + $0x10] sm:$0xf]
  %v42 = vld [vmem:[%s1 + $0x14] sm:$0xf]
  %v43 = vld [vmem:[%s1 + $0x18] sm:$0xf]
  %v44 = vld [vmem:[%s1 + $0x1c] sm:$0xf]
  %v45 = vld [vmem:[%s1 + $0x20] sm:$0xf]
  %v46 = vld [vmem:[%s1 + $0x24] sm:$0xf]
  %v47 = vld [vmem:[%s1 + $0x28] sm:$0xf]
  %v48 = vld [vmem:[%s1 + $0x2c] sm:$0xf]
  %v49 = vld [vmem:[%s1 + $0x30] sm:$0xf]
  %v50 = vld [vmem:[%s1 + $0x34] sm:$0xf]
  %v51 = vld [vmem:[%s1 + $0x38] sm:$0xf]
  %v52 = vld [vmem:[%s1 + $0x3c] sm:$0xf]
  %v53 = vld [vmem:[%s1 + $0x40] sm:$0xf]
  %v54 = vld [vmem:[%s1 + $0x44] sm:$0xf]
  %v55 = vld [vmem:[%s1 + $0x48] sm:$0xf]
  %v56 = vld [vmem:[%s1 + $0x4c] sm:$0xf]
  %v57 = vld [vmem:[%s1 + $0x50] sm:$0xf]
  %v58 = vld [vmem:[%s1 + $0x54] sm:$0xf]
  %v59 = vld [vmem:[%s1 + $0x58] sm:$0xf]
  %v60 = vld [vmem:[%s1 + $0x5c] sm:$0xf]
  %v61 = vld [vmem:[%s1 + $0x60] sm:$0xf]
  %v62 = vld [vmem:[%s1 + $0x64] sm:$0xf]
  %v63 = vld [vmem:[%s1 + $0x68] sm:$0xf]
  %v64 = vld [vmem:[%s1 + $0x6c] sm:$0xf]
  %v65 = vld [vmem:[%s1 + $0x70] sm:$0xf]
  %v66 = vld [vmem:[%s1 + $0x74] sm:$0xf]
  %v67 = vld [vmem:[%s1 + $0x78] sm:$0xf]
  %v68 = vld [vmem:[%s1 + $0x7c] sm:$0xf]
  %v69 = vld [vmem:[%s1 + $0x80] sm:$0xf]
  %v70 = vld [vmem:[%s1 + $0x84] sm:$0xf]
  %v71 = vld [vmem:[%s1 + $0x88] sm:$0xf]
  %v72 = vld [vmem:[%s1 + $0x8c] sm:$0xf]
  %v73 = vld [vmem:[%s1 + $0x90] sm:$0xf]
  %v74 = vld [vmem:[%s1 + $0x94] sm:$0xf]
  %v75 = vld [vmem:[%s1 + $0x98] sm:$0xf]
  %v76 = vld [vmem:[%s1 + $0x9c] sm:$0xf]
  %v77 = vld [vmem:[%s1 + $0xa0] sm:$0xf]
  %v78 = vld [vmem:[%s1 + $0xa4] sm:$0xf]
  %v79 = vld [vmem:[%s1 + $0xa8] sm:$0xf]
  %v80 = vld [vmem:[%s1 + $0xac] sm:$0xf]
  %v81 = vld [vmem:[%s1 + $0xb0] sm:$0xf]
  %v82 = vld [vmem:[%s1 + $0xb4] sm:$0xf]
  %v83 = vld [vmem:[%s1 + $0xb8] sm:$0xf]
  %v84 = vld [vmem:[%s1 + $0xbc] sm:$0xf]
  %v85 = vld [vmem:[%s1 + $0xc0] sm:$0xf]
  %v86 = vld [vmem:[%s1 + $0xc4] sm:$0xf]
  %v87 = vld [vmem:[%s1 + $0xc8] sm:$0xf]
  %v88 = vld [vmem:[%s1 + $0xcc] sm:$0xf]
  %v89 = vld [vmem:[%s1 + $0xd0] sm:$0xf]
  %v90 = vld [vmem:[%s1 + $0xd4] sm:$0xf]
  %v91 = vld [vmem:[%s1 + $0xd8] sm:$0xf]
  %v92 = vld [vmem:[%s1 + $0xdc] sm:$0xf]
  %v93 = vld [vmem:[%s1 + $0xe0] sm:$0xf]
  %v94 = vld [vmem:[%s1 + $0xe4] sm:$0xf]
  %v95 = vld [vmem:[%s1 + $0xe8] sm:$0xf]
  %v96 = vld [vmem:[%s1 + $0xec] sm:$0xf]
  %v97 = vld [vmem:[%s1 + $0xf0] sm:$0xf]
  %v98 = vld [vmem:[%s1 + $0xf4] sm:$0xf]
  %v99 = vld [vmem:[%s1 + $0xf8] sm:$0xf]
  %v100 = vld [vmem:[%s1 + $0xfc] sm:$0xf]
  %v101 = vld [vmem:[%s1 + $0x100] sm:$0xf]
  %v102 = vld [vmem:[%s1 + $0x104] sm:$0xf]
  %v103 = vld [vmem:[%s1 + $0x108] sm:$0xf]
  %v104 = vld [vmem:[%s1 + $0x10c] sm:$0xf]
  %v105 = vld [vmem:[%s1 + $0x110] sm:$0xf]
  %v106 = vld [vmem:[%s1 + $0x114] sm:$0xf]
  %v107 = vld [vmem:[%s1 + $0x118] sm:$0xf]
  %v108 = vld [vmem:[%s1 + $0x11c] sm:$0xf]
  %v109 = vld [vmem:[%s1 + $0x120] sm:$0xf]
  %v110 = vld [vmem:[%s1 + $0x124] sm:$0xf]
  %v111 = vld [vmem:[%s1 + $0x128] sm:$0xf]
  %v112 = vld [vmem:[%s1 + $0x12c] sm:$0xf]
  %v113 = vld [vmem:[%s1 + $0x130] sm:$0xf]
  %v114 = vld [vmem:[%s1 + $0x134] sm:$0xf]
  %v115 = vld [vmem:[%s1 + $0x138] sm:$0xf]
  %v116 = vld [vmem:[%s1 + $0x13c] sm:$0xf]
  %v117 = vld [vmem:[%s1 + $0x140] sm:$0xf]
  %v118 = vld [vmem:[%s1 + $0x144] sm:$0xf]
  %v119 = vld [vmem:[%s1 + $0x148] sm:$0xf]
  %v120 = vld [vmem:[%s1 + $0x14c] sm:$0xf]
  %v121 = vld [vmem:[%s1 + $0x150] sm:$0xf]
  %v122 = vld [vmem:[%s1 + $0x154] sm:$0xf]
  %v123 = vld [vmem:[%s1 + $0x158] sm:$0xf]
  %v124 = vld [vmem:[%s1 + $0x15c] sm:$0xf]
  %v125 = vld [vmem:[%s1 + $0x160] sm:$0xf]
  %v126 = vld [vmem:[%s1 + $0x164] sm:$0xf]
  %v127 = vld [vmem:[%s1 + $0x168] sm:$0xf]
  %v128 = vld [vmem:[%s1 + $0x16c] sm:$0xf]
  %v129 = vld [vmem:[%s1 + $0x170] sm:$0xf]
  %v130 = vld [vmem:[%s1 + $0x174] sm:$0xf]
  %v131 = vld [vmem:[%s1 + $0x178] sm:$0xf]
  %v132 = vld [vmem:[%s1 + $0x17c] sm:$0xf]
  %v133 = vld [vmem:[%s1 + $0x180] sm:$0xf]
  %v134 = vld [vmem:[%s1 + $0x184] sm:$0xf]
  %v135 = vld [vmem:[%s1 + $0x188] sm:$0xf]
  %v136 = vld [vmem:[%s1 + $0x18c] sm:$0xf]
  %v137 = vld [vmem:[%s1 + $0x190] sm:$0xf]
  %v138 = vld [vmem:[%s1 + $0x194] sm:$0xf]
  %v139 = vld [vmem:[%s1 + $0x198] sm:$0xf]
  %v140 = vld [vmem:[%s1 + $0x19c] sm:$0xf]
  %v141 = vld [vmem:[%s1 + $0x1a0] sm:$0xf]
  %v142 = vld [vmem:[%s1 + $0x1a4] sm:$0xf]
  %v143 = vld [vmem:[%s1 + $0x1a8] sm:$0xf]
  %v144 = vld [vmem:[%s1 + $0x1ac] sm:$0xf]
  %v145 = vld [vmem:[%s1 + $0x1b0] sm:$0xf]
  %v146 = vld [vmem:[%s1 + $0x1b4] sm:$0xf]
  %v147 = vld [vmem:[%s1 + $0x1b8] sm:$0xf]
  %v148 = vld [vmem:[%s1 + $0x1bc] sm:$0xf]
  %v149 = vld [vmem:[%s1 + $0x1c0] sm:$0xf]
  %v150 = vld [vmem:[%s1 + $0x1c4] sm:$0xf]
  %v151 = vld [vmem:[%s1 + $0x1c8] sm:$0xf]
  %v152 = vld [vmem:[%s1 + $0x1cc] sm:$0xf]
  %v153 = vld [vmem:[%s1 + $0x1d0] sm:$0xf]
  %v154 = vld [vmem:[%s1 + $0x1d4] sm:$0xf]
  %v155 = vld [vmem:[%s1 + $0x1d8] sm:$0xf]
  %v156 = vld [vmem:[%s1 + $0x1dc] sm:$0xf]
  %v157 = vld [vmem:[%s1 + $0x1e0] sm:$0xf]
  %v158 = vld [vmem:[%s1 + $0x1e4] sm:$0xf]
  %v159 = vld [vmem:[%s1 + $0x1e8] sm:$0xf]
  %v160 = vld [vmem:[%s1 + $0x1ec] sm:$0xf]
  %v161 = vld [vmem:[%s1 + $0x1f0] sm:$0xf]
  %v162 = vld [vmem:[%s1 + $0x1f4] sm:$0xf]
  %v163 = vld [vmem:[%s1 + $0x1f8] sm:$0xf]
  %v164 = vld [vmem:[%s1 + $0x1fc] sm:$0xf]
  %v165 = vld [vmem:[%s1 + $0x200] sm:$0xf]
  %v166 = vld [vmem:[%s1 + $0x204] sm:$0xf]
  %v167 = vld [vmem:[%s1 + $0x208] sm:$0xf]
  %v168 = vld [vmem:[%s1 + $0x20c] sm:$0xf]
  %v169 = vld [vmem:[%s1 + $0x210] sm:$0xf]
  %v170 = vld [vmem:[%s1 + $0x214] sm:$0xf]
  %v171 = vld [vmem:[%s1 + $0x218] sm:$0xf]
  %v172 = vld [vmem:[%s1 + $0x21c] sm:$0xf]
  %v173 = vld [vmem:[%s1 + $0x220] sm:$0xf]
  %v174 = vld [vmem:[%s1 + $0x224] sm:$0xf]
  %v175 = vld [vmem:[%s1 + $0x228] sm:$0xf]
  %v176 = vld [vmem:[%s1 + $0x22c] sm:$0xf]
  %v177 = vld [vmem:[%s1 + $0x230] sm:$0xf]
  %v178 = vld [vmem:[%s1 + $0x234] sm:$0xf]
  %v179 = vld [vmem:[%s1 + $0x238] sm:$0xf]
  %v180 = vld [vmem:[%s1 + $0x23c] sm:$0xf]
  %v181 = vld [vmem:[%s2] sm:$0x1]
  %v183 = vperm.slane %v181, 0
  %v205 = vunpack.c.l.b16 %v17
  %v206 = vunpack.c.h.b16 %v17
  %v207 = vunpack.c.l.b16 %v18
  %v208 = vunpack.c.h.b16 %v18
  %v209 = vunpack.c.l.b16 %v19
  %v210 = vunpack.c.h.b16 %v19
  %v211 = vunpack.c.l.b16 %v20
  %v212 = vunpack.c.h.b16 %v20
  %v213 = vunpack.c.l.b16 %v21
  %v214 = vunpack.c.l.b16 %v22
  %v215 = vunpack.c.h.b16 %v22
  %v216 = vunpack.c.l.b16 %v23
  %v217 = vunpack.c.h.b16 %v23
  %v218 = vunpack.c.l.b16 %v24
  %v219 = vunpack.c.h.b16 %v24
  %v220 = vunpack.c.l.b16 %v25
  %v221 = vunpack.c.h.b16 %v25
  %v222 = vunpack.c.l.b16 %v26
  %v223 = vunpack.c.l.b16 %v27
  %v224 = vunpack.c.h.b16 %v27
  %v225 = vunpack.c.l.b16 %v28
  %v226 = vunpack.c.h.b16 %v28
  %v227 = vunpack.c.l.b16 %v29
  %v228 = vunpack.c.h.b16 %v29
  %v229 = vunpack.c.l.b16 %v30
  %v230 = vunpack.c.h.b16 %v30
  %v231 = vunpack.c.l.b16 %v31
  %v232 = vunpack.c.l.b16 %v32
  %v233 = vunpack.c.h.b16 %v32
  %v234 = vunpack.c.l.b16 %v33
  %v235 = vunpack.c.h.b16 %v33
  %v236 = vunpack.c.l.b16 %v34
  %v237 = vunpack.c.h.b16 %v34
  %v238 = vunpack.c.l.b16 %v35
  %v239 = vunpack.c.h.b16 %v35
  %v240 = vunpack.c.l.b16 %v36
  %v241 = vpack.c.b16 %v214, %v205
  %v242 = vpack.c.b16 %v215, %v206
  %v243 = vpack.c.b16 %v216, %v207
  %v244 = vpack.c.b16 %v217, %v208
  %v245 = vpack.c.b16 %v218, %v209
  %v246 = vpack.c.b16 %v219, %v210
  %v247 = vpack.c.b16 %v220, %v211
  %v248 = vpack.c.b16 %v221, %v212
  %v249 = vpack.c.b16 %v222, %v213
  %v250 = vpack.c.b16 %v232, %v223
  %v251 = vpack.c.b16 %v233, %v224
  %v252 = vpack.c.b16 %v234, %v225
  %v253 = vpack.c.b16 %v235, %v226
  %v254 = vpack.c.b16 %v236, %v227
  %v255 = vpack.c.b16 %v237, %v228
  %v256 = vpack.c.b16 %v238, %v229
  %v257 = vpack.c.b16 %v239, %v230
  %v258 = vpack.c.b16 %v240, %v231
  %v421 = vunpack.c.l.b16 %v37
  %v422 = vunpack.c.l.b16 %v38
  %v423 = vunpack.c.l.b16 %v39
  %v424 = vunpack.c.l.b16 %v40
  %v425 = vunpack.c.l.b16 %v41
  %v426 = vunpack.c.l.b16 %v42
  %v427 = vunpack.c.l.b16 %v43
  %v428 = vunpack.c.l.b16 %v44
  %v429 = vunpack.c.l.b16 %v45
  %v430 = vunpack.c.l.b16 %v46
  %v431 = vunpack.c.l.b16 %v47
  %v432 = vunpack.c.l.b16 %v48
  %v433 = vunpack.c.l.b16 %v49
  %v434 = vunpack.c.l.b16 %v50
  %v435 = vunpack.c.l.b16 %v51
  %v436 = vunpack.c.l.b16 %v52
  %v437 = vunpack.c.l.b16 %v53
  %v438 = vunpack.c.l.b16 %v54
  %v439 = vunpack.c.l.b16 %v55
  %v440 = vunpack.c.l.b16 %v56
  %v441 = vunpack.c.l.b16 %v57
  %v442 = vunpack.c.l.b16 %v58
  %v443 = vunpack.c.l.b16 %v59
  %v444 = vunpack.c.l.b16 %v60
  %v445 = vunpack.c.l.b16 %v61
  %v446 = vunpack.c.l.b16 %v62
  %v447 = vunpack.c.l.b16 %v63
  %v448 = vunpack.c.l.b16 %v64
  %v449 = vunpack.c.l.b16 %v65
  %v450 = vunpack.c.l.b16 %v66
  %v451 = vunpack.c.l.b16 %v67
  %v452 = vunpack.c.l.b16 %v68
  %v453 = vunpack.c.l.b16 %v69
  %v454 = vunpack.c.l.b16 %v70
  %v455 = vunpack.c.l.b16 %v71
  %v456 = vunpack.c.l.b16 %v72
  %v457 = vunpack.c.l.b16 %v73
  %v458 = vunpack.c.l.b16 %v74
  %v459 = vunpack.c.l.b16 %v75
  %v460 = vunpack.c.l.b16 %v76
  %v461 = vunpack.c.l.b16 %v77
  %v462 = vunpack.c.l.b16 %v78
  %v463 = vunpack.c.l.b16 %v79
  %v464 = vunpack.c.l.b16 %v80
  %v465 = vunpack.c.l.b16 %v81
  %v466 = vunpack.c.l.b16 %v82
  %v467 = vunpack.c.l.b16 %v83
  %v468 = vunpack.c.l.b16 %v84
  %v469 = vunpack.c.l.b16 %v85
  %v470 = vunpack.c.l.b16 %v86
  %v471 = vunpack.c.l.b16 %v87
  %v472 = vunpack.c.l.b16 %v88
  %v473 = vunpack.c.l.b16 %v89
  %v474 = vunpack.c.l.b16 %v90
  %v475 = vunpack.c.l.b16 %v91
  %v476 = vunpack.c.l.b16 %v92
  %v477 = vunpack.c.l.b16 %v93
  %v478 = vunpack.c.l.b16 %v94
  %v479 = vunpack.c.l.b16 %v95
  %v480 = vunpack.c.l.b16 %v96
  %v481 = vunpack.c.l.b16 %v97
  %v482 = vunpack.c.l.b16 %v98
  %v483 = vunpack.c.l.b16 %v99
  %v484 = vunpack.c.l.b16 %v100
  %v485 = vunpack.c.l.b16 %v101
  %v486 = vunpack.c.l.b16 %v102
  %v487 = vunpack.c.l.b16 %v103
  %v488 = vunpack.c.l.b16 %v104
  %v489 = vunpack.c.l.b16 %v105
  %v490 = vunpack.c.l.b16 %v106
  %v491 = vunpack.c.l.b16 %v107
  %v492 = vunpack.c.l.b16 %v108
  %v493 = vunpack.c.l.b16 %v109
  %v494 = vunpack.c.l.b16 %v110
  %v495 = vunpack.c.l.b16 %v111
  %v496 = vunpack.c.l.b16 %v112
  %v497 = vunpack.c.l.b16 %v113
  %v498 = vunpack.c.l.b16 %v114
  %v499 = vunpack.c.l.b16 %v115
  %v500 = vunpack.c.l.b16 %v116
  %v501 = vunpack.c.l.b16 %v117
  %v502 = vunpack.c.l.b16 %v118
  %v503 = vunpack.c.l.b16 %v119
  %v504 = vunpack.c.l.b16 %v120
  %v505 = vunpack.c.l.b16 %v121
  %v506 = vunpack.c.l.b16 %v122
  %v507 = vunpack.c.l.b16 %v123
  %v508 = vunpack.c.l.b16 %v124
  %v509 = vunpack.c.l.b16 %v125
  %v510 = vunpack.c.l.b16 %v126
  %v511 = vunpack.c.l.b16 %v127
  %v512 = vunpack.c.l.b16 %v128
  %v513 = vunpack.c.l.b16 %v129
  %v514 = vunpack.c.l.b16 %v130
  %v515 = vunpack.c.l.b16 %v131
  %v516 = vunpack.c.l.b16 %v132
  %v517 = vunpack.c.l.b16 %v133
  %v518 = vunpack.c.l.b16 %v134
  %v519 = vunpack.c.l.b16 %v135
  %v520 = vunpack.c.l.b16 %v136
  %v521 = vunpack.c.l.b16 %v137
  %v522 = vunpack.c.l.b16 %v138
  %v523 = vunpack.c.l.b16 %v139
  %v524 = vunpack.c.l.b16 %v140
  %v525 = vunpack.c.l.b16 %v141
  %v526 = vunpack.c.l.b16 %v142
  %v527 = vunpack.c.l.b16 %v143
  %v528 = vunpack.c.l.b16 %v144
  %v529 = vunpack.c.l.b16 %v145
  %v530 = vunpack.c.l.b16 %v146
  %v531 = vunpack.c.l.b16 %v147
  %v532 = vunpack.c.l.b16 %v148
  %v533 = vunpack.c.l.b16 %v149
  %v534 = vunpack.c.l.b16 %v150
  %v535 = vunpack.c.l.b16 %v151
  %v536 = vunpack.c.l.b16 %v152
  %v537 = vunpack.c.l.b16 %v153
  %v538 = vunpack.c.l.b16 %v154
  %v539 = vunpack.c.l.b16 %v155
  %v540 = vunpack.c.l.b16 %v156
  %v541 = vunpack.c.l.b16 %v157
  %v542 = vunpack.c.l.b16 %v158
  %v543 = vunpack.c.l.b16 %v159
  %v544 = vunpack.c.l.b16 %v160
  %v545 = vunpack.c.l.b16 %v161
  %v546 = vunpack.c.l.b16 %v162
  %v547 = vunpack.c.l.b16 %v163
  %v548 = vunpack.c.l.b16 %v164
  %v549 = vunpack.c.l.b16 %v165
  %v550 = vunpack.c.l.b16 %v166
  %v551 = vunpack.c.l.b16 %v167
  %v552 = vunpack.c.l.b16 %v168
  %v553 = vunpack.c.l.b16 %v169
  %v554 = vunpack.c.l.b16 %v170
  %v555 = vunpack.c.l.b16 %v171
  %v556 = vunpack.c.l.b16 %v172
  %v557 = vunpack.c.l.b16 %v173
  %v558 = vunpack.c.l.b16 %v174
  %v559 = vunpack.c.l.b16 %v175
  %v560 = vunpack.c.l.b16 %v176
  %v561 = vunpack.c.l.b16 %v177
  %v562 = vunpack.c.l.b16 %v178
  %v563 = vunpack.c.l.b16 %v179
  %v564 = vunpack.c.l.b16 %v180
  %v565 = vpack.c.b16 %v422, %v421
  %v566 = vpack.c.b16 %v424, %v423
  %v567 = vpack.c.b16 %v426, %v425
  %v568 = vpack.c.b16 %v428, %v427
  %v569 = vpack.c.b16 %v430, %v429
  %v570 = vpack.c.b16 %v432, %v431
  %v571 = vpack.c.b16 %v434, %v433
  %v572 = vpack.c.b16 %v436, %v435
  %v573 = vpack.c.b16 %v438, %v437
  %v574 = vpack.c.b16 %v440, %v439
  %v575 = vpack.c.b16 %v442, %v441
  %v576 = vpack.c.b16 %v444, %v443
  %v577 = vpack.c.b16 %v446, %v445
  %v578 = vpack.c.b16 %v448, %v447
  %v579 = vpack.c.b16 %v450, %v449
  %v580 = vpack.c.b16 %v452, %v451
  %v581 = vpack.c.b16 %v454, %v453
  %v582 = vpack.c.b16 %v456, %v455
  %v583 = vpack.c.b16 %v458, %v457
  %v584 = vpack.c.b16 %v460, %v459
  %v585 = vpack.c.b16 %v462, %v461
  %v586 = vpack.c.b16 %v464, %v463
  %v587 = vpack.c.b16 %v466, %v465
  %v588 = vpack.c.b16 %v468, %v467
  %v589 = vpack.c.b16 %v470, %v469
  %v590 = vpack.c.b16 %v472, %v471
  %v591 = vpack.c.b16 %v474, %v473
  %v592 = vpack.c.b16 %v476, %v475
  %v593 = vpack.c.b16 %v478, %v477
  %v594 = vpack.c.b16 %v480, %v479
  %v595 = vpack.c.b16 %v482, %v481
  %v596 = vpack.c.b16 %v484, %v483
  %v597 = vpack.c.b16 %v486, %v485
  %v598 = vpack.c.b16 %v488, %v487
  %v599 = vpack.c.b16 %v490, %v489
  %v600 = vpack.c.b16 %v492, %v491
  %v601 = vpack.c.b16 %v494, %v493
  %v602 = vpack.c.b16 %v496, %v495
  %v603 = vpack.c.b16 %v498, %v497
  %v604 = vpack.c.b16 %v500, %v499
  %v605 = vpack.c.b16 %v502, %v501
  %v606 = vpack.c.b16 %v504, %v503
  %v607 = vpack.c.b16 %v506, %v505
  %v608 = vpack.c.b16 %v508, %v507
  %v609 = vpack.c.b16 %v510, %v509
  %v610 = vpack.c.b16 %v512, %v511
  %v611 = vpack.c.b16 %v514, %v513
  %v612 = vpack.c.b16 %v516, %v515
  %v613 = vpack.c.b16 %v518, %v517
  %v614 = vpack.c.b16 %v520, %v519
  %v615 = vpack.c.b16 %v522, %v521
  %v616 = vpack.c.b16 %v524, %v523
  %v617 = vpack.c.b16 %v526, %v525
  %v618 = vpack.c.b16 %v528, %v527
  %v619 = vpack.c.b16 %v530, %v529
  %v620 = vpack.c.b16 %v532, %v531
  %v621 = vpack.c.b16 %v534, %v533
  %v622 = vpack.c.b16 %v536, %v535
  %v623 = vpack.c.b16 %v538, %v537
  %v624 = vpack.c.b16 %v540, %v539
  %v625 = vpack.c.b16 %v542, %v541
  %v626 = vpack.c.b16 %v544, %v543
  %v627 = vpack.c.b16 %v546, %v545
  %v628 = vpack.c.b16 %v548, %v547
  %v629 = vpack.c.b16 %v550, %v549
  %v630 = vpack.c.b16 %v552, %v551
  %v631 = vpack.c.b16 %v554, %v553
  %v632 = vpack.c.b16 %v556, %v555
  %v633 = vpack.c.b16 %v558, %v557
  %v634 = vpack.c.b16 %v560, %v559
  %v635 = vpack.c.b16 %v562, %v561
  %v636 = vpack.c.b16 %v564, %v563
  %709 = vmatpush.bf16.msra.mxu0 %v572
  %710 = vmatpush.bf16.msra.mxu0 %v571
  %711 = vmatpush.bf16.msra.mxu0 %v570
  %712 = vmatpush.bf16.msra.mxu0 %v569
  %713 = vmatpush.bf16.msra.mxu0 %v568
  %714 = vmatpush.bf16.msra.mxu0 %v567
  %715 = vmatpush.bf16.msra.mxu0 %v566
  %716 = vmatpush.bf16.msra.mxu0 %v565
  %717 = vmatmul.bf16.gmra.mxu0 %v241
  %v718 = vpop.f32.mrf.mxu0
  %v719 = vadd.f32 %v183, %v718
  %v720 = vpop.f32.mrf.mxu0
  %v721 = vadd.f32 %v183, %v720
  %722 = vmatmul.bf16.gmra.mxu0 %v250
  %v723 = vpop.f32.mrf.mxu0
  %v724 = vadd.f32 %v183, %v723
  %v725 = vpop.f32.mrf.mxu0
  %v726 = vadd.f32 %v183, %v725
  %727 = vdwg.mxu0
  %728 = vmatpush.bf16.msra.mxu0 %v580
  %729 = vmatpush.bf16.msra.mxu0 %v579
  %730 = vmatpush.bf16.msra.mxu0 %v578
  %731 = vmatpush.bf16.msra.mxu0 %v577
  %732 = vmatpush.bf16.msra.mxu0 %v576
  %733 = vmatpush.bf16.msra.mxu0 %v575
  %734 = vmatpush.bf16.msra.mxu0 %v574
  %735 = vmatpush.bf16.msra.mxu0 %v573
  %736 = vmatmul.bf16.gmra.mxu0 %v242
  %v737 = vpop.f32.mrf.mxu0
  %v738 = vadd.f32 %v719, %v737
  %v739 = vpop.f32.mrf.mxu0
  %v740 = vadd.f32 %v721, %v739
  %741 = vmatmul.bf16.gmra.mxu0 %v251
  %v742 = vpop.f32.mrf.mxu0
  %v743 = vadd.f32 %v724, %v742
  %v744 = vpop.f32.mrf.mxu0
  %v745 = vadd.f32 %v726, %v744
  %746 = vdwg.mxu0
  %747 = vmatpush.bf16.msra.mxu0 %v588
  %748 = vmatpush.bf16.msra.mxu0 %v587
  %749 = vmatpush.bf16.msra.mxu0 %v586
  %750 = vmatpush.bf16.msra.mxu0 %v585
  %751 = vmatpush.bf16.msra.mxu0 %v584
  %752 = vmatpush.bf16.msra.mxu0 %v583
  %753 = vmatpush.bf16.msra.mxu0 %v582
  %754 = vmatpush.bf16.msra.mxu0 %v581
  %755 = vmatmul.bf16.gmra.mxu0 %v243
  %v756 = vpop.f32.mrf.mxu0
  %v757 = vadd.f32 %v738, %v756
  %v758 = vpop.f32.mrf.mxu0
  %v759 = vadd.f32 %v740, %v758
  %760 = vmatmul.bf16.gmra.mxu0 %v252
  %v761 = vpop.f32.mrf.mxu0
  %v762 = vadd.f32 %v743, %v761
  %v763 = vpop.f32.mrf.mxu0
  %v764 = vadd.f32 %v745, %v763
  %765 = vdwg.mxu0
  %766 = vmatpush.bf16.msra.mxu0 %v596
  %767 = vmatpush.bf16.msra.mxu0 %v595
  %768 = vmatpush.bf16.msra.mxu0 %v594
  %769 = vmatpush.bf16.msra.mxu0 %v593
  %770 = vmatpush.bf16.msra.mxu0 %v592
  %771 = vmatpush.bf16.msra.mxu0 %v591
  %772 = vmatpush.bf16.msra.mxu0 %v590
  %773 = vmatpush.bf16.msra.mxu0 %v589
  %774 = vmatmul.bf16.gmra.mxu0 %v244
  %v775 = vpop.f32.mrf.mxu0
  %v776 = vadd.f32 %v757, %v775
  %v777 = vpop.f32.mrf.mxu0
  %v778 = vadd.f32 %v759, %v777
  %779 = vmatmul.bf16.gmra.mxu0 %v253
  %v780 = vpop.f32.mrf.mxu0
  %v781 = vadd.f32 %v762, %v780
  %v782 = vpop.f32.mrf.mxu0
  %v783 = vadd.f32 %v764, %v782
  %784 = vdwg.mxu0
  %785 = vmatpush.bf16.msra.mxu0 %v604
  %786 = vmatpush.bf16.msra.mxu0 %v603
  %787 = vmatpush.bf16.msra.mxu0 %v602
  %788 = vmatpush.bf16.msra.mxu0 %v601
  %789 = vmatpush.bf16.msra.mxu0 %v600
  %790 = vmatpush.bf16.msra.mxu0 %v599
  %791 = vmatpush.bf16.msra.mxu0 %v598
  %792 = vmatpush.bf16.msra.mxu0 %v597
  %793 = vmatmul.bf16.gmra.mxu0 %v245
  %v794 = vpop.f32.mrf.mxu0
  %v795 = vadd.f32 %v776, %v794
  %v796 = vpop.f32.mrf.mxu0
  %v797 = vadd.f32 %v778, %v796
  %798 = vmatmul.bf16.gmra.mxu0 %v254
  %v799 = vpop.f32.mrf.mxu0
  %v800 = vadd.f32 %v781, %v799
  %v801 = vpop.f32.mrf.mxu0
  %v802 = vadd.f32 %v783, %v801
  %803 = vdwg.mxu0
  %804 = vmatpush.bf16.msra.mxu0 %v612
  %805 = vmatpush.bf16.msra.mxu0 %v611
  %806 = vmatpush.bf16.msra.mxu0 %v610
  %807 = vmatpush.bf16.msra.mxu0 %v609
  %808 = vmatpush.bf16.msra.mxu0 %v608
  %809 = vmatpush.bf16.msra.mxu0 %v607
  %810 = vmatpush.bf16.msra.mxu0 %v606
  %811 = vmatpush.bf16.msra.mxu0 %v605
  %812 = vmatmul.bf16.gmra.mxu0 %v246
  %v813 = vpop.f32.mrf.mxu0
  %v814 = vadd.f32 %v795, %v813
  %v815 = vpop.f32.mrf.mxu0
  %v816 = vadd.f32 %v797, %v815
  %817 = vmatmul.bf16.gmra.mxu0 %v255
  %v818 = vpop.f32.mrf.mxu0
  %v819 = vadd.f32 %v800, %v818
  %v820 = vpop.f32.mrf.mxu0
  %v821 = vadd.f32 %v802, %v820
  %822 = vdwg.mxu0
  %823 = vmatpush.bf16.msra.mxu0 %v620
  %824 = vmatpush.bf16.msra.mxu0 %v619
  %825 = vmatpush.bf16.msra.mxu0 %v618
  %826 = vmatpush.bf16.msra.mxu0 %v617
  %827 = vmatpush.bf16.msra.mxu0 %v616
  %828 = vmatpush.bf16.msra.mxu0 %v615
  %829 = vmatpush.bf16.msra.mxu0 %v614
  %830 = vmatpush.bf16.msra.mxu0 %v613
  %831 = vmatmul.bf16.gmra.mxu0 %v247
  %v832 = vpop.f32.mrf.mxu0
  %v833 = vadd.f32 %v814, %v832
  %v834 = vpop.f32.mrf.mxu0
  %v835 = vadd.f32 %v816, %v834
  %836 = vmatmul.bf16.gmra.mxu0 %v256
  %v837 = vpop.f32.mrf.mxu0
  %v838 = vadd.f32 %v819, %v837
  %v839 = vpop.f32.mrf.mxu0
  %v840 = vadd.f32 %v821, %v839
  %841 = vdwg.mxu0
  %842 = vmatpush.bf16.msra.mxu0 %v628
  %843 = vmatpush.bf16.msra.mxu0 %v627
  %844 = vmatpush.bf16.msra.mxu0 %v626
  %845 = vmatpush.bf16.msra.mxu0 %v625
  %846 = vmatpush.bf16.msra.mxu0 %v624
  %847 = vmatpush.bf16.msra.mxu0 %v623
  %848 = vmatpush.bf16.msra.mxu0 %v622
  %849 = vmatpush.bf16.msra.mxu0 %v621
  %850 = vmatmul.bf16.gmra.mxu0 %v248
  %v851 = vpop.f32.mrf.mxu0
  %v852 = vadd.f32 %v833, %v851
  %v853 = vpop.f32.mrf.mxu0
  %v854 = vadd.f32 %v835, %v853
  %855 = vmatmul.bf16.gmra.mxu0 %v257
  %v856 = vpop.f32.mrf.mxu0
  %v857 = vadd.f32 %v838, %v856
  %v858 = vpop.f32.mrf.mxu0
  %v859 = vadd.f32 %v840, %v858
  %860 = vdwg.mxu0
  %861 = vmatpush.bf16.msra.mxu0 %v636
  %862 = vmatpush.bf16.msra.mxu0 %v635
  %863 = vmatpush.bf16.msra.mxu0 %v634
  %864 = vmatpush.bf16.msra.mxu0 %v633
  %865 = vmatpush.bf16.msra.mxu0 %v632
  %866 = vmatpush.bf16.msra.mxu0 %v631
  %867 = vmatpush.bf16.msra.mxu0 %v630
  %868 = vmatpush.bf16.msra.mxu0 %v629
  %869 = vmatmul.bf16.gmra.mxu0 %v249
  %v870 = vpop.f32.mrf.mxu0
  %v871 = vadd.f32 %v852, %v870
  %v872 = vpop.f32.mrf.mxu0
  %v873 = vadd.f32 %v854, %v872
  %874 = vmatmul.bf16.gmra.mxu0 %v258
  %v875 = vpop.f32.mrf.mxu0
  %v876 = vadd.f32 %v857, %v875
  %v877 = vpop.f32.mrf.mxu0
  %v878 = vadd.f32 %v859, %v877
  %879 = vdwg.mxu0
  %v880 = vld [vmem:[%s3] sm:$0xf]
  %v881 = vld [vmem:[%s3 + $0x4] sm:$0xf]
  %v882 = vld [vmem:[%s3 + $0x8] sm:$0xf]
  %v883 = vld [vmem:[%s3 + $0xc] sm:$0xf]
  %v884 = vunpack.c.l.bf16 %v880
  %v885 = vunpack.c.l.bf16 %v881
  %v886 = vunpack.c.l.bf16 %v882
  %v887 = vunpack.c.l.bf16 %v883
  %v888 = vadd.f32 %v871, %v884
  %v889 = vadd.f32 %v873, %v885
  %v890 = vadd.f32 %v876, %v886
  %v891 = vadd.f32 %v878, %v887
  %v892 = vmax.f32 %v888, 0.0
  %v893 = vmax.f32 %v889, 0.0
  %v894 = vmax.f32 %v890, 0.0
  %v895 = vmax.f32 %v891, 0.0
  %v896 = vpack.c.bf16 %v892, %v892
  %v897 = vpack.c.bf16 %v893, %v893
  %v898 = vpack.c.bf16 %v894, %v894
  %v899 = vpack.c.bf16 %v895, %v895
  %900 = vst [vmem:[%s4] sm:$0xf] %v896
  %901 = vst [vmem:[%s4 + $0x4] sm:$0xf] %v897
  %902 = vst [vmem:[%s4 + $0x8] sm:$0xf] %v898
  %903 = vst [vmem:[%s4 + $0xc] sm:$0xf] %v899
  // Predicated region
  $region18: #{ash_resnet18_forward.17} parent=0 // pred_check
    _
  $region19: #{ash_resnet18_forward.17} parent=0 // pred_check_branch
    %905 = sbr.rel (0) target = $region21
  $region20: #{ash_resnet18_forward.17} parent=0 // pred_region
    _
  $region21: #{ash_resnet18_forward.17} parent=0 // pred_fallthru
    _
  // Predicated region
  $region22: #{ash_resnet18_forward.17} parent=0 // pred_check
    _
  $region23: #{ash_resnet18_forward.17} parent=0 // pred_check_branch
    %907 = sbr.rel (0) target = $region25
  $region24: #{ash_resnet18_forward.17} parent=0 // pred_region
    _
  $region25: #{ash_resnet18_forward.17} parent=0 // pred_fallthru
    _

// kernel: ash_resnet18_forward.18
$region0: #{ash_resnet18_forward.18}
  #allocation0 [shape = 'u32[]', space=smem, size = 0x4, offset = 0x4, fixed_abs, tag = 'smem constant byte address 0x4 - core index']
  #allocation1 [shape = 'u32[72,128]{1,0:T(1,128)}', space=vmem, size = 0x9000, scoped, tag = 'internal scratch']
  %s0 = inlined_call_operand.vmem [shape: bf16[32,1152], index: 0, kind: input, shape index: {}]
  %s1 = inlined_call_operand.vmem [shape: bf16[1152,128], index: 1, kind: input, shape index: {}]
  %s2 = inlined_call_operand.vmem [shape: f32[1,128], index: 2, kind: input, shape index: {}]
  %s3 = inlined_call_operand.vmem [shape: bf16[32,128], index: 3, kind: output, shape index: {}]
  %s4 = sld [smem:[#allocation0]]
  $region22: #{ash_resnet18_forward.18} parent=0
    _
  %s6 = ssub.s32 1, %s4
  %s7 = scalar_select 0, %s6, %s4
  // Predicated region
  $region2: #{ash_resnet18_forward.18} parent=0 // pred_check
    _
  $region3: #{ash_resnet18_forward.18} parent=0 // pred_check_branch
    %9 = sbr.rel (0) target = $region5
  $region4: #{ash_resnet18_forward.18} parent=0 // pred_region
    _
  $region5: #{ash_resnet18_forward.18} parent=0 // pred_fallthru
    _
  // Predicated region
  $region6: #{ash_resnet18_forward.18} parent=0 // pred_check
    _
  $region7: #{ash_resnet18_forward.18} parent=0 // pred_check_branch
    %11 = sbr.rel (0) target = $region9
  $region8: #{ash_resnet18_forward.18} parent=0 // pred_region
    _
  $region9: #{ash_resnet18_forward.18} parent=0 // pred_fallthru
    _
  // Predicated region
  $region10: #{ash_resnet18_forward.18} parent=0 // pred_check
    _
  $region11: #{ash_resnet18_forward.18} parent=0 // pred_check_branch
    %13 = sbr.rel (0) target = $region13
  $region12: #{ash_resnet18_forward.18} parent=0 // pred_region
    _
  $region13: #{ash_resnet18_forward.18} parent=0 // pred_fallthru
    _
  %v14 = vld [vmem:[%s0] sm:$0xff]
  %v15 = vld [vmem:[%s0 + $0x8] sm:$0xff]
  %v16 = vld [vmem:[%s0 + $0x10] sm:$0xff]
  %v17 = vld [vmem:[%s0 + $0x18] sm:$0xff]
  %v18 = vld [vmem:[%s0 + $0x20] sm:$0xf]
  %v19 = vld [vmem:[%s0 + $0x24] sm:$0xff]
  %v20 = vld [vmem:[%s0 + $0x2c] sm:$0xff]
  %v21 = vld [vmem:[%s0 + $0x34] sm:$0xff]
  %v22 = vld [vmem:[%s0 + $0x3c] sm:$0xff]
  %v23 = vld [vmem:[%s0 + $0x44] sm:$0xf]
  %v24 = vld [vmem:[%s0 + $0x48] sm:$0xff]
  %v25 = vld [vmem:[%s0 + $0x50] sm:$0xff]
  %v26 = vld [vmem:[%s0 + $0x58] sm:$0xff]
  %v27 = vld [vmem:[%s0 + $0x60] sm:$0xff]
  %v28 = vld [vmem:[%s0 + $0x68] sm:$0xf]
  %v29 = vld [vmem:[%s0 + $0x6c] sm:$0xff]
  %v30 = vld [vmem:[%s0 + $0x74] sm:$0xff]
  %v31 = vld [vmem:[%s0 + $0x7c] sm:$0xff]
  %v32 = vld [vmem:[%s0 + $0x84] sm:$0xff]
  %v33 = vld [vmem:[%s0 + $0x8c] sm:$0xf]
  %v34 = vld [vmem:[%s1] sm:$0xf]
  %v35 = vld [vmem:[%s1 + $0x4] sm:$0xf]
  %v36 = vld [vmem:[%s1 + $0x8] sm:$0xf]
  %v37 = vld [vmem:[%s1 + $0xc] sm:$0xf]
  %v38 = vld [vmem:[%s1 + $0x10] sm:$0xf]
  %v39 = vld [vmem:[%s1 + $0x14] sm:$0xf]
  %v40 = vld [vmem:[%s1 + $0x18] sm:$0xf]
  %v41 = vld [vmem:[%s1 + $0x1c] sm:$0xf]
  %v42 = vld [vmem:[%s1 + $0x20] sm:$0xf]
  %v43 = vld [vmem:[%s1 + $0x24] sm:$0xf]
  %v44 = vld [vmem:[%s1 + $0x28] sm:$0xf]
  %v45 = vld [vmem:[%s1 + $0x2c] sm:$0xf]
  %v46 = vld [vmem:[%s1 + $0x30] sm:$0xf]
  %v47 = vld [vmem:[%s1 + $0x34] sm:$0xf]
  %v48 = vld [vmem:[%s1 + $0x38] sm:$0xf]
  %v49 = vld [vmem:[%s1 + $0x3c] sm:$0xf]
  %v50 = vld [vmem:[%s1 + $0x40] sm:$0xf]
  %v51 = vld [vmem:[%s1 + $0x44] sm:$0xf]
  %v52 = vld [vmem:[%s1 + $0x48] sm:$0xf]
  %v53 = vld [vmem:[%s1 + $0x4c] sm:$0xf]
  %v54 = vld [vmem:[%s1 + $0x50] sm:$0xf]
  %v55 = vld [vmem:[%s1 + $0x54] sm:$0xf]
  %v56 = vld [vmem:[%s1 + $0x58] sm:$0xf]
  %v57 = vld [vmem:[%s1 + $0x5c] sm:$0xf]
  %v58 = vld [vmem:[%s1 + $0x60] sm:$0xf]
  %v59 = vld [vmem:[%s1 + $0x64] sm:$0xf]
  %v60 = vld [vmem:[%s1 + $0x68] sm:$0xf]
  %v61 = vld [vmem:[%s1 + $0x6c] sm:$0xf]
  %v62 = vld [vmem:[%s1 + $0x70] sm:$0xf]
  %v63 = vld [vmem:[%s1 + $0x74] sm:$0xf]
  %v64 = vld [vmem:[%s1 + $0x78] sm:$0xf]
  %v65 = vld [vmem:[%s1 + $0x7c] sm:$0xf]
  %v66 = vld [vmem:[%s1 + $0x80] sm:$0xf]
  %v67 = vld [vmem:[%s1 + $0x84] sm:$0xf]
  %v68 = vld [vmem:[%s1 + $0x88] sm:$0xf]
  %v69 = vld [vmem:[%s1 + $0x8c] sm:$0xf]
  %v70 = vld [vmem:[%s1 + $0x90] sm:$0xf]
  %v71 = vld [vmem:[%s1 + $0x94] sm:$0xf]
  %v72 = vld [vmem:[%s1 + $0x98] sm:$0xf]
  %v73 = vld [vmem:[%s1 + $0x9c] sm:$0xf]
  %v74 = vld [vmem:[%s1 + $0xa0] sm:$0xf]
  %v75 = vld [vmem:[%s1 + $0xa4] sm:$0xf]
  %v76 = vld [vmem:[%s1 + $0xa8] sm:$0xf]
  %v77 = vld [vmem:[%s1 + $0xac] sm:$0xf]
  %v78 = vld [vmem:[%s1 + $0xb0] sm:$0xf]
  %v79 = vld [vmem:[%s1 + $0xb4] sm:$0xf]
  %v80 = vld [vmem:[%s1 + $0xb8] sm:$0xf]
  %v81 = vld [vmem:[%s1 + $0xbc] sm:$0xf]
  %v82 = vld [vmem:[%s1 + $0xc0] sm:$0xf]
  %v83 = vld [vmem:[%s1 + $0xc4] sm:$0xf]
  %v84 = vld [vmem:[%s1 + $0xc8] sm:$0xf]
  %v85 = vld [vmem:[%s1 + $0xcc] sm:$0xf]
  %v86 = vld [vmem:[%s1 + $0xd0] sm:$0xf]
  %v87 = vld [vmem:[%s1 + $0xd4] sm:$0xf]
  %v88 = vld [vmem:[%s1 + $0xd8] sm:$0xf]
  %v89 = vld [vmem:[%s1 + $0xdc] sm:$0xf]
  %v90 = vld [vmem:[%s1 + $0xe0] sm:$0xf]
  %v91 = vld [vmem:[%s1 + $0xe4] sm:$0xf]
  %v92 = vld [vmem:[%s1 + $0xe8] sm:$0xf]
  %v93 = vld [vmem:[%s1 + $0xec] sm:$0xf]
  %v94 = vld [vmem:[%s1 + $0xf0] sm:$0xf]
  %v95 = vld [vmem:[%s1 + $0xf4] sm:$0xf]
  %v96 = vld [vmem:[%s1 + $0xf8] sm:$0xf]
  %v97 = vld [vmem:[%s1 + $0xfc] sm:$0xf]
  %v98 = vld [vmem:[%s1 + $0x100] sm:$0xf]
  %v99 = vld [vmem:[%s1 + $0x104] sm:$0xf]
  %v100 = vld [vmem:[%s1 + $0x108] sm:$0xf]
  %v101 = vld [vmem:[%s1 + $0x10c] sm:$0xf]
  %v102 = vld [vmem:[%s1 + $0x110] sm:$0xf]
  %v103 = vld [vmem:[%s1 + $0x114] sm:$0xf]
  %v104 = vld [vmem:[%s1 + $0x118] sm:$0xf]
  %v105 = vld [vmem:[%s1 + $0x11c] sm:$0xf]
  %v106 = vld [vmem:[%s1 + $0x120] sm:$0xf]
  %v107 = vld [vmem:[%s1 + $0x124] sm:$0xf]
  %v108 = vld [vmem:[%s1 + $0x128] sm:$0xf]
  %v109 = vld [vmem:[%s1 + $0x12c] sm:$0xf]
  %v110 = vld [vmem:[%s1 + $0x130] sm:$0xf]
  %v111 = vld [vmem:[%s1 + $0x134] sm:$0xf]
  %v112 = vld [vmem:[%s1 + $0x138] sm:$0xf]
  %v113 = vld [vmem:[%s1 + $0x13c] sm:$0xf]
  %v114 = vld [vmem:[%s1 + $0x140] sm:$0xf]
  %v115 = vld [vmem:[%s1 + $0x144] sm:$0xf]
  %v116 = vld [vmem:[%s1 + $0x148] sm:$0xf]
  %v117 = vld [vmem:[%s1 + $0x14c] sm:$0xf]
  %v118 = vld [vmem:[%s1 + $0x150] sm:$0xf]
  %v119 = vld [vmem:[%s1 + $0x154] sm:$0xf]
  %v120 = vld [vmem:[%s1 + $0x158] sm:$0xf]
  %v121 = vld [vmem:[%s1 + $0x15c] sm:$0xf]
  %v122 = vld [vmem:[%s1 + $0x160] sm:$0xf]
  %v123 = vld [vmem:[%s1 + $0x164] sm:$0xf]
  %v124 = vld [vmem:[%s1 + $0x168] sm:$0xf]
  %v125 = vld [vmem:[%s1 + $0x16c] sm:$0xf]
  %v126 = vld [vmem:[%s1 + $0x170] sm:$0xf]
  %v127 = vld [vmem:[%s1 + $0x174] sm:$0xf]
  %v128 = vld [vmem:[%s1 + $0x178] sm:$0xf]
  %v129 = vld [vmem:[%s1 + $0x17c] sm:$0xf]
  %v130 = vld [vmem:[%s1 + $0x180] sm:$0xf]
  %v131 = vld [vmem:[%s1 + $0x184] sm:$0xf]
  %v132 = vld [vmem:[%s1 + $0x188] sm:$0xf]
  %v133 = vld [vmem:[%s1 + $0x18c] sm:$0xf]
  %v134 = vld [vmem:[%s1 + $0x190] sm:$0xf]
  %v135 = vld [vmem:[%s1 + $0x194] sm:$0xf]
  %v136 = vld [vmem:[%s1 + $0x198] sm:$0xf]
  %v137 = vld [vmem:[%s1 + $0x19c] sm:$0xf]
  %v138 = vld [vmem:[%s1 + $0x1a0] sm:$0xf]
  %v139 = vld [vmem:[%s1 + $0x1a4] sm:$0xf]
  %v140 = vld [vmem:[%s1 + $0x1a8] sm:$0xf]
  %v141 = vld [vmem:[%s1 + $0x1ac] sm:$0xf]
  %v142 = vld [vmem:[%s1 + $0x1b0] sm:$0xf]
  %v143 = vld [vmem:[%s1 + $0x1b4] sm:$0xf]
  %v144 = vld [vmem:[%s1 + $0x1b8] sm:$0xf]
  %v145 = vld [vmem:[%s1 + $0x1bc] sm:$0xf]
  %v146 = vld [vmem:[%s1 + $0x1c0] sm:$0xf]
  %v147 = vld [vmem:[%s1 + $0x1c4] sm:$0xf]
  %v148 = vld [vmem:[%s1 + $0x1c8] sm:$0xf]
  %v149 = vld [vmem:[%s1 + $0x1cc] sm:$0xf]
  %v150 = vld [vmem:[%s1 + $0x1d0] sm:$0xf]
  %v151 = vld [vmem:[%s1 + $0x1d4] sm:$0xf]
  %v152 = vld [vmem:[%s1 + $0x1d8] sm:$0xf]
  %v153 = vld [vmem:[%s1 + $0x1dc] sm:$0xf]
  %v154 = vld [vmem:[%s1 + $0x1e0] sm:$0xf]
  %v155 = vld [vmem:[%s1 + $0x1e4] sm:$0xf]
  %v156 = vld [vmem:[%s1 + $0x1e8] sm:$0xf]
  %v157 = vld [vmem:[%s1 + $0x1ec] sm:$0xf]
  %v158 = vld [vmem:[%s1 + $0x1f0] sm:$0xf]
  %v159 = vld [vmem:[%s1 + $0x1f4] sm:$0xf]
  %v160 = vld [vmem:[%s1 + $0x1f8] sm:$0xf]
  %v161 = vld [vmem:[%s1 + $0x1fc] sm:$0xf]
  %v162 = vld [vmem:[%s1 + $0x200] sm:$0xf]
  %v163 = vld [vmem:[%s1 + $0x204] sm:$0xf]
  %v164 = vld [vmem:[%s1 + $0x208] sm:$0xf]
  %v165 = vld [vmem:[%s1 + $0x20c] sm:$0xf]
  %v166 = vld [vmem:[%s1 + $0x210] sm:$0xf]
  %v167 = vld [vmem:[%s1 + $0x214] sm:$0xf]
  %v168 = vld [vmem:[%s1 + $0x218] sm:$0xf]
  %v169 = vld [vmem:[%s1 + $0x21c] sm:$0xf]
  %v170 = vld [vmem:[%s1 + $0x220] sm:$0xf]
  %v171 = vld [vmem:[%s1 + $0x224] sm:$0xf]
  %v172 = vld [vmem:[%s1 + $0x228] sm:$0xf]
  %v173 = vld [vmem:[%s1 + $0x22c] sm:$0xf]
  %v174 = vld [vmem:[%s1 + $0x230] sm:$0xf]
  %v175 = vld [vmem:[%s1 + $0x234] sm:$0xf]
  %v176 = vld [vmem:[%s1 + $0x238] sm:$0xf]
  %v177 = vld [vmem:[%s1 + $0x23c] sm:$0xf]
  %v178 = vld [vmem:[%s2] sm:$0x1]
  %v180 = vperm.slane %v178, 0
  %v202 = vunpack.c.l.b16 %v14
  %v203 = vunpack.c.h.b16 %v14
  %v204 = vunpack.c.l.b16 %v15
  %v205 = vunpack.c.h.b16 %v15
  %v206 = vunpack.c.l.b16 %v16
  %v207 = vunpack.c.h.b16 %v16
  %v208 = vunpack.c.l.b16 %v17
  %v209 = vunpack.c.h.b16 %v17
  %v210 = vunpack.c.l.b16 %v18
  %v211 = vunpack.c.l.b16 %v19
  %v212 = vunpack.c.h.b16 %v19
  %v213 = vunpack.c.l.b16 %v20
  %v214 = vunpack.c.h.b16 %v20
  %v215 = vunpack.c.l.b16 %v21
  %v216 = vunpack.c.h.b16 %v21
  %v217 = vunpack.c.l.b16 %v22
  %v218 = vunpack.c.h.b16 %v22
  %v219 = vunpack.c.l.b16 %v23
  %v220 = vunpack.c.l.b16 %v24
  %v221 = vunpack.c.h.b16 %v24
  %v222 = vunpack.c.l.b16 %v25
  %v223 = vunpack.c.h.b16 %v25
  %v224 = vunpack.c.l.b16 %v26
  %v225 = vunpack.c.h.b16 %v26
  %v226 = vunpack.c.l.b16 %v27
  %v227 = vunpack.c.h.b16 %v27
  %v228 = vunpack.c.l.b16 %v28
  %v229 = vunpack.c.l.b16 %v29
  %v230 = vunpack.c.h.b16 %v29
  %v231 = vunpack.c.l.b16 %v30
  %v232 = vunpack.c.h.b16 %v30
  %v233 = vunpack.c.l.b16 %v31
  %v234 = vunpack.c.h.b16 %v31
  %v235 = vunpack.c.l.b16 %v32
  %v236 = vunpack.c.h.b16 %v32
  %v237 = vunpack.c.l.b16 %v33
  %v238 = vpack.c.b16 %v211, %v202
  %v239 = vpack.c.b16 %v212, %v203
  %v240 = vpack.c.b16 %v213, %v204
  %v241 = vpack.c.b16 %v214, %v205
  %v242 = vpack.c.b16 %v215, %v206
  %v243 = vpack.c.b16 %v216, %v207
  %v244 = vpack.c.b16 %v217, %v208
  %v245 = vpack.c.b16 %v218, %v209
  %v246 = vpack.c.b16 %v219, %v210
  %v247 = vpack.c.b16 %v229, %v220
  %v248 = vpack.c.b16 %v230, %v221
  %v249 = vpack.c.b16 %v231, %v222
  %v250 = vpack.c.b16 %v232, %v223
  %v251 = vpack.c.b16 %v233, %v224
  %v252 = vpack.c.b16 %v234, %v225
  %v253 = vpack.c.b16 %v235, %v226
  %v254 = vpack.c.b16 %v236, %v227
  %v255 = vpack.c.b16 %v237, %v228
  %v418 = vunpack.c.l.b16 %v34
  %v419 = vunpack.c.l.b16 %v35
  %v420 = vunpack.c.l.b16 %v36
  %v421 = vunpack.c.l.b16 %v37
  %v422 = vunpack.c.l.b16 %v38
  %v423 = vunpack.c.l.b16 %v39
  %v424 = vunpack.c.l.b16 %v40
  %v425 = vunpack.c.l.b16 %v41
  %v426 = vunpack.c.l.b16 %v42
  %v427 = vunpack.c.l.b16 %v43
  %v428 = vunpack.c.l.b16 %v44
  %v429 = vunpack.c.l.b16 %v45
  %v430 = vunpack.c.l.b16 %v46
  %v431 = vunpack.c.l.b16 %v47
  %v432 = vunpack.c.l.b16 %v48
  %v433 = vunpack.c.l.b16 %v49
  %v434 = vunpack.c.l.b16 %v50
  %v435 = vunpack.c.l.b16 %v51
  %v436 = vunpack.c.l.b16 %v52
  %v437 = vunpack.c.l.b16 %v53
  %v438 = vunpack.c.l.b16 %v54
  %v439 = vunpack.c.l.b16 %v55
  %v440 = vunpack.c.l.b16 %v56
  %v441 = vunpack.c.l.b16 %v57
  %v442 = vunpack.c.l.b16 %v58
  %v443 = vunpack.c.l.b16 %v59
  %v444 = vunpack.c.l.b16 %v60
  %v445 = vunpack.c.l.b16 %v61
  %v446 = vunpack.c.l.b16 %v62
  %v447 = vunpack.c.l.b16 %v63
  %v448 = vunpack.c.l.b16 %v64
  %v449 = vunpack.c.l.b16 %v65
  %v450 = vunpack.c.l.b16 %v66
  %v451 = vunpack.c.l.b16 %v67
  %v452 = vunpack.c.l.b16 %v68
  %v453 = vunpack.c.l.b16 %v69
  %v454 = vunpack.c.l.b16 %v70
  %v455 = vunpack.c.l.b16 %v71
  %v456 = vunpack.c.l.b16 %v72
  %v457 = vunpack.c.l.b16 %v73
  %v458 = vunpack.c.l.b16 %v74
  %v459 = vunpack.c.l.b16 %v75
  %v460 = vunpack.c.l.b16 %v76
  %v461 = vunpack.c.l.b16 %v77
  %v462 = vunpack.c.l.b16 %v78
  %v463 = vunpack.c.l.b16 %v79
  %v464 = vunpack.c.l.b16 %v80
  %v465 = vunpack.c.l.b16 %v81
  %v466 = vunpack.c.l.b16 %v82
  %v467 = vunpack.c.l.b16 %v83
  %v468 = vunpack.c.l.b16 %v84
  %v469 = vunpack.c.l.b16 %v85
  %v470 = vunpack.c.l.b16 %v86
  %v471 = vunpack.c.l.b16 %v87
  %v472 = vunpack.c.l.b16 %v88
  %v473 = vunpack.c.l.b16 %v89
  %v474 = vunpack.c.l.b16 %v90
  %v475 = vunpack.c.l.b16 %v91
  %v476 = vunpack.c.l.b16 %v92
  %v477 = vunpack.c.l.b16 %v93
  %v478 = vunpack.c.l.b16 %v94
  %v479 = vunpack.c.l.b16 %v95
  %v480 = vunpack.c.l.b16 %v96
  %v481 = vunpack.c.l.b16 %v97
  %v482 = vunpack.c.l.b16 %v98
  %v483 = vunpack.c.l.b16 %v99
  %v484 = vunpack.c.l.b16 %v100
  %v485 = vunpack.c.l.b16 %v101
  %v486 = vunpack.c.l.b16 %v102
  %v487 = vunpack.c.l.b16 %v103
  %v488 = vunpack.c.l.b16 %v104
  %v489 = vunpack.c.l.b16 %v105
  %v490 = vunpack.c.l.b16 %v106
  %v491 = vunpack.c.l.b16 %v107
  %v492 = vunpack.c.l.b16 %v108
  %v493 = vunpack.c.l.b16 %v109
  %v494 = vunpack.c.l.b16 %v110
  %v495 = vunpack.c.l.b16 %v111
  %v496 = vunpack.c.l.b16 %v112
  %v497 = vunpack.c.l.b16 %v113
  %v498 = vunpack.c.l.b16 %v114
  %v499 = vunpack.c.l.b16 %v115
  %v500 = vunpack.c.l.b16 %v116
  %v501 = vunpack.c.l.b16 %v117
  %v502 = vunpack.c.l.b16 %v118
  %v503 = vunpack.c.l.b16 %v119
  %v504 = vunpack.c.l.b16 %v120
  %v505 = vunpack.c.l.b16 %v121
  %v506 = vunpack.c.l.b16 %v122
  %v507 = vunpack.c.l.b16 %v123
  %v508 = vunpack.c.l.b16 %v124
  %v509 = vunpack.c.l.b16 %v125
  %v510 = vunpack.c.l.b16 %v126
  %v511 = vunpack.c.l.b16 %v127
  %v512 = vunpack.c.l.b16 %v128
  %v513 = vunpack.c.l.b16 %v129
  %v514 = vunpack.c.l.b16 %v130
  %v515 = vunpack.c.l.b16 %v131
  %v516 = vunpack.c.l.b16 %v132
  %v517 = vunpack.c.l.b16 %v133
  %v518 = vunpack.c.l.b16 %v134
  %v519 = vunpack.c.l.b16 %v135
  %v520 = vunpack.c.l.b16 %v136
  %v521 = vunpack.c.l.b16 %v137
  %v522 = vunpack.c.l.b16 %v138
  %v523 = vunpack.c.l.b16 %v139
  %v524 = vunpack.c.l.b16 %v140
  %v525 = vunpack.c.l.b16 %v141
  %v526 = vunpack.c.l.b16 %v142
  %v527 = vunpack.c.l.b16 %v143
  %v528 = vunpack.c.l.b16 %v144
  %v529 = vunpack.c.l.b16 %v145
  %v530 = vunpack.c.l.b16 %v146
  %v531 = vunpack.c.l.b16 %v147
  %v532 = vunpack.c.l.b16 %v148
  %v533 = vunpack.c.l.b16 %v149
  %v534 = vunpack.c.l.b16 %v150
  %v535 = vunpack.c.l.b16 %v151
  %v536 = vunpack.c.l.b16 %v152
  %v537 = vunpack.c.l.b16 %v153
  %v538 = vunpack.c.l.b16 %v154
  %v539 = vunpack.c.l.b16 %v155
  %v540 = vunpack.c.l.b16 %v156
  %v541 = vunpack.c.l.b16 %v157
  %v542 = vunpack.c.l.b16 %v158
  %v543 = vunpack.c.l.b16 %v159
  %v544 = vunpack.c.l.b16 %v160
  %v545 = vunpack.c.l.b16 %v161
  %v546 = vunpack.c.l.b16 %v162
  %v547 = vunpack.c.l.b16 %v163
  %v548 = vunpack.c.l.b16 %v164
  %v549 = vunpack.c.l.b16 %v165
  %v550 = vunpack.c.l.b16 %v166
  %v551 = vunpack.c.l.b16 %v167
  %v552 = vunpack.c.l.b16 %v168
  %v553 = vunpack.c.l.b16 %v169
  %v554 = vunpack.c.l.b16 %v170
  %v555 = vunpack.c.l.b16 %v171
  %v556 = vunpack.c.l.b16 %v172
  %v557 = vunpack.c.l.b16 %v173
  %v558 = vunpack.c.l.b16 %v174
  %v559 = vunpack.c.l.b16 %v175
  %v560 = vunpack.c.l.b16 %v176
  %v561 = vunpack.c.l.b16 %v177
  %v562 = vpack.c.b16 %v419, %v418
  %v563 = vpack.c.b16 %v421, %v420
  %v564 = vpack.c.b16 %v423, %v422
  %v565 = vpack.c.b16 %v425, %v424
  %v566 = vpack.c.b16 %v427, %v426
  %v567 = vpack.c.b16 %v429, %v428
  %v568 = vpack.c.b16 %v431, %v430
  %v569 = vpack.c.b16 %v433, %v432
  %v570 = vpack.c.b16 %v435, %v434
  %v571 = vpack.c.b16 %v437, %v436
  %v572 = vpack.c.b16 %v439, %v438
  %v573 = vpack.c.b16 %v441, %v440
  %v574 = vpack.c.b16 %v443, %v442
  %v575 = vpack.c.b16 %v445, %v444
  %v576 = vpack.c.b16 %v447, %v446
  %v577 = vpack.c.b16 %v449, %v448
  %v578 = vpack.c.b16 %v451, %v450
  %v579 = vpack.c.b16 %v453, %v452
  %v580 = vpack.c.b16 %v455, %v454
  %v581 = vpack.c.b16 %v457, %v456
  %v582 = vpack.c.b16 %v459, %v458
  %v583 = vpack.c.b16 %v461, %v460
  %v584 = vpack.c.b16 %v463, %v462
  %v585 = vpack.c.b16 %v465, %v464
  %v586 = vpack.c.b16 %v467, %v466
  %v587 = vpack.c.b16 %v469, %v468
  %v588 = vpack.c.b16 %v471, %v470
  %v589 = vpack.c.b16 %v473, %v472
  %v590 = vpack.c.b16 %v475, %v474
  %v591 = vpack.c.b16 %v477, %v476
  %v592 = vpack.c.b16 %v479, %v478
  %v593 = vpack.c.b16 %v481, %v480
  %v594 = vpack.c.b16 %v483, %v482
  %v595 = vpack.c.b16 %v485, %v484
  %v596 = vpack.c.b16 %v487, %v486
  %v597 = vpack.c.b16 %v489, %v488
  %v598 = vpack.c.b16 %v491, %v490
  %v599 = vpack.c.b16 %v493, %v492
  %v600 = vpack.c.b16 %v495, %v494
  %v601 = vpack.c.b16 %v497, %v496
  %v602 = vpack.c.b16 %v499, %v498
  %v603 = vpack.c.b16 %v501, %v500
  %v604 = vpack.c.b16 %v503, %v502
  %v605 = vpack.c.b16 %v505, %v504
  %v606 = vpack.c.b16 %v507, %v506
  %v607 = vpack.c.b16 %v509, %v508
  %v608 = vpack.c.b16 %v511, %v510
  %v609 = vpack.c.b16 %v513, %v512
  %v610 = vpack.c.b16 %v515, %v514
  %v611 = vpack.c.b16 %v517, %v516
  %v612 = vpack.c.b16 %v519, %v518
  %v613 = vpack.c.b16 %v521, %v520
  %v614 = vpack.c.b16 %v523, %v522
  %v615 = vpack.c.b16 %v525, %v524
  %v616 = vpack.c.b16 %v527, %v526
  %v617 = vpack.c.b16 %v529, %v528
  %v618 = vpack.c.b16 %v531, %v530
  %v619 = vpack.c.b16 %v533, %v532
  %v620 = vpack.c.b16 %v535, %v534
  %v621 = vpack.c.b16 %v537, %v536
  %v622 = vpack.c.b16 %v539, %v538
  %v623 = vpack.c.b16 %v541, %v540
  %v624 = vpack.c.b16 %v543, %v542
  %v625 = vpack.c.b16 %v545, %v544
  %v626 = vpack.c.b16 %v547, %v546
  %v627 = vpack.c.b16 %v549, %v548
  %v628 = vpack.c.b16 %v551, %v550
  %v629 = vpack.c.b16 %v553, %v552
  %v630 = vpack.c.b16 %v555, %v554
  %v631 = vpack.c.b16 %v557, %v556
  %v632 = vpack.c.b16 %v559, %v558
  %v633 = vpack.c.b16 %v561, %v560
  %706 = vmatpush.bf16.msra.mxu0 %v569
  %707 = vmatpush.bf16.msra.mxu0 %v568
  %708 = vmatpush.bf16.msra.mxu0 %v567
  %709 = vmatpush.bf16.msra.mxu0 %v566
  %710 = vmatpush.bf16.msra.mxu0 %v565
  %711 = vmatpush.bf16.msra.mxu0 %v564
  %712 = vmatpush.bf16.msra.mxu0 %v563
  %713 = vmatpush.bf16.msra.mxu0 %v562
  %714 = vmatmul.bf16.gmra.mxu0 %v238
  %v715 = vpop.f32.mrf.mxu0
  %v716 = vadd.f32 %v180, %v715
  %v717 = vpop.f32.mrf.mxu0
  %v718 = vadd.f32 %v180, %v717
  %719 = vmatmul.bf16.gmra.mxu0 %v247
  %v720 = vpop.f32.mrf.mxu0
  %v721 = vadd.f32 %v180, %v720
  %v722 = vpop.f32.mrf.mxu0
  %v723 = vadd.f32 %v180, %v722
  %724 = vdwg.mxu0
  %725 = vmatpush.bf16.msra.mxu0 %v577
  %726 = vmatpush.bf16.msra.mxu0 %v576
  %727 = vmatpush.bf16.msra.mxu0 %v575
  %728 = vmatpush.bf16.msra.mxu0 %v574
  %729 = vmatpush.bf16.msra.mxu0 %v573
  %730 = vmatpush.bf16.msra.mxu0 %v572
  %731 = vmatpush.bf16.msra.mxu0 %v571
  %732 = vmatpush.bf16.msra.mxu0 %v570
  %733 = vmatmul.bf16.gmra.mxu0 %v239
  %v734 = vpop.f32.mrf.mxu0
  %v735 = vadd.f32 %v716, %v734
  %v736 = vpop.f32.mrf.mxu0
  %v737 = vadd.f32 %v718, %v736
  %738 = vmatmul.bf16.gmra.mxu0 %v248
  %v739 = vpop.f32.mrf.mxu0
  %v740 = vadd.f32 %v721, %v739
  %v741 = vpop.f32.mrf.mxu0
  %v742 = vadd.f32 %v723, %v741
  %743 = vdwg.mxu0
  %744 = vmatpush.bf16.msra.mxu0 %v585
  %745 = vmatpush.bf16.msra.mxu0 %v584
  %746 = vmatpush.bf16.msra.mxu0 %v583
  %747 = vmatpush.bf16.msra.mxu0 %v582
  %748 = vmatpush.bf16.msra.mxu0 %v581
  %749 = vmatpush.bf16.msra.mxu0 %v580
  %750 = vmatpush.bf16.msra.mxu0 %v579
  %751 = vmatpush.bf16.msra.mxu0 %v578
  %752 = vmatmul.bf16.gmra.mxu0 %v240
  %v753 = vpop.f32.mrf.mxu0
  %v754 = vadd.f32 %v735, %v753
  %v755 = vpop.f32.mrf.mxu0
  %v756 = vadd.f32 %v737, %v755
  %757 = vmatmul.bf16.gmra.mxu0 %v249
  %v758 = vpop.f32.mrf.mxu0
  %v759 = vadd.f32 %v740, %v758
  %v760 = vpop.f32.mrf.mxu0
  %v761 = vadd.f32 %v742, %v760
  %762 = vdwg.mxu0
  %763 = vmatpush.bf16.msra.mxu0 %v593
  %764 = vmatpush.bf16.msra.mxu0 %v592
  %765 = vmatpush.bf16.msra.mxu0 %v591
  %766 = vmatpush.bf16.msra.mxu0 %v590
  %767 = vmatpush.bf16.msra.mxu0 %v589
  %768 = vmatpush.bf16.msra.mxu0 %v588
  %769 = vmatpush.bf16.msra.mxu0 %v587
  %770 = vmatpush.bf16.msra.mxu0 %v586
  %771 = vmatmul.bf16.gmra.mxu0 %v241
  %v772 = vpop.f32.mrf.mxu0
  %v773 = vadd.f32 %v754, %v772
  %v774 = vpop.f32.mrf.mxu0
  %v775 = vadd.f32 %v756, %v774
  %776 = vmatmul.bf16.gmra.mxu0 %v250
  %v777 = vpop.f32.mrf.mxu0
  %v778 = vadd.f32 %v759, %v777
  %v779 = vpop.f32.mrf.mxu0
  %v780 = vadd.f32 %v761, %v779
  %781 = vdwg.mxu0
  %782 = vmatpush.bf16.msra.mxu0 %v601
  %783 = vmatpush.bf16.msra.mxu0 %v600
  %784 = vmatpush.bf16.msra.mxu0 %v599
  %785 = vmatpush.bf16.msra.mxu0 %v598
  %786 = vmatpush.bf16.msra.mxu0 %v597
  %787 = vmatpush.bf16.msra.mxu0 %v596
  %788 = vmatpush.bf16.msra.mxu0 %v595
  %789 = vmatpush.bf16.msra.mxu0 %v594
  %790 = vmatmul.bf16.gmra.mxu0 %v242
  %v791 = vpop.f32.mrf.mxu0
  %v792 = vadd.f32 %v773, %v791
  %v793 = vpop.f32.mrf.mxu0
  %v794 = vadd.f32 %v775, %v793
  %795 = vmatmul.bf16.gmra.mxu0 %v251
  %v796 = vpop.f32.mrf.mxu0
  %v797 = vadd.f32 %v778, %v796
  %v798 = vpop.f32.mrf.mxu0
  %v799 = vadd.f32 %v780, %v798
  %800 = vdwg.mxu0
  %801 = vmatpush.bf16.msra.mxu0 %v609
  %802 = vmatpush.bf16.msra.mxu0 %v608
  %803 = vmatpush.bf16.msra.mxu0 %v607
  %804 = vmatpush.bf16.msra.mxu0 %v606
  %805 = vmatpush.bf16.msra.mxu0 %v605
  %806 = vmatpush.bf16.msra.mxu0 %v604
  %807 = vmatpush.bf16.msra.mxu0 %v603
  %808 = vmatpush.bf16.msra.mxu0 %v602
  %809 = vmatmul.bf16.gmra.mxu0 %v243
  %v810 = vpop.f32.mrf.mxu0
  %v811 = vadd.f32 %v792, %v810
  %v812 = vpop.f32.mrf.mxu0
  %v813 = vadd.f32 %v794, %v812
  %814 = vmatmul.bf16.gmra.mxu0 %v252
  %v815 = vpop.f32.mrf.mxu0
  %v816 = vadd.f32 %v797, %v815
  %v817 = vpop.f32.mrf.mxu0
  %v818 = vadd.f32 %v799, %v817
  %819 = vdwg.mxu0
  %820 = vmatpush.bf16.msra.mxu0 %v617
  %821 = vmatpush.bf16.msra.mxu0 %v616
  %822 = vmatpush.bf16.msra.mxu0 %v615
  %823 = vmatpush.bf16.msra.mxu0 %v614
  %824 = vmatpush.bf16.msra.mxu0 %v613
  %825 = vmatpush.bf16.msra.mxu0 %v612
  %826 = vmatpush.bf16.msra.mxu0 %v611
  %827 = vmatpush.bf16.msra.mxu0 %v610
  %828 = vmatmul.bf16.gmra.mxu0 %v244
  %v829 = vpop.f32.mrf.mxu0
  %v830 = vadd.f32 %v811, %v829
  %v831 = vpop.f32.mrf.mxu0
  %v832 = vadd.f32 %v813, %v831
  %833 = vmatmul.bf16.gmra.mxu0 %v253
  %v834 = vpop.f32.mrf.mxu0
  %v835 = vadd.f32 %v816, %v834
  %v836 = vpop.f32.mrf.mxu0
  %v837 = vadd.f32 %v818, %v836
  %838 = vdwg.mxu0
  %839 = vmatpush.bf16.msra.mxu0 %v625
  %840 = vmatpush.bf16.msra.mxu0 %v624
  %841 = vmatpush.bf16.msra.mxu0 %v623
  %842 = vmatpush.bf16.msra.mxu0 %v622
  %843 = vmatpush.bf16.msra.mxu0 %v621
  %844 = vmatpush.bf16.msra.mxu0 %v620
  %845 = vmatpush.bf16.msra.mxu0 %v619
  %846 = vmatpush.bf16.msra.mxu0 %v618
  %847 = vmatmul.bf16.gmra.mxu0 %v245
  %v848 = vpop.f32.mrf.mxu0
  %v849 = vadd.f32 %v830, %v848
  %v850 = vpop.f32.mrf.mxu0
  %v851 = vadd.f32 %v832, %v850
  %852 = vmatmul.bf16.gmra.mxu0 %v254
  %v853 = vpop.f32.mrf.mxu0
  %v854 = vadd.f32 %v835, %v853
  %v855 = vpop.f32.mrf.mxu0
  %v856 = vadd.f32 %v837, %v855
  %857 = vdwg.mxu0
  %858 = vmatpush.bf16.msra.mxu0 %v633
  %859 = vmatpush.bf16.msra.mxu0 %v632
  %860 = vmatpush.bf16.msra.mxu0 %v631
  %861 = vmatpush.bf16.msra.mxu0 %v630
  %862 = vmatpush.bf16.msra.mxu0 %v629
  %863 = vmatpush.bf16.msra.mxu0 %v628
  %864 = vmatpush.bf16.msra.mxu0 %v627
  %865 = vmatpush.bf16.msra.mxu0 %v626
  %866 = vmatmul.bf16.gmra.mxu0 %v246
  %v867 = vpop.f32.mrf.mxu0
  %v868 = vadd.f32 %v849, %v867
  %v869 = vpop.f32.mrf.mxu0
  %v870 = vadd.f32 %v851, %v869
  %871 = vmatmul.bf16.gmra.mxu0 %v255
  %v872 = vpop.f32.mrf.mxu0
  %v873 = vadd.f32 %v854, %v872
  %v874 = vpop.f32.mrf.mxu0
  %v875 = vadd.f32 %v856, %v874
  %876 = vdwg.mxu0
  %v877 = vmax.f32 %v868, 0.0
  %v878 = vmax.f32 %v870, 0.0
  %v879 = vmax.f32 %v873, 0.0
  %v880 = vmax.f32 %v875, 0.0
  %v881 = vpack.c.bf16 %v877, %v877
  %v882 = vpack.c.bf16 %v878, %v878
  %v883 = vpack.c.bf16 %v879, %v879
  %v884 = vpack.c.bf16 %v880, %v880
  %885 = vst [vmem:[%s3] sm:$0xf] %v881
  %886 = vst [vmem:[%s3 + $0x4] sm:$0xf] %v882
  %887 = vst [vmem:[%s3 + $0x8] sm:$0xf] %v883
  %888 = vst [vmem:[%s3 + $0xc] sm:$0xf] %v884
  // Predicated region
  $region14: #{ash_resnet18_forward.18} parent=0 // pred_check
    _
  $region15: #{ash_resnet18_forward.18} parent=0 // pred_check_branch
    %890 = sbr.rel (0) target = $region17
  $region16: #{ash_resnet18_forward.18} parent=0 // pred_region
    _
  $region17: #{ash_resnet18_forward.18} parent=0 // pred_fallthru
    _
  // Predicated region
  $region18: #{ash_resnet18_forward.18} parent=0 // pred_check
    _
  $region19: #{ash_resnet18_forward.18} parent=0 // pred_check_branch
    %892 = sbr.rel (0) target = $region21
  $region20: #{ash_resnet18_forward.18} parent=0 // pred_region
    _
  $region21: #{ash_resnet18_forward.18} parent=0 // pred_fallthru
    _

</llo_original>
